<compile_context>
chip_gen: v7x
topology: tpu7x:2x2x1
jax: 0.10.0
libtpu: 0.0.40
codegen_flags: <defaults>
</compile_context>

<pallas_src>
import functools

import jax
import jax.numpy as jnp
from jax.experimental import pallas as pl
from jax.experimental.pallas import tpu as pltpu

BN_EPS = 1e-5
LAYER_SIZES = [6 * 7, 512, 1024, 512, 256, 128, 64, 7]   # fc1 .. fc7
IN_PAD = 128                                              # lane-aligned fc1 LHS width
OUT_PAD = 128                                             # lane-dense output width


# ----------------------------------------------------------------------------
# Kernel
# ----------------------------------------------------------------------------
def dqn_kernel(*refs):
    """refs = (x_ref, [W_i(bf16), b_i(f32)] * 7, out_ref).

    BatchNorm (eval) is pre-folded into W/b.  Dots run bf16 x bf16 -> f32 on
    the MXU; bias add + ReLU run in f32 on the VPU, then the activation is
    stored bf16 for the next layer (halves inter-layer VMEM spill traffic).
    """
    x_ref = refs[0]
    out_ref = refs[-1]
    params = refs[1:-1]

    h = x_ref[...].astype(jnp.bfloat16)                   # (TB, IN_PAD)

    for i in range(6):                                    # fc (+folded BN) + ReLU
        w_ref, b_ref = params[2 * i], params[2 * i + 1]
        acc = jnp.dot(h, w_ref[...], preferred_element_type=jnp.float32)
        h = jnp.maximum(acc + b_ref[...], 0.0).astype(jnp.bfloat16)
        # Dropout(0.3): identity in eval mode.

    w7_ref, b7_ref = params[12], params[13]
    out_ref[...] = (jnp.dot(h, w7_ref[...], preferred_element_type=jnp.float32)
                    + b7_ref[...])                        # (TB, OUT_PAD) lane-dense f32


# ----------------------------------------------------------------------------
# Parameter handling
# ----------------------------------------------------------------------------
def init_params(key):
    """Deterministic init mimicking PyTorch defaults (U(-1/sqrt(fan_in), ...))."""
    params = {}
    for i in range(7):
        fan_in, fan_out = LAYER_SIZES[i], LAYER_SIZES[i + 1]
        key, kw, kb = jax.random.split(key, 3)
        bound = 1.0 / jnp.sqrt(jnp.float32(fan_in))
        params[f"w{i + 1}"] = jax.random.uniform(
            kw, (fan_in, fan_out), jnp.float32, -bound, bound)
        params[f"b{i + 1}"] = jax.random.uniform(
            kb, (1, fan_out), jnp.float32, -bound, bound)
    for i in range(6):  # BatchNorm1d params / running stats at PyTorch init
        n = LAYER_SIZES[i + 1]
        params[f"gamma{i + 1}"] = jnp.ones((1, n), jnp.float32)
        params[f"beta{i + 1}"] = jnp.zeros((1, n), jnp.float32)
        params[f"mean{i + 1}"] = jnp.zeros((1, n), jnp.float32)
        params[f"var{i + 1}"] = jnp.ones((1, n), jnp.float32)
    return params


def fold_params(params):
    """Fold eval-mode BN into fc1..fc6, cast weights bf16, pad fc1 rows / fc7 cols.

    Call ONCE (e.g. after each weight update in an RL loop), not per forward.
    """
    folded = []
    for i in range(1, 7):
        scale = params[f"gamma{i}"] * jax.lax.rsqrt(params[f"var{i}"] + BN_EPS)
        shift = params[f"beta{i}"] - params[f"mean{i}"] * scale
        w = params[f"w{i}"] * scale                       # scale per output column
        b = params[f"b{i}"] * scale + shift               # stays f32
        if i == 1:                                        # 42 -> IN_PAD rows (zero pad)
            w = jnp.pad(w, ((0, IN_PAD - LAYER_SIZES[0]), (0, 0)))
        folded.append(w.astype(jnp.bfloat16))
        folded.append(b.astype(jnp.float32))
    w7 = jnp.pad(params["w7"], ((0, 0), (0, OUT_PAD - LAYER_SIZES[-1])))
    b7 = jnp.pad(params["b7"], ((0, 0), (0, OUT_PAD - LAYER_SIZES[-1])))
    folded.append(w7.astype(jnp.bfloat16))
    folded.append(b7.astype(jnp.float32))
    return tuple(folded)


# ----------------------------------------------------------------------------
# Tiling policy (per TPU generation)
# ----------------------------------------------------------------------------
def _round_up(x, m):
    return ((x + m - 1) // m) * m


def _tile_config(batch):
    """Pick (batch tile, padded batch) per chip generation.

    v5e MXU is 128-wide -> TB=128 already fills the M dimension.
    v6e / v7x MXUs are 256-wide -> TB=256 doubles MXU fill on the big layers.
    v7x has 2 TensorCores sharded over the 'parallel' batch axis -> guarantee
    the grid has >= 2 steps so neither core sits idle on small batches.
    """
    try:
        kind = jax.devices()[0].device_kind.lower()
    except Exception:
        kind = ""
    is_v5e = ("v5 lite" in kind) or ("v5e" in kind) or ("v5lite" in kind)
    tb_pref = 128 if is_v5e else 256
    num_tc = 2 if (("v7" in kind) or ("tpu7" in kind) or ("7x" in kind)) else 1

    tb = min(tb_pref, max(8, _round_up(-(-batch // num_tc), 8)))
    b_pad = _round_up(batch, tb)
    if (b_pad // tb) < num_tc:            # keep both v7x TensorCores busy
        b_pad = tb * num_tc
    return tb, b_pad


# ----------------------------------------------------------------------------
# Wrapper
# ----------------------------------------------------------------------------
@functools.partial(jax.jit, static_argnames=("tb", "b_pad"))
def _dqn_forward_impl(x, folded, *, tb, b_pad):
    B = x.shape[0]
    x2d = x.reshape(B, LAYER_SIZES[0]).astype(jnp.float32)    # == torch x.view(-1, 42)
    x2d = jnp.pad(x2d, ((0, b_pad - B), (0, IN_PAD - LAYER_SIZES[0])))

    grid = (b_pad // tb,)
    x_spec = pl.BlockSpec((tb, IN_PAD), lambda i: (i, 0))
    # Constant index_map -> weights/biases stay VMEM-resident across grid steps.
    param_specs = [pl.BlockSpec(arr.shape, lambda i: (0, 0)) for arr in folded]
    out_spec = pl.BlockSpec((tb, OUT_PAD), lambda i: (i, 0))

    out = pl.pallas_call(
        dqn_kernel,
        out_shape=jax.ShapeDtypeStruct((b_pad, OUT_PAD), jnp.float32),
        grid=grid,
        in_specs=[x_spec] + param_specs,
        out_specs=out_spec,
        compiler_params=pltpu.CompilerParams(
            dimension_semantics=("parallel",),
            vmem_limit_bytes=32 << 20),
    )(x2d, *folded)

    return out[:B, :LAYER_SIZES[-1]]


def dqn_forward(x, folded_params):
    """x: (B, 6, 7) float32, folded_params from fold_params() -> (B, 7) Q-values."""
    tb, b_pad = _tile_config(x.shape[0])
    return _dqn_forward_impl(x, folded_params, tb=tb, b_pad=b_pad)


# ----------------------------------------------------------------------------
# References (for verification)
# ----------------------------------------------------------------------------
def dqn_reference_fp32(x, params):
    """Original eval-mode (batch>1) semantics in plain fp32 JAX."""
    h = x.reshape(x.shape[0], LAYER_SIZES[0]).astype(jnp.float32)
    for i in range(1, 7):
        h = h @ params[f"w{i}"] + params[f"b{i}"]
        scale = params[f"gamma{i}"] / jnp.sqrt(params[f"var{i}"] + BN_EPS)
        h = (h - params[f"mean{i}"]) * scale + params[f"beta{i}"]
        h = jnp.maximum(h, 0.0)
    return h @ params["w7"] + params["b7"]


def dqn_reference_folded(x, folded):
    """Plain-JAX replica of exactly what the kernel computes (folded bf16 path)."""
    B = x.shape[0]
    h = x.reshape(B, LAYER_SIZES[0]).astype(jnp.float32)
    h = jnp.pad(h, ((0, 0), (0, IN_PAD - LAYER_SIZES[0]))).astype(jnp.bfloat16)
    for i in range(6):
        w, b = folded[2 * i], folded[2 * i + 1]
        acc = jnp.dot(h, w, preferred_element_type=jnp.float32) + b
        h = jnp.maximum(acc, 0.0).astype(jnp.bfloat16)
    out = jnp.dot(h, folded[12], preferred_element_type=jnp.float32) + folded[13]
    return out[:, :LAYER_SIZES[-1]]


# ----------------------------------------------------------------------------
if __name__ == "__main__":
    key = jax.random.PRNGKey(0)
    k_params, k_x1, k_x2 = jax.random.split(key, 3)

    params = init_params(k_params)
    folded = fold_params(params)              # fold ONCE, outside the per-call path
    folded = jax.block_until_ready(folded)

    # Small batch of Connect-4 boards (piece encodings in {-1, 0, 1}).
    B1 = 8
    x1 = jax.random.randint(k_x1, (B1, 6, 7), -1, 2).astype(jnp.float32)
    out1 = jax.block_until_ready(dqn_forward(x1, folded))
    assert out1.shape == (B1, 7)

    # Tight check vs a plain-JAX replica of the folded bf16 forward.
    ref1 = dqn_reference_folded(x1, folded)
    assert jnp.allclose(out1, ref1, atol=1e-3, rtol=1e-3), \
        "mismatch vs folded bf16 reference (B=8)"

    # Loose check vs original fp32 eval-mode semantics (bf16 weight/activation
    # quantization is an intentional precision choice for DQN Q-values).
    ref1_f32 = dqn_reference_fp32(x1, params)
    assert jnp.allclose(out1, ref1_f32, atol=5e-2, rtol=5e-2), \
        "mismatch vs fp32 eval-mode reference (B=8)"

    # Larger batch exercises the multi-step batch grid and row-padding path.
    B2 = 300
    x2 = jax.random.randint(k_x2, (B2, 6, 7), -1, 2).astype(jnp.float32)
    out2 = jax.block_until_ready(dqn_forward(x2, folded))
    assert out2.shape == (B2, 7)
    ref2 = dqn_reference_folded(x2, folded)
    assert jnp.allclose(out2, ref2, atol=1e-3, rtol=1e-3), \
        "mismatch vs folded bf16 reference (B=300)"

    print("KERNEL_OK")
</pallas_src>

<mosaic_0001>
module attributes {stable_mosaic.version = 11 : i64} {
  func.func @dqn_kernel(%arg0: i32, %arg1: memref<8x128xf32, #tpu.memory_space<vmem>>, %arg2: memref<128x512xbf16, #tpu.memory_space<vmem>>, %arg3: memref<1x512xf32, #tpu.memory_space<vmem>>, %arg4: memref<512x1024xbf16, #tpu.memory_space<vmem>>, %arg5: memref<1x1024xf32, #tpu.memory_space<vmem>>, %arg6: memref<1024x512xbf16, #tpu.memory_space<vmem>>, %arg7: memref<1x512xf32, #tpu.memory_space<vmem>>, %arg8: memref<512x256xbf16, #tpu.memory_space<vmem>>, %arg9: memref<1x256xf32, #tpu.memory_space<vmem>>, %arg10: memref<256x128xbf16, #tpu.memory_space<vmem>>, %arg11: memref<1x128xf32, #tpu.memory_space<vmem>>, %arg12: memref<128x64xbf16, #tpu.memory_space<vmem>>, %arg13: memref<1x64xf32, #tpu.memory_space<vmem>>, %arg14: memref<64x128xbf16, #tpu.memory_space<vmem>>, %arg15: memref<1x128xf32, #tpu.memory_space<vmem>>, %arg16: memref<8x128xf32, #tpu.memory_space<vmem>>) attributes {dimension_semantics = [#tpu.dimension_semantics<parallel>], iteration_bounds = array<i64: 1>, scalar_prefetch = 0 : i64, scratch_operands = 0 : i64, tpu.core_type = #tpu.core_type<tc>, window_params = [{transform_indices = @transform_0, window_bounds = array<i64: 8, 128>}, {pipeline_mode = #tpu.pipeline_mode<synchronous>, transform_indices = @transform_1, window_bounds = array<i64: 128, 512>}, {pipeline_mode = #tpu.pipeline_mode<synchronous>, transform_indices = @transform_2, window_bounds = array<i64: 1, 512>}, {pipeline_mode = #tpu.pipeline_mode<synchronous>, transform_indices = @transform_3, window_bounds = array<i64: 512, 1024>}, {pipeline_mode = #tpu.pipeline_mode<synchronous>, transform_indices = @transform_4, window_bounds = array<i64: 1, 1024>}, {pipeline_mode = #tpu.pipeline_mode<synchronous>, transform_indices = @transform_5, window_bounds = array<i64: 1024, 512>}, {pipeline_mode = #tpu.pipeline_mode<synchronous>, transform_indices = @transform_6, window_bounds = array<i64: 1, 512>}, {pipeline_mode = #tpu.pipeline_mode<synchronous>, transform_indices = @transform_7, window_bounds = array<i64: 512, 256>}, {pipeline_mode = #tpu.pipeline_mode<synchronous>, transform_indices = @transform_8, window_bounds = array<i64: 1, 256>}, {pipeline_mode = #tpu.pipeline_mode<synchronous>, transform_indices = @transform_9, window_bounds = array<i64: 256, 128>}, {pipeline_mode = #tpu.pipeline_mode<synchronous>, transform_indices = @transform_10, window_bounds = array<i64: 1, 128>}, {pipeline_mode = #tpu.pipeline_mode<synchronous>, transform_indices = @transform_11, window_bounds = array<i64: 128, 64>}, {pipeline_mode = #tpu.pipeline_mode<synchronous>, transform_indices = @transform_12, window_bounds = array<i64: 1, 64>}, {pipeline_mode = #tpu.pipeline_mode<synchronous>, transform_indices = @transform_13, window_bounds = array<i64: 64, 128>}, {pipeline_mode = #tpu.pipeline_mode<synchronous>, transform_indices = @transform_14, window_bounds = array<i64: 1, 128>}, {transform_indices = @transform_15, window_bounds = array<i64: 8, 128>}]} {
    %c0 = arith.constant 0 : index
    %c0_0 = arith.constant 0 : index
    %0 = vector.load %arg1[%c0, %c0_0] : memref<8x128xf32, #tpu.memory_space<vmem>>, vector<8x128xf32>
    %1 = arith.truncf %0 : vector<8x128xf32> to vector<8x128xbf16>
    %c0_1 = arith.constant 0 : index
    %c0_2 = arith.constant 0 : index
    %2 = vector.load %arg2[%c0_1, %c0_2] : memref<128x512xbf16, #tpu.memory_space<vmem>>, vector<128x512xbf16>
    %cst = arith.constant dense<0.000000e+00> : vector<8x512xf32>
    %3 = tpu.matmul %1, %2, %cst {dimension_numbers = #tpu.dot_dimension_numbers<[1], [0], [0], [1], [0, 0, 1, 1], [], []>} : vector<8x128xbf16>, vector<128x512xbf16>, vector<8x512xf32> -> vector<8x512xf32>
    %c0_3 = arith.constant 0 : index
    %c0_4 = arith.constant 0 : index
    %4 = vector.load %arg3[%c0_3, %c0_4] : memref<1x512xf32, #tpu.memory_space<vmem>>, vector<1x512xf32>
    %5 = vector.broadcast %4 : vector<1x512xf32> to vector<8x512xf32>
    %6 = arith.addf %3, %5 : vector<8x512xf32>
    %cst_5 = arith.constant 0.000000e+00 : f32
    %7 = vector.broadcast %cst_5 : f32 to vector<8x512xf32>
    %8 = arith.maximumf %6, %7 : vector<8x512xf32>
    %9 = arith.truncf %8 : vector<8x512xf32> to vector<8x512xbf16>
    %c0_6 = arith.constant 0 : index
    %c0_7 = arith.constant 0 : index
    %10 = vector.load %arg4[%c0_6, %c0_7] : memref<512x1024xbf16, #tpu.memory_space<vmem>>, vector<512x1024xbf16>
    %cst_8 = arith.constant dense<0.000000e+00> : vector<8x1024xf32>
    %11 = tpu.matmul %9, %10, %cst_8 {dimension_numbers = #tpu.dot_dimension_numbers<[1], [0], [0], [1], [0, 0, 1, 1], [], []>} : vector<8x512xbf16>, vector<512x1024xbf16>, vector<8x1024xf32> -> vector<8x1024xf32>
    %c0_9 = arith.constant 0 : index
    %c0_10 = arith.constant 0 : index
    %12 = vector.load %arg5[%c0_9, %c0_10] : memref<1x1024xf32, #tpu.memory_space<vmem>>, vector<1x1024xf32>
    %13 = vector.broadcast %12 : vector<1x1024xf32> to vector<8x1024xf32>
    %14 = arith.addf %11, %13 : vector<8x1024xf32>
    %cst_11 = arith.constant 0.000000e+00 : f32
    %15 = vector.broadcast %cst_11 : f32 to vector<8x1024xf32>
    %16 = arith.maximumf %14, %15 : vector<8x1024xf32>
    %17 = arith.truncf %16 : vector<8x1024xf32> to vector<8x1024xbf16>
    %c0_12 = arith.constant 0 : index
    %c0_13 = arith.constant 0 : index
    %18 = vector.load %arg6[%c0_12, %c0_13] : memref<1024x512xbf16, #tpu.memory_space<vmem>>, vector<1024x512xbf16>
    %cst_14 = arith.constant dense<0.000000e+00> : vector<8x512xf32>
    %19 = tpu.matmul %17, %18, %cst_14 {dimension_numbers = #tpu.dot_dimension_numbers<[1], [0], [0], [1], [0, 0, 1, 1], [], []>} : vector<8x1024xbf16>, vector<1024x512xbf16>, vector<8x512xf32> -> vector<8x512xf32>
    %c0_15 = arith.constant 0 : index
    %c0_16 = arith.constant 0 : index
    %20 = vector.load %arg7[%c0_15, %c0_16] : memref<1x512xf32, #tpu.memory_space<vmem>>, vector<1x512xf32>
    %21 = vector.broadcast %20 : vector<1x512xf32> to vector<8x512xf32>
    %22 = arith.addf %19, %21 : vector<8x512xf32>
    %cst_17 = arith.constant 0.000000e+00 : f32
    %23 = vector.broadcast %cst_17 : f32 to vector<8x512xf32>
    %24 = arith.maximumf %22, %23 : vector<8x512xf32>
    %25 = arith.truncf %24 : vector<8x512xf32> to vector<8x512xbf16>
    %c0_18 = arith.constant 0 : index
    %c0_19 = arith.constant 0 : index
    %26 = vector.load %arg8[%c0_18, %c0_19] : memref<512x256xbf16, #tpu.memory_space<vmem>>, vector<512x256xbf16>
    %cst_20 = arith.constant dense<0.000000e+00> : vector<8x256xf32>
    %27 = tpu.matmul %25, %26, %cst_20 {dimension_numbers = #tpu.dot_dimension_numbers<[1], [0], [0], [1], [0, 0, 1, 1], [], []>} : vector<8x512xbf16>, vector<512x256xbf16>, vector<8x256xf32> -> vector<8x256xf32>
    %c0_21 = arith.constant 0 : index
    %c0_22 = arith.constant 0 : index
    %28 = vector.load %arg9[%c0_21, %c0_22] : memref<1x256xf32, #tpu.memory_space<vmem>>, vector<1x256xf32>
    %29 = vector.broadcast %28 : vector<1x256xf32> to vector<8x256xf32>
    %30 = arith.addf %27, %29 : vector<8x256xf32>
    %cst_23 = arith.constant 0.000000e+00 : f32
    %31 = vector.broadcast %cst_23 : f32 to vector<8x256xf32>
    %32 = arith.maximumf %30, %31 : vector<8x256xf32>
    %33 = arith.truncf %32 : vector<8x256xf32> to vector<8x256xbf16>
    %c0_24 = arith.constant 0 : index
    %c0_25 = arith.constant 0 : index
    %34 = vector.load %arg10[%c0_24, %c0_25] : memref<256x128xbf16, #tpu.memory_space<vmem>>, vector<256x128xbf16>
    %cst_26 = arith.constant dense<0.000000e+00> : vector<8x128xf32>
    %35 = tpu.matmul %33, %34, %cst_26 {dimension_numbers = #tpu.dot_dimension_numbers<[1], [0], [0], [1], [0, 0, 1, 1], [], []>} : vector<8x256xbf16>, vector<256x128xbf16>, vector<8x128xf32> -> vector<8x128xf32>
    %c0_27 = arith.constant 0 : index
    %c0_28 = arith.constant 0 : index
    %36 = vector.load %arg11[%c0_27, %c0_28] : memref<1x128xf32, #tpu.memory_space<vmem>>, vector<1x128xf32>
    %37 = vector.broadcast %36 : vector<1x128xf32> to vector<8x128xf32>
    %38 = arith.addf %35, %37 : vector<8x128xf32>
    %cst_29 = arith.constant 0.000000e+00 : f32
    %39 = vector.broadcast %cst_29 : f32 to vector<8x128xf32>
    %40 = arith.maximumf %38, %39 : vector<8x128xf32>
    %41 = arith.truncf %40 : vector<8x128xf32> to vector<8x128xbf16>
    %c0_30 = arith.constant 0 : index
    %c0_31 = arith.constant 0 : index
    %42 = vector.load %arg12[%c0_30, %c0_31] : memref<128x64xbf16, #tpu.memory_space<vmem>>, vector<128x64xbf16>
    %cst_32 = arith.constant dense<0.000000e+00> : vector<8x64xf32>
    %43 = tpu.matmul %41, %42, %cst_32 {dimension_numbers = #tpu.dot_dimension_numbers<[1], [0], [0], [1], [0, 0, 1, 1], [], []>} : vector<8x128xbf16>, vector<128x64xbf16>, vector<8x64xf32> -> vector<8x64xf32>
    %c0_33 = arith.constant 0 : index
    %c0_34 = arith.constant 0 : index
    %44 = vector.load %arg13[%c0_33, %c0_34] : memref<1x64xf32, #tpu.memory_space<vmem>>, vector<1x64xf32>
    %45 = vector.broadcast %44 : vector<1x64xf32> to vector<8x64xf32>
    %46 = arith.addf %43, %45 : vector<8x64xf32>
    %cst_35 = arith.constant 0.000000e+00 : f32
    %47 = vector.broadcast %cst_35 : f32 to vector<8x64xf32>
    %48 = arith.maximumf %46, %47 : vector<8x64xf32>
    %49 = arith.truncf %48 : vector<8x64xf32> to vector<8x64xbf16>
    %c0_36 = arith.constant 0 : index
    %c0_37 = arith.constant 0 : index
    %50 = vector.load %arg14[%c0_36, %c0_37] : memref<64x128xbf16, #tpu.memory_space<vmem>>, vector<64x128xbf16>
    %cst_38 = arith.constant dense<0.000000e+00> : vector<8x128xf32>
    %51 = tpu.matmul %49, %50, %cst_38 {dimension_numbers = #tpu.dot_dimension_numbers<[1], [0], [0], [1], [0, 0, 1, 1], [], []>} : vector<8x64xbf16>, vector<64x128xbf16>, vector<8x128xf32> -> vector<8x128xf32>
    %c0_39 = arith.constant 0 : index
    %c0_40 = arith.constant 0 : index
    %52 = vector.load %arg15[%c0_39, %c0_40] : memref<1x128xf32, #tpu.memory_space<vmem>>, vector<1x128xf32>
    %53 = vector.broadcast %52 : vector<1x128xf32> to vector<8x128xf32>
    %54 = arith.addf %51, %53 : vector<8x128xf32>
    %c0_41 = arith.constant 0 : index
    %c0_42 = arith.constant 0 : index
    %55 = vector.load %arg16[%c0_41, %c0_42] : memref<8x128xf32, #tpu.memory_space<vmem>>, vector<8x128xf32>
    tpu.vector_store %arg16[%c0_41, %c0_42], %54 {strides = array<i32>} : memref<8x128xf32, #tpu.memory_space<vmem>>, vector<8x128xf32>,
    return
  }
  func.func @transform_0(%arg0: i32) -> (i32, i32) {
    %c0_i32 = arith.constant 0 : i32
    %c0_i32_0 = arith.constant 0 : i32
    return %arg0, %c0_i32 : i32, i32
  }
  func.func @transform_1(%arg0: i32) -> (i32, i32) {
    %c0_i32 = arith.constant 0 : i32
    %c0_i32_0 = arith.constant 0 : i32
    %c0_i32_1 = arith.constant 0 : i32
    return %c0_i32, %c0_i32_0 : i32, i32
  }
  func.func @transform_2(%arg0: i32) -> (i32, i32) {
    %c0_i32 = arith.constant 0 : i32
    %c0_i32_0 = arith.constant 0 : i32
    %c0_i32_1 = arith.constant 0 : i32
    return %c0_i32, %c0_i32_0 : i32, i32
  }
  func.func @transform_3(%arg0: i32) -> (i32, i32) {
    %c0_i32 = arith.constant 0 : i32
    %c0_i32_0 = arith.constant 0 : i32
    %c0_i32_1 = arith.constant 0 : i32
    return %c0_i32, %c0_i32_0 : i32, i32
  }
  func.func @transform_4(%arg0: i32) -> (i32, i32) {
    %c0_i32 = arith.constant 0 : i32
    %c0_i32_0 = arith.constant 0 : i32
    %c0_i32_1 = arith.constant 0 : i32
    return %c0_i32, %c0_i32_0 : i32, i32
  }
  func.func @transform_5(%arg0: i32) -> (i32, i32) {
    %c0_i32 = arith.constant 0 : i32
    %c0_i32_0 = arith.constant 0 : i32
    %c0_i32_1 = arith.constant 0 : i32
    return %c0_i32, %c0_i32_0 : i32, i32
  }
  func.func @transform_6(%arg0: i32) -> (i32, i32) {
    %c0_i32 = arith.constant 0 : i32
    %c0_i32_0 = arith.constant 0 : i32
    %c0_i32_1 = arith.constant 0 : i32
    return %c0_i32, %c0_i32_0 : i32, i32
  }
  func.func @transform_7(%arg0: i32) -> (i32, i32) {
    %c0_i32 = arith.constant 0 : i32
    %c0_i32_0 = arith.constant 0 : i32
    %c0_i32_1 = arith.constant 0 : i32
    return %c0_i32, %c0_i32_0 : i32, i32
  }
  func.func @transform_8(%arg0: i32) -> (i32, i32) {
    %c0_i32 = arith.constant 0 : i32
    %c0_i32_0 = arith.constant 0 : i32
    %c0_i32_1 = arith.constant 0 : i32
    return %c0_i32, %c0_i32_0 : i32, i32
  }
  func.func @transform_9(%arg0: i32) -> (i32, i32) {
    %c0_i32 = arith.constant 0 : i32
    %c0_i32_0 = arith.constant 0 : i32
    %c0_i32_1 = arith.constant 0 : i32
    return %c0_i32, %c0_i32_0 : i32, i32
  }
  func.func @transform_10(%arg0: i32) -> (i32, i32) {
    %c0_i32 = arith.constant 0 : i32
    %c0_i32_0 = arith.constant 0 : i32
    %c0_i32_1 = arith.constant 0 : i32
    return %c0_i32, %c0_i32_0 : i32, i32
  }
  func.func @transform_11(%arg0: i32) -> (i32, i32) {
    %c0_i32 = arith.constant 0 : i32
    %c0_i32_0 = arith.constant 0 : i32
    %c0_i32_1 = arith.constant 0 : i32
    return %c0_i32, %c0_i32_0 : i32, i32
  }
  func.func @transform_12(%arg0: i32) -> (i32, i32) {
    %c0_i32 = arith.constant 0 : i32
    %c0_i32_0 = arith.constant 0 : i32
    %c0_i32_1 = arith.constant 0 : i32
    return %c0_i32, %c0_i32_0 : i32, i32
  }
  func.func @transform_13(%arg0: i32) -> (i32, i32) {
    %c0_i32 = arith.constant 0 : i32
    %c0_i32_0 = arith.constant 0 : i32
    %c0_i32_1 = arith.constant 0 : i32
    return %c0_i32, %c0_i32_0 : i32, i32
  }
  func.func @transform_14(%arg0: i32) -> (i32, i32) {
    %c0_i32 = arith.constant 0 : i32
    %c0_i32_0 = arith.constant 0 : i32
    %c0_i32_1 = arith.constant 0 : i32
    return %c0_i32, %c0_i32_0 : i32, i32
  }
  func.func @transform_15(%arg0: i32) -> (i32, i32) {
    %c0_i32 = arith.constant 0 : i32
    %c0_i32_0 = arith.constant 0 : i32
    return %arg0, %c0_i32 : i32, i32
  }
}

</mosaic_0001>

<llo_original>
// kernel: _dqn_forward_impl.1
$region0: #{_dqn_forward_impl.1}
  #allocation0 [shape = 'u32[]', space=smem, size = 0x4, offset = 0x4, fixed_abs, tag = 'smem constant byte address 0x4 - core index']
  #allocation1 [shape = 'u32[144,128]{1,0:T(1,128)}', space=vmem, size = 0x12000, scoped, tag = 'internal scratch']
  %s0 = inlined_call_operand.vmem [shape: f32[8,128], index: 0, kind: input, shape index: {}]
  %s1 = inlined_call_operand.vmem [shape: bf16[128,512], index: 1, kind: input, shape index: {}]
  %s2 = inlined_call_operand.hbm [shape: f32[1,512], index: 2, kind: input, shape index: {}]
  %s3 = inlined_call_operand.hbm [shape: bf16[512,1024], index: 3, kind: input, shape index: {}]
  %s4 = inlined_call_operand.hbm [shape: f32[1,1024], index: 4, kind: input, shape index: {}]
  %s5 = inlined_call_operand.hbm [shape: bf16[1024,512], index: 5, kind: input, shape index: {}]
  %s6 = inlined_call_operand.hbm [shape: f32[1,512], index: 6, kind: input, shape index: {}]
  %s7 = inlined_call_operand.hbm [shape: bf16[512,256], index: 7, kind: input, shape index: {}]
  %s8 = inlined_call_operand.vmem [shape: f32[1,256], index: 8, kind: input, shape index: {}]
  %s9 = inlined_call_operand.hbm [shape: bf16[256,128], index: 9, kind: input, shape index: {}]
  %s10 = inlined_call_operand.vmem [shape: f32[1,128], index: 10, kind: input, shape index: {}]
  %s11 = inlined_call_operand.vmem [shape: bf16[128,64], index: 11, kind: input, shape index: {}]
  %s12 = inlined_call_operand.vmem [shape: f32[1,64], index: 12, kind: input, shape index: {}]
  %s13 = inlined_call_operand.vmem [shape: bf16[64,128], index: 13, kind: input, shape index: {}]
  %s14 = inlined_call_operand.vmem [shape: f32[1,128], index: 14, kind: input, shape index: {}]
  %s15 = inlined_call_operand.hbm [shape: f32[8,128], index: 15, kind: output, shape index: {}]
  %s16 = sld [smem:[#allocation0]]
  $region98: #{_dqn_forward_impl.1} parent=0
    _
  %s18 = ssub.s32 1, %s16
  %s19 = scalar_select 0, %s18, %s16
  $region1: #{_dqn_forward_impl.1} parent=0
    #allocation2 [shape = 'u8[2048]{0}', space=vmem, size = 0x800, scoped, tag = 'input window, operand 2, single buffered']
    #allocation3 [shape = 's32[1]{0}', space=sflag, size = 0x4, scoped, tag = 'scoped memory for _dqn_forward_impl.1']
    #allocation4 [shape = 's32[1]{0}', space=sflag, size = 0x4, scoped, tag = 'scoped memory for _dqn_forward_impl.1']
    #allocation5 [shape = 'u8[1048576]{0}', space=vmem, size = 0x100000, scoped, tag = 'input window, operand 3, single buffered']
    #allocation6 [shape = 's32[1]{0}', space=sflag, size = 0x4, scoped, tag = 'scoped memory for _dqn_forward_impl.1']
    #allocation7 [shape = 'u8[4096]{0}', space=vmem, size = 0x1000, scoped, tag = 'input window, operand 4, single buffered']
    #allocation8 [shape = 'u8[1048576]{0}', space=vmem, size = 0x100000, scoped, tag = 'input window, operand 5, single buffered']
    #allocation9 [shape = 's32[1]{0}', space=sflag, size = 0x4, scoped, tag = 'scoped memory for _dqn_forward_impl.1']
    #allocation10 [shape = 'u8[2048]{0}', space=vmem, size = 0x800, scoped, tag = 'input window, operand 6, single buffered']
    #allocation11 [shape = 'u8[262144]{0}', space=vmem, size = 0x40000, scoped, tag = 'input window, operand 7, single buffered']
    #allocation12 [shape = 's32[1]{0}', space=sflag, size = 0x4, scoped, tag = 'scoped memory for _dqn_forward_impl.1']
    #allocation13 [shape = 'u8[65536]{0}', space=vmem, size = 0x10000, scoped, tag = 'input window, operand 9, single buffered']
    #allocation14 [shape = 'u8[4096]{0}', space=vmem, size = 0x1000, scoped, tag = 'output window, operand 0, single buffered']
    %20 = vsyncpa [#allocation3], 0
    %21 = vsyncpa [#allocation6], 0
    %22 = vsyncpa [#allocation9], 0
    %23 = vsyncpa [#allocation12], 0
    %24 = vsyncpa [#allocation4], 0
    // Predicated region
    $region2: #{_dqn_forward_impl.1} parent=1 // pred_check
      _
    $region3: #{_dqn_forward_impl.1} parent=1 // pred_check_branch
      %26 = sbr.rel (0) target = $region5
    $region4: #{_dqn_forward_impl.1} parent=1 // pred_region
      _
    $region5: #{_dqn_forward_impl.1} parent=1 // pred_fallthru
      _
    // Predicated region
    $region6: #{_dqn_forward_impl.1} parent=1 // pred_check
      _
    $region7: #{_dqn_forward_impl.1} parent=1 // pred_check_branch
      %28 = sbr.rel (0) target = $region9
    $region8: #{_dqn_forward_impl.1} parent=1 // pred_region
      _
    $region9: #{_dqn_forward_impl.1} parent=1 // pred_fallthru
      _
    // Predicated region
    $region10: #{_dqn_forward_impl.1} parent=1 // pred_check
      _
    $region11: #{_dqn_forward_impl.1} parent=1 // pred_check_branch
      %30 = sbr.rel (0) target = $region13
    $region12: #{_dqn_forward_impl.1} parent=1 // pred_region
      %s32 = ssub.s32 64, 64
      %33 = vsyncadd [#allocation3], %s32
      %s35 = sshll.u32 [#allocation2], 4
      %s36 = int_to_ptr.vmem [resolvable:$true] %s35
      %38 = dma.hbm_to_vmem [thread:$0]  %s2, 64, %s36, [#allocation3]
    $region13: #{_dqn_forward_impl.1} parent=1 // pred_fallthru
      _
    // Predicated region
    $region14: #{_dqn_forward_impl.1} parent=1 // pred_check
      _
    $region15: #{_dqn_forward_impl.1} parent=1 // pred_check_branch
      %40 = sbr.rel (0) target = $region17
    $region16: #{_dqn_forward_impl.1} parent=1 // pred_region
      %s42 = ssub.s32 32768, 32768
      %43 = vsyncadd [#allocation6], %s42
      %s44 = sshll.u32 [#allocation5], 4
      %s45 = int_to_ptr.vmem [resolvable:$true] %s44
      %50 = dma.hbm_to_vmem [thread:$0]  %s3, 32768, %s45, [#allocation6], 512, 512, 32
    $region17: #{_dqn_forward_impl.1} parent=1 // pred_fallthru
      _
    // Predicated region
    $region18: #{_dqn_forward_impl.1} parent=1 // pred_check
      _
    $region19: #{_dqn_forward_impl.1} parent=1 // pred_check_branch
      %52 = sbr.rel (0) target = $region21
    $region20: #{_dqn_forward_impl.1} parent=1 // pred_region
      %s54 = ssub.s32 128, 128
      %55 = vsyncadd [#allocation6], %s54
      %s57 = sshll.u32 [#allocation7], 4
      %s58 = int_to_ptr.vmem [resolvable:$true] %s57
      %60 = dma.hbm_to_vmem [thread:$0]  %s4, 128, %s58, [#allocation6]
    $region21: #{_dqn_forward_impl.1} parent=1 // pred_fallthru
      _
    // Predicated region
    $region22: #{_dqn_forward_impl.1} parent=1 // pred_check
      _
    $region23: #{_dqn_forward_impl.1} parent=1 // pred_check_branch
      %62 = sbr.rel (0) target = $region25
    $region24: #{_dqn_forward_impl.1} parent=1 // pred_region
      %s64 = ssub.s32 32768, 32768
      %65 = vsyncadd [#allocation9], %s64
      %s66 = sshll.u32 [#allocation8], 4
      %s67 = int_to_ptr.vmem [resolvable:$true] %s66
      %72 = dma.hbm_to_vmem [thread:$0]  %s5, 32768, %s67, [#allocation9], 256, 256, 16
    $region25: #{_dqn_forward_impl.1} parent=1 // pred_fallthru
      _
    // Predicated region
    $region26: #{_dqn_forward_impl.1} parent=1 // pred_check
      _
    $region27: #{_dqn_forward_impl.1} parent=1 // pred_check_branch
      %74 = sbr.rel (0) target = $region29
    $region28: #{_dqn_forward_impl.1} parent=1 // pred_region
      %s76 = ssub.s32 64, 64
      %77 = vsyncadd [#allocation9], %s76
      %s79 = sshll.u32 [#allocation10], 4
      %s80 = int_to_ptr.vmem [resolvable:$true] %s79
      %82 = dma.hbm_to_vmem [thread:$0]  %s6, 64, %s80, [#allocation9]
    $region29: #{_dqn_forward_impl.1} parent=1 // pred_fallthru
      _
    // Predicated region
    $region30: #{_dqn_forward_impl.1} parent=1 // pred_check
      _
    $region31: #{_dqn_forward_impl.1} parent=1 // pred_check_branch
      %84 = sbr.rel (0) target = $region33
    $region32: #{_dqn_forward_impl.1} parent=1 // pred_region
      %s86 = ssub.s32 8192, 8192
      %87 = vsyncadd [#allocation12], %s86
      %s88 = sshll.u32 [#allocation11], 4
      %s89 = int_to_ptr.vmem [resolvable:$true] %s88
      %94 = dma.hbm_to_vmem [thread:$0]  %s7, 8192, %s89, [#allocation12], 128, 128, 8
    $region33: #{_dqn_forward_impl.1} parent=1 // pred_fallthru
      _
    // Predicated region
    $region34: #{_dqn_forward_impl.1} parent=1 // pred_check
      _
    $region35: #{_dqn_forward_impl.1} parent=1 // pred_check_branch
      %96 = sbr.rel (0) target = $region37
    $region36: #{_dqn_forward_impl.1} parent=1 // pred_region
      _
    $region37: #{_dqn_forward_impl.1} parent=1 // pred_fallthru
      _
    // Predicated region
    $region38: #{_dqn_forward_impl.1} parent=1 // pred_check
      _
    $region39: #{_dqn_forward_impl.1} parent=1 // pred_check_branch
      %98 = sbr.rel (0) target = $region41
    $region40: #{_dqn_forward_impl.1} parent=1 // pred_region
      %s100 = ssub.s32 2048, 2048
      %101 = vsyncadd [#allocation12], %s100
      %s102 = sshll.u32 [#allocation13], 4
      %s103 = int_to_ptr.vmem [resolvable:$true] %s102
      %108 = dma.hbm_to_vmem [thread:$0]  %s9, 2048, %s103, [#allocation12], 64, 64, 4
    $region41: #{_dqn_forward_impl.1} parent=1 // pred_fallthru
      _
    // Predicated region
    $region42: #{_dqn_forward_impl.1} parent=1 // pred_check
      _
    $region43: #{_dqn_forward_impl.1} parent=1 // pred_check_branch
      %110 = sbr.rel (0) target = $region45
    $region44: #{_dqn_forward_impl.1} parent=1 // pred_region
      _
    $region45: #{_dqn_forward_impl.1} parent=1 // pred_fallthru
      _
    // Predicated region
    $region46: #{_dqn_forward_impl.1} parent=1 // pred_check
      _
    $region47: #{_dqn_forward_impl.1} parent=1 // pred_check_branch
      %112 = sbr.rel (0) target = $region49
    $region48: #{_dqn_forward_impl.1} parent=1 // pred_region
      _
    $region49: #{_dqn_forward_impl.1} parent=1 // pred_fallthru
      _
    // Predicated region
    $region50: #{_dqn_forward_impl.1} parent=1 // pred_check
      _
    $region51: #{_dqn_forward_impl.1} parent=1 // pred_check_branch
      %114 = sbr.rel (0) target = $region53
    $region52: #{_dqn_forward_impl.1} parent=1 // pred_region
      _
    $region53: #{_dqn_forward_impl.1} parent=1 // pred_fallthru
      _
    // Predicated region
    $region54: #{_dqn_forward_impl.1} parent=1 // pred_check
      _
    $region55: #{_dqn_forward_impl.1} parent=1 // pred_check_branch
      %116 = sbr.rel (0) target = $region57
    $region56: #{_dqn_forward_impl.1} parent=1 // pred_region
      _
    $region57: #{_dqn_forward_impl.1} parent=1 // pred_fallthru
      _
    // Predicated region
    $region58: #{_dqn_forward_impl.1} parent=1 // pred_check
      _
    $region59: #{_dqn_forward_impl.1} parent=1 // pred_check_branch
      %118 = sbr.rel (0) target = $region61
    $region60: #{_dqn_forward_impl.1} parent=1 // pred_region
      _
    $region61: #{_dqn_forward_impl.1} parent=1 // pred_fallthru
      _
    // Predicated region
    $region62: #{_dqn_forward_impl.1} parent=1 // pred_check
      _
    $region63: #{_dqn_forward_impl.1} parent=1 // pred_check_branch
      %120 = sbr.rel (0) target = $region65
    $region64: #{_dqn_forward_impl.1} parent=1 // pred_region
      %121 = dma.done [#allocation3], 64
    $region65: #{_dqn_forward_impl.1} parent=1 // pred_fallthru
      _
    // Predicated region
    $region66: #{_dqn_forward_impl.1} parent=1 // pred_check
      _
    $region67: #{_dqn_forward_impl.1} parent=1 // pred_check_branch
      %123 = sbr.rel (0) target = $region69
    $region68: #{_dqn_forward_impl.1} parent=1 // pred_region
      %124 = dma.done [#allocation6], 32768
    $region69: #{_dqn_forward_impl.1} parent=1 // pred_fallthru
      _
    // Predicated region
    $region70: #{_dqn_forward_impl.1} parent=1 // pred_check
      _
    $region71: #{_dqn_forward_impl.1} parent=1 // pred_check_branch
      %126 = sbr.rel (0) target = $region73
    $region72: #{_dqn_forward_impl.1} parent=1 // pred_region
      %127 = dma.done [#allocation6], 128
    $region73: #{_dqn_forward_impl.1} parent=1 // pred_fallthru
      _
    // Predicated region
    $region74: #{_dqn_forward_impl.1} parent=1 // pred_check
      _
    $region75: #{_dqn_forward_impl.1} parent=1 // pred_check_branch
      %129 = sbr.rel (0) target = $region77
    $region76: #{_dqn_forward_impl.1} parent=1 // pred_region
      %130 = dma.done [#allocation9], 32768
    $region77: #{_dqn_forward_impl.1} parent=1 // pred_fallthru
      _
    // Predicated region
    $region78: #{_dqn_forward_impl.1} parent=1 // pred_check
      _
    $region79: #{_dqn_forward_impl.1} parent=1 // pred_check_branch
      %132 = sbr.rel (0) target = $region81
    $region80: #{_dqn_forward_impl.1} parent=1 // pred_region
      %133 = dma.done [#allocation9], 64
    $region81: #{_dqn_forward_impl.1} parent=1 // pred_fallthru
      _
    // Predicated region
    $region82: #{_dqn_forward_impl.1} parent=1 // pred_check
      _
    $region83: #{_dqn_forward_impl.1} parent=1 // pred_check_branch
      %135 = sbr.rel (0) target = $region85
    $region84: #{_dqn_forward_impl.1} parent=1 // pred_region
      %136 = dma.done [#allocation12], 8192
    $region85: #{_dqn_forward_impl.1} parent=1 // pred_fallthru
      _
    // Predicated region
    $region86: #{_dqn_forward_impl.1} parent=1 // pred_check
      _
    $region87: #{_dqn_forward_impl.1} parent=1 // pred_check_branch
      %138 = sbr.rel (0) target = $region89
    $region88: #{_dqn_forward_impl.1} parent=1 // pred_region
      %139 = dma.done [#allocation12], 2048
    $region89: #{_dqn_forward_impl.1} parent=1 // pred_fallthru
      _
    %v141 = vld [vmem:[%s0] sm:$0xff]
    %v142 = vpack.c.bf16 %v141, %v141
    %v143 = vld [vmem:[%s1] sm:$0xff]
    %v144 = vld [vmem:[%s1 + $0x8] sm:$0xff]
    %v145 = vld [vmem:[%s1 + $0x10] sm:$0xff]
    %v146 = vld [vmem:[%s1 + $0x18] sm:$0xff]
    %v147 = vld [vmem:[%s1 + $0x20] sm:$0xff]
    %v148 = vld [vmem:[%s1 + $0x28] sm:$0xff]
    %v149 = vld [vmem:[%s1 + $0x30] sm:$0xff]
    %v150 = vld [vmem:[%s1 + $0x38] sm:$0xff]
    %v151 = vld [vmem:[%s1 + $0x40] sm:$0xff]
    %v152 = vld [vmem:[%s1 + $0x48] sm:$0xff]
    %v153 = vld [vmem:[%s1 + $0x50] sm:$0xff]
    %v154 = vld [vmem:[%s1 + $0x58] sm:$0xff]
    %v155 = vld [vmem:[%s1 + $0x60] sm:$0xff]
    %v156 = vld [vmem:[%s1 + $0x68] sm:$0xff]
    %v157 = vld [vmem:[%s1 + $0x70] sm:$0xff]
    %v158 = vld [vmem:[%s1 + $0x78] sm:$0xff]
    %v159 = vld [vmem:[%s1 + $0x80] sm:$0xff]
    %v160 = vld [vmem:[%s1 + $0x88] sm:$0xff]
    %v161 = vld [vmem:[%s1 + $0x90] sm:$0xff]
    %v162 = vld [vmem:[%s1 + $0x98] sm:$0xff]
    %v163 = vld [vmem:[%s1 + $0xa0] sm:$0xff]
    %v164 = vld [vmem:[%s1 + $0xa8] sm:$0xff]
    %v165 = vld [vmem:[%s1 + $0xb0] sm:$0xff]
    %v166 = vld [vmem:[%s1 + $0xb8] sm:$0xff]
    %v167 = vld [vmem:[%s1 + $0xc0] sm:$0xff]
    %v168 = vld [vmem:[%s1 + $0xc8] sm:$0xff]
    %v169 = vld [vmem:[%s1 + $0xd0] sm:$0xff]
    %v170 = vld [vmem:[%s1 + $0xd8] sm:$0xff]
    %v171 = vld [vmem:[%s1 + $0xe0] sm:$0xff]
    %v172 = vld [vmem:[%s1 + $0xe8] sm:$0xff]
    %v173 = vld [vmem:[%s1 + $0xf0] sm:$0xff]
    %v174 = vld [vmem:[%s1 + $0xf8] sm:$0xff]
    %v175 = vld [vmem:[#allocation2] sm:$0xf]
    %v177 = vlaneseq
    %v178 = vshrl.u32 %v177, 7
    %v179 = vsub.s32 0, %v178
    %v180 = vrot.slane %v175, %v179
    %v181 = vlaneseq
    %v182 = vshrl.u32 %v181, 7
    %v183 = vsub.s32 1, %v182
    %v184 = vrot.slane %v175, %v183
    %v185 = vlaneseq
    %v186 = vshrl.u32 %v185, 7
    %v187 = vsub.s32 2, %v186
    %v188 = vrot.slane %v175, %v187
    %v189 = vlaneseq
    %v190 = vshrl.u32 %v189, 7
    %v191 = vsub.s32 3, %v190
    %v192 = vrot.slane %v175, %v191
    %v229 = vunpack.c.l.b16 %v143
    %v230 = vunpack.c.h.b16 %v143
    %v231 = vunpack.c.l.b16 %v144
    %v232 = vunpack.c.h.b16 %v144
    %v233 = vunpack.c.l.b16 %v145
    %v234 = vunpack.c.h.b16 %v145
    %v235 = vunpack.c.l.b16 %v146
    %v236 = vunpack.c.h.b16 %v146
    %v237 = vunpack.c.l.b16 %v147
    %v238 = vunpack.c.h.b16 %v147
    %v239 = vunpack.c.l.b16 %v148
    %v240 = vunpack.c.h.b16 %v148
    %v241 = vunpack.c.l.b16 %v149
    %v242 = vunpack.c.h.b16 %v149
    %v243 = vunpack.c.l.b16 %v150
    %v244 = vunpack.c.h.b16 %v150
    %v245 = vunpack.c.l.b16 %v151
    %v246 = vunpack.c.h.b16 %v151
    %v247 = vunpack.c.l.b16 %v152
    %v248 = vunpack.c.h.b16 %v152
    %v249 = vunpack.c.l.b16 %v153
    %v250 = vunpack.c.h.b16 %v153
    %v251 = vunpack.c.l.b16 %v154
    %v252 = vunpack.c.h.b16 %v154
    %v253 = vunpack.c.l.b16 %v155
    %v254 = vunpack.c.h.b16 %v155
    %v255 = vunpack.c.l.b16 %v156
    %v256 = vunpack.c.h.b16 %v156
    %v257 = vunpack.c.l.b16 %v157
    %v258 = vunpack.c.h.b16 %v157
    %v259 = vunpack.c.l.b16 %v158
    %v260 = vunpack.c.h.b16 %v158
    %v261 = vunpack.c.l.b16 %v159
    %v262 = vunpack.c.h.b16 %v159
    %v263 = vunpack.c.l.b16 %v160
    %v264 = vunpack.c.h.b16 %v160
    %v265 = vunpack.c.l.b16 %v161
    %v266 = vunpack.c.h.b16 %v161
    %v267 = vunpack.c.l.b16 %v162
    %v268 = vunpack.c.h.b16 %v162
    %v269 = vunpack.c.l.b16 %v163
    %v270 = vunpack.c.h.b16 %v163
    %v271 = vunpack.c.l.b16 %v164
    %v272 = vunpack.c.h.b16 %v164
    %v273 = vunpack.c.l.b16 %v165
    %v274 = vunpack.c.h.b16 %v165
    %v275 = vunpack.c.l.b16 %v166
    %v276 = vunpack.c.h.b16 %v166
    %v277 = vunpack.c.l.b16 %v167
    %v278 = vunpack.c.h.b16 %v167
    %v279 = vunpack.c.l.b16 %v168
    %v280 = vunpack.c.h.b16 %v168
    %v281 = vunpack.c.l.b16 %v169
    %v282 = vunpack.c.h.b16 %v169
    %v283 = vunpack.c.l.b16 %v170
    %v284 = vunpack.c.h.b16 %v170
    %v285 = vunpack.c.l.b16 %v171
    %v286 = vunpack.c.h.b16 %v171
    %v287 = vunpack.c.l.b16 %v172
    %v288 = vunpack.c.h.b16 %v172
    %v289 = vunpack.c.l.b16 %v173
    %v290 = vunpack.c.h.b16 %v173
    %v291 = vunpack.c.l.b16 %v174
    %v292 = vunpack.c.h.b16 %v174
    %v293 = vpack.c.b16 %v233, %v229
    %v294 = vpack.c.b16 %v234, %v230
    %v295 = vpack.c.b16 %v235, %v231
    %v296 = vpack.c.b16 %v236, %v232
    %v297 = vpack.c.b16 %v241, %v237
    %v298 = vpack.c.b16 %v242, %v238
    %v299 = vpack.c.b16 %v243, %v239
    %v300 = vpack.c.b16 %v244, %v240
    %v301 = vpack.c.b16 %v249, %v245
    %v302 = vpack.c.b16 %v250, %v246
    %v303 = vpack.c.b16 %v251, %v247
    %v304 = vpack.c.b16 %v252, %v248
    %v305 = vpack.c.b16 %v257, %v253
    %v306 = vpack.c.b16 %v258, %v254
    %v307 = vpack.c.b16 %v259, %v255
    %v308 = vpack.c.b16 %v260, %v256
    %v309 = vpack.c.b16 %v265, %v261
    %v310 = vpack.c.b16 %v266, %v262
    %v311 = vpack.c.b16 %v267, %v263
    %v312 = vpack.c.b16 %v268, %v264
    %v313 = vpack.c.b16 %v273, %v269
    %v314 = vpack.c.b16 %v274, %v270
    %v315 = vpack.c.b16 %v275, %v271
    %v316 = vpack.c.b16 %v276, %v272
    %v317 = vpack.c.b16 %v281, %v277
    %v318 = vpack.c.b16 %v282, %v278
    %v319 = vpack.c.b16 %v283, %v279
    %v320 = vpack.c.b16 %v284, %v280
    %v321 = vpack.c.b16 %v289, %v285
    %v322 = vpack.c.b16 %v290, %v286
    %v323 = vpack.c.b16 %v291, %v287
    %v324 = vpack.c.b16 %v292, %v288
    %357 = vmatprep.subr.bf16.mxu0 %v294
    %358 = vmatpush1.bf16.msra.mxu0 %v293
    %359 = vmatprep.subr.bf16.mxu0 %v298
    %360 = vmatpush1.bf16.msra.mxu0 %v297
    %361 = vmatprep.subr.bf16.mxu0 %v302
    %362 = vmatpush1.bf16.msra.mxu0 %v301
    %363 = vmatprep.subr.bf16.mxu0 %v306
    %364 = vmatpush1.bf16.msra.mxu0 %v305
    %365 = vmatprep.subr.bf16.mxu0 %v310
    %366 = vmatpush1.bf16.msra.mxu0 %v309
    %367 = vmatprep.subr.bf16.mxu0 %v314
    %368 = vmatpush1.bf16.msra.mxu0 %v313
    %369 = vmatprep.subr.bf16.mxu0 %v318
    %370 = vmatpush1.bf16.msra.mxu0 %v317
    %371 = vmatprep.subr.bf16.mxu0 %v322
    %372 = vmatpush1.bf16.msra.mxu0 %v321
    %373 = vmatprep.subr.bf16.mxu0 0
    %374 = vmatpush1.bf16.msra.mxu0 0
    %375 = vmatprep.subr.bf16.mxu0 0
    %376 = vmatpush1.bf16.msra.mxu0 0
    %377 = vmatprep.subr.bf16.mxu0 0
    %378 = vmatpush1.bf16.msra.mxu0 0
    %379 = vmatprep.subr.bf16.mxu0 0
    %380 = vmatpush1.bf16.msra.mxu0 0
    %381 = vmatprep.subr.bf16.mxu0 0
    %382 = vmatpush1.bf16.msra.mxu0 0
    %383 = vmatprep.subr.bf16.mxu0 0
    %384 = vmatpush1.bf16.msra.mxu0 0
    %385 = vmatprep.subr.bf16.mxu0 0
    %386 = vmatpush1.bf16.msra.mxu0 0
    %387 = vmatprep.subr.bf16.mxu0 0
    %388 = vmatpush1.bf16.msra.mxu0 0
    %389 = vmatprep.mubr.bf16.mxu0 0
    %390 = vmatmul.mubr.bf16.gmra.mrb[0].mxu0 %v142
    %v391 = vpop.f32.mrb[0].mxu0
    %v392 = vadd.f32 %v180, %v391
    %v393 = vpop.f32.mrb[0].mxu0
    %v394 = vadd.f32 %v184, %v393
    %v395 = vpop.f32.mrb[0].mxu0
    %v396 = vpop.f32.mrb[0].mxu0
    %397 = vdwg.mxu0
    %398 = vmatprep.subr.bf16.mxu0 %v296
    %399 = vmatpush1.bf16.msra.mxu0 %v295
    %400 = vmatprep.subr.bf16.mxu0 %v300
    %401 = vmatpush1.bf16.msra.mxu0 %v299
    %402 = vmatprep.subr.bf16.mxu0 %v304
    %403 = vmatpush1.bf16.msra.mxu0 %v303
    %404 = vmatprep.subr.bf16.mxu0 %v308
    %405 = vmatpush1.bf16.msra.mxu0 %v307
    %406 = vmatprep.subr.bf16.mxu0 %v312
    %407 = vmatpush1.bf16.msra.mxu0 %v311
    %408 = vmatprep.subr.bf16.mxu0 %v316
    %409 = vmatpush1.bf16.msra.mxu0 %v315
    %410 = vmatprep.subr.bf16.mxu0 %v320
    %411 = vmatpush1.bf16.msra.mxu0 %v319
    %412 = vmatprep.subr.bf16.mxu0 %v324
    %413 = vmatpush1.bf16.msra.mxu0 %v323
    %414 = vmatprep.subr.bf16.mxu0 0
    %415 = vmatpush1.bf16.msra.mxu0 0
    %416 = vmatprep.subr.bf16.mxu0 0
    %417 = vmatpush1.bf16.msra.mxu0 0
    %418 = vmatprep.subr.bf16.mxu0 0
    %419 = vmatpush1.bf16.msra.mxu0 0
    %420 = vmatprep.subr.bf16.mxu0 0
    %421 = vmatpush1.bf16.msra.mxu0 0
    %422 = vmatprep.subr.bf16.mxu0 0
    %423 = vmatpush1.bf16.msra.mxu0 0
    %424 = vmatprep.subr.bf16.mxu0 0
    %425 = vmatpush1.bf16.msra.mxu0 0
    %426 = vmatprep.subr.bf16.mxu0 0
    %427 = vmatpush1.bf16.msra.mxu0 0
    %428 = vmatprep.subr.bf16.mxu0 0
    %429 = vmatpush1.bf16.msra.mxu0 0
    %430 = vmatprep.mubr.bf16.mxu0 0
    %431 = vmatmul.mubr.bf16.gmra.mrb[0].mxu0 %v142
    %v432 = vpop.f32.mrb[0].mxu0
    %v433 = vadd.f32 %v188, %v432
    %v434 = vpop.f32.mrb[0].mxu0
    %v435 = vadd.f32 %v192, %v434
    %v436 = vpop.f32.mrb[0].mxu0
    %v437 = vpop.f32.mrb[0].mxu0
    %438 = vdwg.mxu0
    %v439 = vmax.f32 %v392, 0.0
    %v440 = vmax.f32 %v394, 0.0
    %v441 = vmax.f32 %v433, 0.0
    %v442 = vmax.f32 %v435, 0.0
    %v443 = vpack.c.bf16 %v439, %v439
    %v444 = vpack.c.bf16 %v440, %v440
    %v445 = vpack.c.bf16 %v441, %v441
    %v446 = vpack.c.bf16 %v442, %v442
    %v447 = vld [vmem:[#allocation5] sm:$0xff]
    %v448 = vld [vmem:[#allocation5 + $0x8] sm:$0xff]
    %v449 = vld [vmem:[#allocation5 + $0x10] sm:$0xff]
    %v450 = vld [vmem:[#allocation5 + $0x18] sm:$0xff]
    %v451 = vld [vmem:[#allocation5 + $0x20] sm:$0xff]
    %v452 = vld [vmem:[#allocation5 + $0x28] sm:$0xff]
    %v453 = vld [vmem:[#allocation5 + $0x30] sm:$0xff]
    %v454 = vld [vmem:[#allocation5 + $0x38] sm:$0xff]
    %v455 = vld [vmem:[#allocation5 + $0x40] sm:$0xff]
    %v456 = vld [vmem:[#allocation5 + $0x48] sm:$0xff]
    %v457 = vld [vmem:[#allocation5 + $0x50] sm:$0xff]
    %v458 = vld [vmem:[#allocation5 + $0x58] sm:$0xff]
    %v459 = vld [vmem:[#allocation5 + $0x60] sm:$0xff]
    %v460 = vld [vmem:[#allocation5 + $0x68] sm:$0xff]
    %v461 = vld [vmem:[#allocation5 + $0x70] sm:$0xff]
    %v462 = vld [vmem:[#allocation5 + $0x78] sm:$0xff]
    %v463 = vld [vmem:[#allocation5 + $0x80] sm:$0xff]
    %v464 = vld [vmem:[#allocation5 + $0x88] sm:$0xff]
    %v465 = vld [vmem:[#allocation5 + $0x90] sm:$0xff]
    %v466 = vld [vmem:[#allocation5 + $0x98] sm:$0xff]
    %v467 = vld [vmem:[#allocation5 + $0xa0] sm:$0xff]
    %v468 = vld [vmem:[#allocation5 + $0xa8] sm:$0xff]
    %v469 = vld [vmem:[#allocation5 + $0xb0] sm:$0xff]
    %v470 = vld [vmem:[#allocation5 + $0xb8] sm:$0xff]
    %v471 = vld [vmem:[#allocation5 + $0xc0] sm:$0xff]
    %v472 = vld [vmem:[#allocation5 + $0xc8] sm:$0xff]
    %v473 = vld [vmem:[#allocation5 + $0xd0] sm:$0xff]
    %v474 = vld [vmem:[#allocation5 + $0xd8] sm:$0xff]
    %v475 = vld [vmem:[#allocation5 + $0xe0] sm:$0xff]
    %v476 = vld [vmem:[#allocation5 + $0xe8] sm:$0xff]
    %v477 = vld [vmem:[#allocation5 + $0xf0] sm:$0xff]
    %v478 = vld [vmem:[#allocation5 + $0xf8] sm:$0xff]
    %v479 = vld [vmem:[#allocation5 + $0x100] sm:$0xff]
    %v480 = vld [vmem:[#allocation5 + $0x108] sm:$0xff]
    %v481 = vld [vmem:[#allocation5 + $0x110] sm:$0xff]
    %v482 = vld [vmem:[#allocation5 + $0x118] sm:$0xff]
    %v483 = vld [vmem:[#allocation5 + $0x120] sm:$0xff]
    %v484 = vld [vmem:[#allocation5 + $0x128] sm:$0xff]
    %v485 = vld [vmem:[#allocation5 + $0x130] sm:$0xff]
    %v486 = vld [vmem:[#allocation5 + $0x138] sm:$0xff]
    %v487 = vld [vmem:[#allocation5 + $0x140] sm:$0xff]
    %v488 = vld [vmem:[#allocation5 + $0x148] sm:$0xff]
    %v489 = vld [vmem:[#allocation5 + $0x150] sm:$0xff]
    %v490 = vld [vmem:[#allocation5 + $0x158] sm:$0xff]
    %v491 = vld [vmem:[#allocation5 + $0x160] sm:$0xff]
    %v492 = vld [vmem:[#allocation5 + $0x168] sm:$0xff]
    %v493 = vld [vmem:[#allocation5 + $0x170] sm:$0xff]
    %v494 = vld [vmem:[#allocation5 + $0x178] sm:$0xff]
    %v495 = vld [vmem:[#allocation5 + $0x180] sm:$0xff]
    %v496 = vld [vmem:[#allocation5 + $0x188] sm:$0xff]
    %v497 = vld [vmem:[#allocation5 + $0x190] sm:$0xff]
    %v498 = vld [vmem:[#allocation5 + $0x198] sm:$0xff]
    %v499 = vld [vmem:[#allocation5 + $0x1a0] sm:$0xff]
    %v500 = vld [vmem:[#allocation5 + $0x1a8] sm:$0xff]
    %v501 = vld [vmem:[#allocation5 + $0x1b0] sm:$0xff]
    %v502 = vld [vmem:[#allocation5 + $0x1b8] sm:$0xff]
    %v503 = vld [vmem:[#allocation5 + $0x1c0] sm:$0xff]
    %v504 = vld [vmem:[#allocation5 + $0x1c8] sm:$0xff]
    %v505 = vld [vmem:[#allocation5 + $0x1d0] sm:$0xff]
    %v506 = vld [vmem:[#allocation5 + $0x1d8] sm:$0xff]
    %v507 = vld [vmem:[#allocation5 + $0x1e0] sm:$0xff]
    %v508 = vld [vmem:[#allocation5 + $0x1e8] sm:$0xff]
    %v509 = vld [vmem:[#allocation5 + $0x1f0] sm:$0xff]
    %v510 = vld [vmem:[#allocation5 + $0x1f8] sm:$0xff]
    %v511 = vld [vmem:[#allocation5 + $0x200] sm:$0xff]
    %v512 = vld [vmem:[#allocation5 + $0x208] sm:$0xff]
    %v513 = vld [vmem:[#allocation5 + $0x210] sm:$0xff]
    %v514 = vld [vmem:[#allocation5 + $0x218] sm:$0xff]
    %v515 = vld [vmem:[#allocation5 + $0x220] sm:$0xff]
    %v516 = vld [vmem:[#allocation5 + $0x228] sm:$0xff]
    %v517 = vld [vmem:[#allocation5 + $0x230] sm:$0xff]
    %v518 = vld [vmem:[#allocation5 + $0x238] sm:$0xff]
    %v519 = vld [vmem:[#allocation5 + $0x240] sm:$0xff]
    %v520 = vld [vmem:[#allocation5 + $0x248] sm:$0xff]
    %v521 = vld [vmem:[#allocation5 + $0x250] sm:$0xff]
    %v522 = vld [vmem:[#allocation5 + $0x258] sm:$0xff]
    %v523 = vld [vmem:[#allocation5 + $0x260] sm:$0xff]
    %v524 = vld [vmem:[#allocation5 + $0x268] sm:$0xff]
    %v525 = vld [vmem:[#allocation5 + $0x270] sm:$0xff]
    %v526 = vld [vmem:[#allocation5 + $0x278] sm:$0xff]
    %v527 = vld [vmem:[#allocation5 + $0x280] sm:$0xff]
    %v528 = vld [vmem:[#allocation5 + $0x288] sm:$0xff]
    %v529 = vld [vmem:[#allocation5 + $0x290] sm:$0xff]
    %v530 = vld [vmem:[#allocation5 + $0x298] sm:$0xff]
    %v531 = vld [vmem:[#allocation5 + $0x2a0] sm:$0xff]
    %v532 = vld [vmem:[#allocation5 + $0x2a8] sm:$0xff]
    %v533 = vld [vmem:[#allocation5 + $0x2b0] sm:$0xff]
    %v534 = vld [vmem:[#allocation5 + $0x2b8] sm:$0xff]
    %v535 = vld [vmem:[#allocation5 + $0x2c0] sm:$0xff]
    %v536 = vld [vmem:[#allocation5 + $0x2c8] sm:$0xff]
    %v537 = vld [vmem:[#allocation5 + $0x2d0] sm:$0xff]
    %v538 = vld [vmem:[#allocation5 + $0x2d8] sm:$0xff]
    %v539 = vld [vmem:[#allocation5 + $0x2e0] sm:$0xff]
    %v540 = vld [vmem:[#allocation5 + $0x2e8] sm:$0xff]
    %v541 = vld [vmem:[#allocation5 + $0x2f0] sm:$0xff]
    %v542 = vld [vmem:[#allocation5 + $0x2f8] sm:$0xff]
    %v543 = vld [vmem:[#allocation5 + $0x300] sm:$0xff]
    %v544 = vld [vmem:[#allocation5 + $0x308] sm:$0xff]
    %v545 = vld [vmem:[#allocation5 + $0x310] sm:$0xff]
    %v546 = vld [vmem:[#allocation5 + $0x318] sm:$0xff]
    %v547 = vld [vmem:[#allocation5 + $0x320] sm:$0xff]
    %v548 = vld [vmem:[#allocation5 + $0x328] sm:$0xff]
    %v549 = vld [vmem:[#allocation5 + $0x330] sm:$0xff]
    %v550 = vld [vmem:[#allocation5 + $0x338] sm:$0xff]
    %v551 = vld [vmem:[#allocation5 + $0x340] sm:$0xff]
    %v552 = vld [vmem:[#allocation5 + $0x348] sm:$0xff]
    %v553 = vld [vmem:[#allocation5 + $0x350] sm:$0xff]
    %v554 = vld [vmem:[#allocation5 + $0x358] sm:$0xff]
    %v555 = vld [vmem:[#allocation5 + $0x360] sm:$0xff]
    %v556 = vld [vmem:[#allocation5 + $0x368] sm:$0xff]
    %v557 = vld [vmem:[#allocation5 + $0x370] sm:$0xff]
    %v558 = vld [vmem:[#allocation5 + $0x378] sm:$0xff]
    %v559 = vld [vmem:[#allocation5 + $0x380] sm:$0xff]
    %v560 = vld [vmem:[#allocation5 + $0x388] sm:$0xff]
    %v561 = vld [vmem:[#allocation5 + $0x390] sm:$0xff]
    %v562 = vld [vmem:[#allocation5 + $0x398] sm:$0xff]
    %v563 = vld [vmem:[#allocation5 + $0x3a0] sm:$0xff]
    %v564 = vld [vmem:[#allocation5 + $0x3a8] sm:$0xff]
    %v565 = vld [vmem:[#allocation5 + $0x3b0] sm:$0xff]
    %v566 = vld [vmem:[#allocation5 + $0x3b8] sm:$0xff]
    %v567 = vld [vmem:[#allocation5 + $0x3c0] sm:$0xff]
    %v568 = vld [vmem:[#allocation5 + $0x3c8] sm:$0xff]
    %v569 = vld [vmem:[#allocation5 + $0x3d0] sm:$0xff]
    %v570 = vld [vmem:[#allocation5 + $0x3d8] sm:$0xff]
    %v571 = vld [vmem:[#allocation5 + $0x3e0] sm:$0xff]
    %v572 = vld [vmem:[#allocation5 + $0x3e8] sm:$0xff]
    %v573 = vld [vmem:[#allocation5 + $0x3f0] sm:$0xff]
    %v574 = vld [vmem:[#allocation5 + $0x3f8] sm:$0xff]
    %v575 = vld [vmem:[#allocation5 + $0x400] sm:$0xff]
    %v576 = vld [vmem:[#allocation5 + $0x408] sm:$0xff]
    %v577 = vld [vmem:[#allocation5 + $0x410] sm:$0xff]
    %v578 = vld [vmem:[#allocation5 + $0x418] sm:$0xff]
    %v579 = vld [vmem:[#allocation5 + $0x420] sm:$0xff]
    %v580 = vld [vmem:[#allocation5 + $0x428] sm:$0xff]
    %v581 = vld [vmem:[#allocation5 + $0x430] sm:$0xff]
    %v582 = vld [vmem:[#allocation5 + $0x438] sm:$0xff]
    %v583 = vld [vmem:[#allocation5 + $0x440] sm:$0xff]
    %v584 = vld [vmem:[#allocation5 + $0x448] sm:$0xff]
    %v585 = vld [vmem:[#allocation5 + $0x450] sm:$0xff]
    %v586 = vld [vmem:[#allocation5 + $0x458] sm:$0xff]
    %v587 = vld [vmem:[#allocation5 + $0x460] sm:$0xff]
    %v588 = vld [vmem:[#allocation5 + $0x468] sm:$0xff]
    %v589 = vld [vmem:[#allocation5 + $0x470] sm:$0xff]
    %v590 = vld [vmem:[#allocation5 + $0x478] sm:$0xff]
    %v591 = vld [vmem:[#allocation5 + $0x480] sm:$0xff]
    %v592 = vld [vmem:[#allocation5 + $0x488] sm:$0xff]
    %v593 = vld [vmem:[#allocation5 + $0x490] sm:$0xff]
    %v594 = vld [vmem:[#allocation5 + $0x498] sm:$0xff]
    %v595 = vld [vmem:[#allocation5 + $0x4a0] sm:$0xff]
    %v596 = vld [vmem:[#allocation5 + $0x4a8] sm:$0xff]
    %v597 = vld [vmem:[#allocation5 + $0x4b0] sm:$0xff]
    %v598 = vld [vmem:[#allocation5 + $0x4b8] sm:$0xff]
    %v599 = vld [vmem:[#allocation5 + $0x4c0] sm:$0xff]
    %v600 = vld [vmem:[#allocation5 + $0x4c8] sm:$0xff]
    %v601 = vld [vmem:[#allocation5 + $0x4d0] sm:$0xff]
    %v602 = vld [vmem:[#allocation5 + $0x4d8] sm:$0xff]
    %v603 = vld [vmem:[#allocation5 + $0x4e0] sm:$0xff]
    %v604 = vld [vmem:[#allocation5 + $0x4e8] sm:$0xff]
    %v605 = vld [vmem:[#allocation5 + $0x4f0] sm:$0xff]
    %v606 = vld [vmem:[#allocation5 + $0x4f8] sm:$0xff]
    %v607 = vld [vmem:[#allocation5 + $0x500] sm:$0xff]
    %v608 = vld [vmem:[#allocation5 + $0x508] sm:$0xff]
    %v609 = vld [vmem:[#allocation5 + $0x510] sm:$0xff]
    %v610 = vld [vmem:[#allocation5 + $0x518] sm:$0xff]
    %v611 = vld [vmem:[#allocation5 + $0x520] sm:$0xff]
    %v612 = vld [vmem:[#allocation5 + $0x528] sm:$0xff]
    %v613 = vld [vmem:[#allocation5 + $0x530] sm:$0xff]
    %v614 = vld [vmem:[#allocation5 + $0x538] sm:$0xff]
    %v615 = vld [vmem:[#allocation5 + $0x540] sm:$0xff]
    %v616 = vld [vmem:[#allocation5 + $0x548] sm:$0xff]
    %v617 = vld [vmem:[#allocation5 + $0x550] sm:$0xff]
    %v618 = vld [vmem:[#allocation5 + $0x558] sm:$0xff]
    %v619 = vld [vmem:[#allocation5 + $0x560] sm:$0xff]
    %v620 = vld [vmem:[#allocation5 + $0x568] sm:$0xff]
    %v621 = vld [vmem:[#allocation5 + $0x570] sm:$0xff]
    %v622 = vld [vmem:[#allocation5 + $0x578] sm:$0xff]
    %v623 = vld [vmem:[#allocation5 + $0x580] sm:$0xff]
    %v624 = vld [vmem:[#allocation5 + $0x588] sm:$0xff]
    %v625 = vld [vmem:[#allocation5 + $0x590] sm:$0xff]
    %v626 = vld [vmem:[#allocation5 + $0x598] sm:$0xff]
    %v627 = vld [vmem:[#allocation5 + $0x5a0] sm:$0xff]
    %v628 = vld [vmem:[#allocation5 + $0x5a8] sm:$0xff]
    %v629 = vld [vmem:[#allocation5 + $0x5b0] sm:$0xff]
    %v630 = vld [vmem:[#allocation5 + $0x5b8] sm:$0xff]
    %v631 = vld [vmem:[#allocation5 + $0x5c0] sm:$0xff]
    %v632 = vld [vmem:[#allocation5 + $0x5c8] sm:$0xff]
    %v633 = vld [vmem:[#allocation5 + $0x5d0] sm:$0xff]
    %v634 = vld [vmem:[#allocation5 + $0x5d8] sm:$0xff]
    %v635 = vld [vmem:[#allocation5 + $0x5e0] sm:$0xff]
    %v636 = vld [vmem:[#allocation5 + $0x5e8] sm:$0xff]
    %v637 = vld [vmem:[#allocation5 + $0x5f0] sm:$0xff]
    %v638 = vld [vmem:[#allocation5 + $0x5f8] sm:$0xff]
    %v639 = vld [vmem:[#allocation5 + $0x600] sm:$0xff]
    %v640 = vld [vmem:[#allocation5 + $0x608] sm:$0xff]
    %v641 = vld [vmem:[#allocation5 + $0x610] sm:$0xff]
    %v642 = vld [vmem:[#allocation5 + $0x618] sm:$0xff]
    %v643 = vld [vmem:[#allocation5 + $0x620] sm:$0xff]
    %v644 = vld [vmem:[#allocation5 + $0x628] sm:$0xff]
    %v645 = vld [vmem:[#allocation5 + $0x630] sm:$0xff]
    %v646 = vld [vmem:[#allocation5 + $0x638] sm:$0xff]
    %v647 = vld [vmem:[#allocation5 + $0x640] sm:$0xff]
    %v648 = vld [vmem:[#allocation5 + $0x648] sm:$0xff]
    %v649 = vld [vmem:[#allocation5 + $0x650] sm:$0xff]
    %v650 = vld [vmem:[#allocation5 + $0x658] sm:$0xff]
    %v651 = vld [vmem:[#allocation5 + $0x660] sm:$0xff]
    %v652 = vld [vmem:[#allocation5 + $0x668] sm:$0xff]
    %v653 = vld [vmem:[#allocation5 + $0x670] sm:$0xff]
    %v654 = vld [vmem:[#allocation5 + $0x678] sm:$0xff]
    %v655 = vld [vmem:[#allocation5 + $0x680] sm:$0xff]
    %v656 = vld [vmem:[#allocation5 + $0x688] sm:$0xff]
    %v657 = vld [vmem:[#allocation5 + $0x690] sm:$0xff]
    %v658 = vld [vmem:[#allocation5 + $0x698] sm:$0xff]
    %v659 = vld [vmem:[#allocation5 + $0x6a0] sm:$0xff]
    %v660 = vld [vmem:[#allocation5 + $0x6a8] sm:$0xff]
    %v661 = vld [vmem:[#allocation5 + $0x6b0] sm:$0xff]
    %v662 = vld [vmem:[#allocation5 + $0x6b8] sm:$0xff]
    %v663 = vld [vmem:[#allocation5 + $0x6c0] sm:$0xff]
    %v664 = vld [vmem:[#allocation5 + $0x6c8] sm:$0xff]
    %v665 = vld [vmem:[#allocation5 + $0x6d0] sm:$0xff]
    %v666 = vld [vmem:[#allocation5 + $0x6d8] sm:$0xff]
    %v667 = vld [vmem:[#allocation5 + $0x6e0] sm:$0xff]
    %v668 = vld [vmem:[#allocation5 + $0x6e8] sm:$0xff]
    %v669 = vld [vmem:[#allocation5 + $0x6f0] sm:$0xff]
    %v670 = vld [vmem:[#allocation5 + $0x6f8] sm:$0xff]
    %v671 = vld [vmem:[#allocation5 + $0x700] sm:$0xff]
    %v672 = vld [vmem:[#allocation5 + $0x708] sm:$0xff]
    %v673 = vld [vmem:[#allocation5 + $0x710] sm:$0xff]
    %v674 = vld [vmem:[#allocation5 + $0x718] sm:$0xff]
    %v675 = vld [vmem:[#allocation5 + $0x720] sm:$0xff]
    %v676 = vld [vmem:[#allocation5 + $0x728] sm:$0xff]
    %v677 = vld [vmem:[#allocation5 + $0x730] sm:$0xff]
    %v678 = vld [vmem:[#allocation5 + $0x738] sm:$0xff]
    %v679 = vld [vmem:[#allocation5 + $0x740] sm:$0xff]
    %v680 = vld [vmem:[#allocation5 + $0x748] sm:$0xff]
    %v681 = vld [vmem:[#allocation5 + $0x750] sm:$0xff]
    %v682 = vld [vmem:[#allocation5 + $0x758] sm:$0xff]
    %v683 = vld [vmem:[#allocation5 + $0x760] sm:$0xff]
    %v684 = vld [vmem:[#allocation5 + $0x768] sm:$0xff]
    %v685 = vld [vmem:[#allocation5 + $0x770] sm:$0xff]
    %v686 = vld [vmem:[#allocation5 + $0x778] sm:$0xff]
    %v687 = vld [vmem:[#allocation5 + $0x780] sm:$0xff]
    %v688 = vld [vmem:[#allocation5 + $0x788] sm:$0xff]
    %v689 = vld [vmem:[#allocation5 + $0x790] sm:$0xff]
    %v690 = vld [vmem:[#allocation5 + $0x798] sm:$0xff]
    %v691 = vld [vmem:[#allocation5 + $0x7a0] sm:$0xff]
    %v692 = vld [vmem:[#allocation5 + $0x7a8] sm:$0xff]
    %v693 = vld [vmem:[#allocation5 + $0x7b0] sm:$0xff]
    %v694 = vld [vmem:[#allocation5 + $0x7b8] sm:$0xff]
    %v695 = vld [vmem:[#allocation5 + $0x7c0] sm:$0xff]
    %v696 = vld [vmem:[#allocation5 + $0x7c8] sm:$0xff]
    %v697 = vld [vmem:[#allocation5 + $0x7d0] sm:$0xff]
    %v698 = vld [vmem:[#allocation5 + $0x7d8] sm:$0xff]
    %v699 = vld [vmem:[#allocation5 + $0x7e0] sm:$0xff]
    %v700 = vld [vmem:[#allocation5 + $0x7e8] sm:$0xff]
    %v701 = vld [vmem:[#allocation5 + $0x7f0] sm:$0xff]
    %v702 = vld [vmem:[#allocation5 + $0x7f8] sm:$0xff]
    %v703 = vld [vmem:[#allocation7] sm:$0xff]
    %v705 = vlaneseq
    %v706 = vshrl.u32 %v705, 7
    %v707 = vsub.s32 0, %v706
    %v708 = vrot.slane %v703, %v707
    %v709 = vlaneseq
    %v710 = vshrl.u32 %v709, 7
    %v711 = vsub.s32 1, %v710
    %v712 = vrot.slane %v703, %v711
    %v713 = vlaneseq
    %v714 = vshrl.u32 %v713, 7
    %v715 = vsub.s32 2, %v714
    %v716 = vrot.slane %v703, %v715
    %v717 = vlaneseq
    %v718 = vshrl.u32 %v717, 7
    %v719 = vsub.s32 3, %v718
    %v720 = vrot.slane %v703, %v719
    %v721 = vlaneseq
    %v722 = vshrl.u32 %v721, 7
    %v723 = vsub.s32 4, %v722
    %v724 = vrot.slane %v703, %v723
    %v725 = vlaneseq
    %v726 = vshrl.u32 %v725, 7
    %v727 = vsub.s32 5, %v726
    %v728 = vrot.slane %v703, %v727
    %v729 = vlaneseq
    %v730 = vshrl.u32 %v729, 7
    %v731 = vsub.s32 6, %v730
    %v732 = vrot.slane %v703, %v731
    %v733 = vlaneseq
    %v734 = vshrl.u32 %v733, 7
    %v735 = vsub.s32 7, %v734
    %v736 = vrot.slane %v703, %v735
    %v1001 = vunpack.c.l.b16 %v447
    %v1002 = vunpack.c.h.b16 %v447
    %v1003 = vunpack.c.l.b16 %v448
    %v1004 = vunpack.c.h.b16 %v448
    %v1005 = vunpack.c.l.b16 %v449
    %v1006 = vunpack.c.h.b16 %v449
    %v1007 = vunpack.c.l.b16 %v450
    %v1008 = vunpack.c.h.b16 %v450
    %v1009 = vunpack.c.l.b16 %v451
    %v1010 = vunpack.c.h.b16 %v451
    %v1011 = vunpack.c.l.b16 %v452
    %v1012 = vunpack.c.h.b16 %v452
    %v1013 = vunpack.c.l.b16 %v453
    %v1014 = vunpack.c.h.b16 %v453
    %v1015 = vunpack.c.l.b16 %v454
    %v1016 = vunpack.c.h.b16 %v454
    %v1017 = vunpack.c.l.b16 %v455
    %v1018 = vunpack.c.h.b16 %v455
    %v1019 = vunpack.c.l.b16 %v456
    %v1020 = vunpack.c.h.b16 %v456
    %v1021 = vunpack.c.l.b16 %v457
    %v1022 = vunpack.c.h.b16 %v457
    %v1023 = vunpack.c.l.b16 %v458
    %v1024 = vunpack.c.h.b16 %v458
    %v1025 = vunpack.c.l.b16 %v459
    %v1026 = vunpack.c.h.b16 %v459
    %v1027 = vunpack.c.l.b16 %v460
    %v1028 = vunpack.c.h.b16 %v460
    %v1029 = vunpack.c.l.b16 %v461
    %v1030 = vunpack.c.h.b16 %v461
    %v1031 = vunpack.c.l.b16 %v462
    %v1032 = vunpack.c.h.b16 %v462
    %v1033 = vunpack.c.l.b16 %v463
    %v1034 = vunpack.c.h.b16 %v463
    %v1035 = vunpack.c.l.b16 %v464
    %v1036 = vunpack.c.h.b16 %v464
    %v1037 = vunpack.c.l.b16 %v465
    %v1038 = vunpack.c.h.b16 %v465
    %v1039 = vunpack.c.l.b16 %v466
    %v1040 = vunpack.c.h.b16 %v466
    %v1041 = vunpack.c.l.b16 %v467
    %v1042 = vunpack.c.h.b16 %v467
    %v1043 = vunpack.c.l.b16 %v468
    %v1044 = vunpack.c.h.b16 %v468
    %v1045 = vunpack.c.l.b16 %v469
    %v1046 = vunpack.c.h.b16 %v469
    %v1047 = vunpack.c.l.b16 %v470
    %v1048 = vunpack.c.h.b16 %v470
    %v1049 = vunpack.c.l.b16 %v471
    %v1050 = vunpack.c.h.b16 %v471
    %v1051 = vunpack.c.l.b16 %v472
    %v1052 = vunpack.c.h.b16 %v472
    %v1053 = vunpack.c.l.b16 %v473
    %v1054 = vunpack.c.h.b16 %v473
    %v1055 = vunpack.c.l.b16 %v474
    %v1056 = vunpack.c.h.b16 %v474
    %v1057 = vunpack.c.l.b16 %v475
    %v1058 = vunpack.c.h.b16 %v475
    %v1059 = vunpack.c.l.b16 %v476
    %v1060 = vunpack.c.h.b16 %v476
    %v1061 = vunpack.c.l.b16 %v477
    %v1062 = vunpack.c.h.b16 %v477
    %v1063 = vunpack.c.l.b16 %v478
    %v1064 = vunpack.c.h.b16 %v478
    %v1065 = vunpack.c.l.b16 %v479
    %v1066 = vunpack.c.h.b16 %v479
    %v1067 = vunpack.c.l.b16 %v480
    %v1068 = vunpack.c.h.b16 %v480
    %v1069 = vunpack.c.l.b16 %v481
    %v1070 = vunpack.c.h.b16 %v481
    %v1071 = vunpack.c.l.b16 %v482
    %v1072 = vunpack.c.h.b16 %v482
    %v1073 = vunpack.c.l.b16 %v483
    %v1074 = vunpack.c.h.b16 %v483
    %v1075 = vunpack.c.l.b16 %v484
    %v1076 = vunpack.c.h.b16 %v484
    %v1077 = vunpack.c.l.b16 %v485
    %v1078 = vunpack.c.h.b16 %v485
    %v1079 = vunpack.c.l.b16 %v486
    %v1080 = vunpack.c.h.b16 %v486
    %v1081 = vunpack.c.l.b16 %v487
    %v1082 = vunpack.c.h.b16 %v487
    %v1083 = vunpack.c.l.b16 %v488
    %v1084 = vunpack.c.h.b16 %v488
    %v1085 = vunpack.c.l.b16 %v489
    %v1086 = vunpack.c.h.b16 %v489
    %v1087 = vunpack.c.l.b16 %v490
    %v1088 = vunpack.c.h.b16 %v490
    %v1089 = vunpack.c.l.b16 %v491
    %v1090 = vunpack.c.h.b16 %v491
    %v1091 = vunpack.c.l.b16 %v492
    %v1092 = vunpack.c.h.b16 %v492
    %v1093 = vunpack.c.l.b16 %v493
    %v1094 = vunpack.c.h.b16 %v493
    %v1095 = vunpack.c.l.b16 %v494
    %v1096 = vunpack.c.h.b16 %v494
    %v1097 = vunpack.c.l.b16 %v495
    %v1098 = vunpack.c.h.b16 %v495
    %v1099 = vunpack.c.l.b16 %v496
    %v1100 = vunpack.c.h.b16 %v496
    %v1101 = vunpack.c.l.b16 %v497
    %v1102 = vunpack.c.h.b16 %v497
    %v1103 = vunpack.c.l.b16 %v498
    %v1104 = vunpack.c.h.b16 %v498
    %v1105 = vunpack.c.l.b16 %v499
    %v1106 = vunpack.c.h.b16 %v499
    %v1107 = vunpack.c.l.b16 %v500
    %v1108 = vunpack.c.h.b16 %v500
    %v1109 = vunpack.c.l.b16 %v501
    %v1110 = vunpack.c.h.b16 %v501
    %v1111 = vunpack.c.l.b16 %v502
    %v1112 = vunpack.c.h.b16 %v502
    %v1113 = vunpack.c.l.b16 %v503
    %v1114 = vunpack.c.h.b16 %v503
    %v1115 = vunpack.c.l.b16 %v504
    %v1116 = vunpack.c.h.b16 %v504
    %v1117 = vunpack.c.l.b16 %v505
    %v1118 = vunpack.c.h.b16 %v505
    %v1119 = vunpack.c.l.b16 %v506
    %v1120 = vunpack.c.h.b16 %v506
    %v1121 = vunpack.c.l.b16 %v507
    %v1122 = vunpack.c.h.b16 %v507
    %v1123 = vunpack.c.l.b16 %v508
    %v1124 = vunpack.c.h.b16 %v508
    %v1125 = vunpack.c.l.b16 %v509
    %v1126 = vunpack.c.h.b16 %v509
    %v1127 = vunpack.c.l.b16 %v510
    %v1128 = vunpack.c.h.b16 %v510
    %v1129 = vunpack.c.l.b16 %v511
    %v1130 = vunpack.c.h.b16 %v511
    %v1131 = vunpack.c.l.b16 %v512
    %v1132 = vunpack.c.h.b16 %v512
    %v1133 = vunpack.c.l.b16 %v513
    %v1134 = vunpack.c.h.b16 %v513
    %v1135 = vunpack.c.l.b16 %v514
    %v1136 = vunpack.c.h.b16 %v514
    %v1137 = vunpack.c.l.b16 %v515
    %v1138 = vunpack.c.h.b16 %v515
    %v1139 = vunpack.c.l.b16 %v516
    %v1140 = vunpack.c.h.b16 %v516
    %v1141 = vunpack.c.l.b16 %v517
    %v1142 = vunpack.c.h.b16 %v517
    %v1143 = vunpack.c.l.b16 %v518
    %v1144 = vunpack.c.h.b16 %v518
    %v1145 = vunpack.c.l.b16 %v519
    %v1146 = vunpack.c.h.b16 %v519
    %v1147 = vunpack.c.l.b16 %v520
    %v1148 = vunpack.c.h.b16 %v520
    %v1149 = vunpack.c.l.b16 %v521
    %v1150 = vunpack.c.h.b16 %v521
    %v1151 = vunpack.c.l.b16 %v522
    %v1152 = vunpack.c.h.b16 %v522
    %v1153 = vunpack.c.l.b16 %v523
    %v1154 = vunpack.c.h.b16 %v523
    %v1155 = vunpack.c.l.b16 %v524
    %v1156 = vunpack.c.h.b16 %v524
    %v1157 = vunpack.c.l.b16 %v525
    %v1158 = vunpack.c.h.b16 %v525
    %v1159 = vunpack.c.l.b16 %v526
    %v1160 = vunpack.c.h.b16 %v526
    %v1161 = vunpack.c.l.b16 %v527
    %v1162 = vunpack.c.h.b16 %v527
    %v1163 = vunpack.c.l.b16 %v528
    %v1164 = vunpack.c.h.b16 %v528
    %v1165 = vunpack.c.l.b16 %v529
    %v1166 = vunpack.c.h.b16 %v529
    %v1167 = vunpack.c.l.b16 %v530
    %v1168 = vunpack.c.h.b16 %v530
    %v1169 = vunpack.c.l.b16 %v531
    %v1170 = vunpack.c.h.b16 %v531
    %v1171 = vunpack.c.l.b16 %v532
    %v1172 = vunpack.c.h.b16 %v532
    %v1173 = vunpack.c.l.b16 %v533
    %v1174 = vunpack.c.h.b16 %v533
    %v1175 = vunpack.c.l.b16 %v534
    %v1176 = vunpack.c.h.b16 %v534
    %v1177 = vunpack.c.l.b16 %v535
    %v1178 = vunpack.c.h.b16 %v535
    %v1179 = vunpack.c.l.b16 %v536
    %v1180 = vunpack.c.h.b16 %v536
    %v1181 = vunpack.c.l.b16 %v537
    %v1182 = vunpack.c.h.b16 %v537
    %v1183 = vunpack.c.l.b16 %v538
    %v1184 = vunpack.c.h.b16 %v538
    %v1185 = vunpack.c.l.b16 %v539
    %v1186 = vunpack.c.h.b16 %v539
    %v1187 = vunpack.c.l.b16 %v540
    %v1188 = vunpack.c.h.b16 %v540
    %v1189 = vunpack.c.l.b16 %v541
    %v1190 = vunpack.c.h.b16 %v541
    %v1191 = vunpack.c.l.b16 %v542
    %v1192 = vunpack.c.h.b16 %v542
    %v1193 = vunpack.c.l.b16 %v543
    %v1194 = vunpack.c.h.b16 %v543
    %v1195 = vunpack.c.l.b16 %v544
    %v1196 = vunpack.c.h.b16 %v544
    %v1197 = vunpack.c.l.b16 %v545
    %v1198 = vunpack.c.h.b16 %v545
    %v1199 = vunpack.c.l.b16 %v546
    %v1200 = vunpack.c.h.b16 %v546
    %v1201 = vunpack.c.l.b16 %v547
    %v1202 = vunpack.c.h.b16 %v547
    %v1203 = vunpack.c.l.b16 %v548
    %v1204 = vunpack.c.h.b16 %v548
    %v1205 = vunpack.c.l.b16 %v549
    %v1206 = vunpack.c.h.b16 %v549
    %v1207 = vunpack.c.l.b16 %v550
    %v1208 = vunpack.c.h.b16 %v550
    %v1209 = vunpack.c.l.b16 %v551
    %v1210 = vunpack.c.h.b16 %v551
    %v1211 = vunpack.c.l.b16 %v552
    %v1212 = vunpack.c.h.b16 %v552
    %v1213 = vunpack.c.l.b16 %v553
    %v1214 = vunpack.c.h.b16 %v553
    %v1215 = vunpack.c.l.b16 %v554
    %v1216 = vunpack.c.h.b16 %v554
    %v1217 = vunpack.c.l.b16 %v555
    %v1218 = vunpack.c.h.b16 %v555
    %v1219 = vunpack.c.l.b16 %v556
    %v1220 = vunpack.c.h.b16 %v556
    %v1221 = vunpack.c.l.b16 %v557
    %v1222 = vunpack.c.h.b16 %v557
    %v1223 = vunpack.c.l.b16 %v558
    %v1224 = vunpack.c.h.b16 %v558
    %v1225 = vunpack.c.l.b16 %v559
    %v1226 = vunpack.c.h.b16 %v559
    %v1227 = vunpack.c.l.b16 %v560
    %v1228 = vunpack.c.h.b16 %v560
    %v1229 = vunpack.c.l.b16 %v561
    %v1230 = vunpack.c.h.b16 %v561
    %v1231 = vunpack.c.l.b16 %v562
    %v1232 = vunpack.c.h.b16 %v562
    %v1233 = vunpack.c.l.b16 %v563
    %v1234 = vunpack.c.h.b16 %v563
    %v1235 = vunpack.c.l.b16 %v564
    %v1236 = vunpack.c.h.b16 %v564
    %v1237 = vunpack.c.l.b16 %v565
    %v1238 = vunpack.c.h.b16 %v565
    %v1239 = vunpack.c.l.b16 %v566
    %v1240 = vunpack.c.h.b16 %v566
    %v1241 = vunpack.c.l.b16 %v567
    %v1242 = vunpack.c.h.b16 %v567
    %v1243 = vunpack.c.l.b16 %v568
    %v1244 = vunpack.c.h.b16 %v568
    %v1245 = vunpack.c.l.b16 %v569
    %v1246 = vunpack.c.h.b16 %v569
    %v1247 = vunpack.c.l.b16 %v570
    %v1248 = vunpack.c.h.b16 %v570
    %v1249 = vunpack.c.l.b16 %v571
    %v1250 = vunpack.c.h.b16 %v571
    %v1251 = vunpack.c.l.b16 %v572
    %v1252 = vunpack.c.h.b16 %v572
    %v1253 = vunpack.c.l.b16 %v573
    %v1254 = vunpack.c.h.b16 %v573
    %v1255 = vunpack.c.l.b16 %v574
    %v1256 = vunpack.c.h.b16 %v574
    %v1257 = vunpack.c.l.b16 %v575
    %v1258 = vunpack.c.h.b16 %v575
    %v1259 = vunpack.c.l.b16 %v576
    %v1260 = vunpack.c.h.b16 %v576
    %v1261 = vunpack.c.l.b16 %v577
    %v1262 = vunpack.c.h.b16 %v577
    %v1263 = vunpack.c.l.b16 %v578
    %v1264 = vunpack.c.h.b16 %v578
    %v1265 = vunpack.c.l.b16 %v579
    %v1266 = vunpack.c.h.b16 %v579
    %v1267 = vunpack.c.l.b16 %v580
    %v1268 = vunpack.c.h.b16 %v580
    %v1269 = vunpack.c.l.b16 %v581
    %v1270 = vunpack.c.h.b16 %v581
    %v1271 = vunpack.c.l.b16 %v582
    %v1272 = vunpack.c.h.b16 %v582
    %v1273 = vunpack.c.l.b16 %v583
    %v1274 = vunpack.c.h.b16 %v583
    %v1275 = vunpack.c.l.b16 %v584
    %v1276 = vunpack.c.h.b16 %v584
    %v1277 = vunpack.c.l.b16 %v585
    %v1278 = vunpack.c.h.b16 %v585
    %v1279 = vunpack.c.l.b16 %v586
    %v1280 = vunpack.c.h.b16 %v586
    %v1281 = vunpack.c.l.b16 %v587
    %v1282 = vunpack.c.h.b16 %v587
    %v1283 = vunpack.c.l.b16 %v588
    %v1284 = vunpack.c.h.b16 %v588
    %v1285 = vunpack.c.l.b16 %v589
    %v1286 = vunpack.c.h.b16 %v589
    %v1287 = vunpack.c.l.b16 %v590
    %v1288 = vunpack.c.h.b16 %v590
    %v1289 = vunpack.c.l.b16 %v591
    %v1290 = vunpack.c.h.b16 %v591
    %v1291 = vunpack.c.l.b16 %v592
    %v1292 = vunpack.c.h.b16 %v592
    %v1293 = vunpack.c.l.b16 %v593
    %v1294 = vunpack.c.h.b16 %v593
    %v1295 = vunpack.c.l.b16 %v594
    %v1296 = vunpack.c.h.b16 %v594
    %v1297 = vunpack.c.l.b16 %v595
    %v1298 = vunpack.c.h.b16 %v595
    %v1299 = vunpack.c.l.b16 %v596
    %v1300 = vunpack.c.h.b16 %v596
    %v1301 = vunpack.c.l.b16 %v597
    %v1302 = vunpack.c.h.b16 %v597
    %v1303 = vunpack.c.l.b16 %v598
    %v1304 = vunpack.c.h.b16 %v598
    %v1305 = vunpack.c.l.b16 %v599
    %v1306 = vunpack.c.h.b16 %v599
    %v1307 = vunpack.c.l.b16 %v600
    %v1308 = vunpack.c.h.b16 %v600
    %v1309 = vunpack.c.l.b16 %v601
    %v1310 = vunpack.c.h.b16 %v601
    %v1311 = vunpack.c.l.b16 %v602
    %v1312 = vunpack.c.h.b16 %v602
    %v1313 = vunpack.c.l.b16 %v603
    %v1314 = vunpack.c.h.b16 %v603
    %v1315 = vunpack.c.l.b16 %v604
    %v1316 = vunpack.c.h.b16 %v604
    %v1317 = vunpack.c.l.b16 %v605
    %v1318 = vunpack.c.h.b16 %v605
    %v1319 = vunpack.c.l.b16 %v606
    %v1320 = vunpack.c.h.b16 %v606
    %v1321 = vunpack.c.l.b16 %v607
    %v1322 = vunpack.c.h.b16 %v607
    %v1323 = vunpack.c.l.b16 %v608
    %v1324 = vunpack.c.h.b16 %v608
    %v1325 = vunpack.c.l.b16 %v609
    %v1326 = vunpack.c.h.b16 %v609
    %v1327 = vunpack.c.l.b16 %v610
    %v1328 = vunpack.c.h.b16 %v610
    %v1329 = vunpack.c.l.b16 %v611
    %v1330 = vunpack.c.h.b16 %v611
    %v1331 = vunpack.c.l.b16 %v612
    %v1332 = vunpack.c.h.b16 %v612
    %v1333 = vunpack.c.l.b16 %v613
    %v1334 = vunpack.c.h.b16 %v613
    %v1335 = vunpack.c.l.b16 %v614
    %v1336 = vunpack.c.h.b16 %v614
    %v1337 = vunpack.c.l.b16 %v615
    %v1338 = vunpack.c.h.b16 %v615
    %v1339 = vunpack.c.l.b16 %v616
    %v1340 = vunpack.c.h.b16 %v616
    %v1341 = vunpack.c.l.b16 %v617
    %v1342 = vunpack.c.h.b16 %v617
    %v1343 = vunpack.c.l.b16 %v618
    %v1344 = vunpack.c.h.b16 %v618
    %v1345 = vunpack.c.l.b16 %v619
    %v1346 = vunpack.c.h.b16 %v619
    %v1347 = vunpack.c.l.b16 %v620
    %v1348 = vunpack.c.h.b16 %v620
    %v1349 = vunpack.c.l.b16 %v621
    %v1350 = vunpack.c.h.b16 %v621
    %v1351 = vunpack.c.l.b16 %v622
    %v1352 = vunpack.c.h.b16 %v622
    %v1353 = vunpack.c.l.b16 %v623
    %v1354 = vunpack.c.h.b16 %v623
    %v1355 = vunpack.c.l.b16 %v624
    %v1356 = vunpack.c.h.b16 %v624
    %v1357 = vunpack.c.l.b16 %v625
    %v1358 = vunpack.c.h.b16 %v625
    %v1359 = vunpack.c.l.b16 %v626
    %v1360 = vunpack.c.h.b16 %v626
    %v1361 = vunpack.c.l.b16 %v627
    %v1362 = vunpack.c.h.b16 %v627
    %v1363 = vunpack.c.l.b16 %v628
    %v1364 = vunpack.c.h.b16 %v628
    %v1365 = vunpack.c.l.b16 %v629
    %v1366 = vunpack.c.h.b16 %v629
    %v1367 = vunpack.c.l.b16 %v630
    %v1368 = vunpack.c.h.b16 %v630
    %v1369 = vunpack.c.l.b16 %v631
    %v1370 = vunpack.c.h.b16 %v631
    %v1371 = vunpack.c.l.b16 %v632
    %v1372 = vunpack.c.h.b16 %v632
    %v1373 = vunpack.c.l.b16 %v633
    %v1374 = vunpack.c.h.b16 %v633
    %v1375 = vunpack.c.l.b16 %v634
    %v1376 = vunpack.c.h.b16 %v634
    %v1377 = vunpack.c.l.b16 %v635
    %v1378 = vunpack.c.h.b16 %v635
    %v1379 = vunpack.c.l.b16 %v636
    %v1380 = vunpack.c.h.b16 %v636
    %v1381 = vunpack.c.l.b16 %v637
    %v1382 = vunpack.c.h.b16 %v637
    %v1383 = vunpack.c.l.b16 %v638
    %v1384 = vunpack.c.h.b16 %v638
    %v1385 = vunpack.c.l.b16 %v639
    %v1386 = vunpack.c.h.b16 %v639
    %v1387 = vunpack.c.l.b16 %v640
    %v1388 = vunpack.c.h.b16 %v640
    %v1389 = vunpack.c.l.b16 %v641
    %v1390 = vunpack.c.h.b16 %v641
    %v1391 = vunpack.c.l.b16 %v642
    %v1392 = vunpack.c.h.b16 %v642
    %v1393 = vunpack.c.l.b16 %v643
    %v1394 = vunpack.c.h.b16 %v643
    %v1395 = vunpack.c.l.b16 %v644
    %v1396 = vunpack.c.h.b16 %v644
    %v1397 = vunpack.c.l.b16 %v645
    %v1398 = vunpack.c.h.b16 %v645
    %v1399 = vunpack.c.l.b16 %v646
    %v1400 = vunpack.c.h.b16 %v646
    %v1401 = vunpack.c.l.b16 %v647
    %v1402 = vunpack.c.h.b16 %v647
    %v1403 = vunpack.c.l.b16 %v648
    %v1404 = vunpack.c.h.b16 %v648
    %v1405 = vunpack.c.l.b16 %v649
    %v1406 = vunpack.c.h.b16 %v649
    %v1407 = vunpack.c.l.b16 %v650
    %v1408 = vunpack.c.h.b16 %v650
    %v1409 = vunpack.c.l.b16 %v651
    %v1410 = vunpack.c.h.b16 %v651
    %v1411 = vunpack.c.l.b16 %v652
    %v1412 = vunpack.c.h.b16 %v652
    %v1413 = vunpack.c.l.b16 %v653
    %v1414 = vunpack.c.h.b16 %v653
    %v1415 = vunpack.c.l.b16 %v654
    %v1416 = vunpack.c.h.b16 %v654
    %v1417 = vunpack.c.l.b16 %v655
    %v1418 = vunpack.c.h.b16 %v655
    %v1419 = vunpack.c.l.b16 %v656
    %v1420 = vunpack.c.h.b16 %v656
    %v1421 = vunpack.c.l.b16 %v657
    %v1422 = vunpack.c.h.b16 %v657
    %v1423 = vunpack.c.l.b16 %v658
    %v1424 = vunpack.c.h.b16 %v658
    %v1425 = vunpack.c.l.b16 %v659
    %v1426 = vunpack.c.h.b16 %v659
    %v1427 = vunpack.c.l.b16 %v660
    %v1428 = vunpack.c.h.b16 %v660
    %v1429 = vunpack.c.l.b16 %v661
    %v1430 = vunpack.c.h.b16 %v661
    %v1431 = vunpack.c.l.b16 %v662
    %v1432 = vunpack.c.h.b16 %v662
    %v1433 = vunpack.c.l.b16 %v663
    %v1434 = vunpack.c.h.b16 %v663
    %v1435 = vunpack.c.l.b16 %v664
    %v1436 = vunpack.c.h.b16 %v664
    %v1437 = vunpack.c.l.b16 %v665
    %v1438 = vunpack.c.h.b16 %v665
    %v1439 = vunpack.c.l.b16 %v666
    %v1440 = vunpack.c.h.b16 %v666
    %v1441 = vunpack.c.l.b16 %v667
    %v1442 = vunpack.c.h.b16 %v667
    %v1443 = vunpack.c.l.b16 %v668
    %v1444 = vunpack.c.h.b16 %v668
    %v1445 = vunpack.c.l.b16 %v669
    %v1446 = vunpack.c.h.b16 %v669
    %v1447 = vunpack.c.l.b16 %v670
    %v1448 = vunpack.c.h.b16 %v670
    %v1449 = vunpack.c.l.b16 %v671
    %v1450 = vunpack.c.h.b16 %v671
    %v1451 = vunpack.c.l.b16 %v672
    %v1452 = vunpack.c.h.b16 %v672
    %v1453 = vunpack.c.l.b16 %v673
    %v1454 = vunpack.c.h.b16 %v673
    %v1455 = vunpack.c.l.b16 %v674
    %v1456 = vunpack.c.h.b16 %v674
    %v1457 = vunpack.c.l.b16 %v675
    %v1458 = vunpack.c.h.b16 %v675
    %v1459 = vunpack.c.l.b16 %v676
    %v1460 = vunpack.c.h.b16 %v676
    %v1461 = vunpack.c.l.b16 %v677
    %v1462 = vunpack.c.h.b16 %v677
    %v1463 = vunpack.c.l.b16 %v678
    %v1464 = vunpack.c.h.b16 %v678
    %v1465 = vunpack.c.l.b16 %v679
    %v1466 = vunpack.c.h.b16 %v679
    %v1467 = vunpack.c.l.b16 %v680
    %v1468 = vunpack.c.h.b16 %v680
    %v1469 = vunpack.c.l.b16 %v681
    %v1470 = vunpack.c.h.b16 %v681
    %v1471 = vunpack.c.l.b16 %v682
    %v1472 = vunpack.c.h.b16 %v682
    %v1473 = vunpack.c.l.b16 %v683
    %v1474 = vunpack.c.h.b16 %v683
    %v1475 = vunpack.c.l.b16 %v684
    %v1476 = vunpack.c.h.b16 %v684
    %v1477 = vunpack.c.l.b16 %v685
    %v1478 = vunpack.c.h.b16 %v685
    %v1479 = vunpack.c.l.b16 %v686
    %v1480 = vunpack.c.h.b16 %v686
    %v1481 = vunpack.c.l.b16 %v687
    %v1482 = vunpack.c.h.b16 %v687
    %v1483 = vunpack.c.l.b16 %v688
    %v1484 = vunpack.c.h.b16 %v688
    %v1485 = vunpack.c.l.b16 %v689
    %v1486 = vunpack.c.h.b16 %v689
    %v1487 = vunpack.c.l.b16 %v690
    %v1488 = vunpack.c.h.b16 %v690
    %v1489 = vunpack.c.l.b16 %v691
    %v1490 = vunpack.c.h.b16 %v691
    %v1491 = vunpack.c.l.b16 %v692
    %v1492 = vunpack.c.h.b16 %v692
    %v1493 = vunpack.c.l.b16 %v693
    %v1494 = vunpack.c.h.b16 %v693
    %v1495 = vunpack.c.l.b16 %v694
    %v1496 = vunpack.c.h.b16 %v694
    %v1497 = vunpack.c.l.b16 %v695
    %v1498 = vunpack.c.h.b16 %v695
    %v1499 = vunpack.c.l.b16 %v696
    %v1500 = vunpack.c.h.b16 %v696
    %v1501 = vunpack.c.l.b16 %v697
    %v1502 = vunpack.c.h.b16 %v697
    %v1503 = vunpack.c.l.b16 %v698
    %v1504 = vunpack.c.h.b16 %v698
    %v1505 = vunpack.c.l.b16 %v699
    %v1506 = vunpack.c.h.b16 %v699
    %v1507 = vunpack.c.l.b16 %v700
    %v1508 = vunpack.c.h.b16 %v700
    %v1509 = vunpack.c.l.b16 %v701
    %v1510 = vunpack.c.h.b16 %v701
    %v1511 = vunpack.c.l.b16 %v702
    %v1512 = vunpack.c.h.b16 %v702
    %v1513 = vpack.c.b16 %v1009, %v1001
    %v1514 = vpack.c.b16 %v1010, %v1002
    %v1515 = vpack.c.b16 %v1011, %v1003
    %v1516 = vpack.c.b16 %v1012, %v1004
    %v1517 = vpack.c.b16 %v1013, %v1005
    %v1518 = vpack.c.b16 %v1014, %v1006
    %v1519 = vpack.c.b16 %v1015, %v1007
    %v1520 = vpack.c.b16 %v1016, %v1008
    %v1521 = vpack.c.b16 %v1025, %v1017
    %v1522 = vpack.c.b16 %v1026, %v1018
    %v1523 = vpack.c.b16 %v1027, %v1019
    %v1524 = vpack.c.b16 %v1028, %v1020
    %v1525 = vpack.c.b16 %v1029, %v1021
    %v1526 = vpack.c.b16 %v1030, %v1022
    %v1527 = vpack.c.b16 %v1031, %v1023
    %v1528 = vpack.c.b16 %v1032, %v1024
    %v1529 = vpack.c.b16 %v1041, %v1033
    %v1530 = vpack.c.b16 %v1042, %v1034
    %v1531 = vpack.c.b16 %v1043, %v1035
    %v1532 = vpack.c.b16 %v1044, %v1036
    %v1533 = vpack.c.b16 %v1045, %v1037
    %v1534 = vpack.c.b16 %v1046, %v1038
    %v1535 = vpack.c.b16 %v1047, %v1039
    %v1536 = vpack.c.b16 %v1048, %v1040
    %v1537 = vpack.c.b16 %v1057, %v1049
    %v1538 = vpack.c.b16 %v1058, %v1050
    %v1539 = vpack.c.b16 %v1059, %v1051
    %v1540 = vpack.c.b16 %v1060, %v1052
    %v1541 = vpack.c.b16 %v1061, %v1053
    %v1542 = vpack.c.b16 %v1062, %v1054
    %v1543 = vpack.c.b16 %v1063, %v1055
    %v1544 = vpack.c.b16 %v1064, %v1056
    %v1545 = vpack.c.b16 %v1073, %v1065
    %v1546 = vpack.c.b16 %v1074, %v1066
    %v1547 = vpack.c.b16 %v1075, %v1067
    %v1548 = vpack.c.b16 %v1076, %v1068
    %v1549 = vpack.c.b16 %v1077, %v1069
    %v1550 = vpack.c.b16 %v1078, %v1070
    %v1551 = vpack.c.b16 %v1079, %v1071
    %v1552 = vpack.c.b16 %v1080, %v1072
    %v1553 = vpack.c.b16 %v1089, %v1081
    %v1554 = vpack.c.b16 %v1090, %v1082
    %v1555 = vpack.c.b16 %v1091, %v1083
    %v1556 = vpack.c.b16 %v1092, %v1084
    %v1557 = vpack.c.b16 %v1093, %v1085
    %v1558 = vpack.c.b16 %v1094, %v1086
    %v1559 = vpack.c.b16 %v1095, %v1087
    %v1560 = vpack.c.b16 %v1096, %v1088
    %v1561 = vpack.c.b16 %v1105, %v1097
    %v1562 = vpack.c.b16 %v1106, %v1098
    %v1563 = vpack.c.b16 %v1107, %v1099
    %v1564 = vpack.c.b16 %v1108, %v1100
    %v1565 = vpack.c.b16 %v1109, %v1101
    %v1566 = vpack.c.b16 %v1110, %v1102
    %v1567 = vpack.c.b16 %v1111, %v1103
    %v1568 = vpack.c.b16 %v1112, %v1104
    %v1569 = vpack.c.b16 %v1121, %v1113
    %v1570 = vpack.c.b16 %v1122, %v1114
    %v1571 = vpack.c.b16 %v1123, %v1115
    %v1572 = vpack.c.b16 %v1124, %v1116
    %v1573 = vpack.c.b16 %v1125, %v1117
    %v1574 = vpack.c.b16 %v1126, %v1118
    %v1575 = vpack.c.b16 %v1127, %v1119
    %v1576 = vpack.c.b16 %v1128, %v1120
    %v1577 = vpack.c.b16 %v1137, %v1129
    %v1578 = vpack.c.b16 %v1138, %v1130
    %v1579 = vpack.c.b16 %v1139, %v1131
    %v1580 = vpack.c.b16 %v1140, %v1132
    %v1581 = vpack.c.b16 %v1141, %v1133
    %v1582 = vpack.c.b16 %v1142, %v1134
    %v1583 = vpack.c.b16 %v1143, %v1135
    %v1584 = vpack.c.b16 %v1144, %v1136
    %v1585 = vpack.c.b16 %v1153, %v1145
    %v1586 = vpack.c.b16 %v1154, %v1146
    %v1587 = vpack.c.b16 %v1155, %v1147
    %v1588 = vpack.c.b16 %v1156, %v1148
    %v1589 = vpack.c.b16 %v1157, %v1149
    %v1590 = vpack.c.b16 %v1158, %v1150
    %v1591 = vpack.c.b16 %v1159, %v1151
    %v1592 = vpack.c.b16 %v1160, %v1152
    %v1593 = vpack.c.b16 %v1169, %v1161
    %v1594 = vpack.c.b16 %v1170, %v1162
    %v1595 = vpack.c.b16 %v1171, %v1163
    %v1596 = vpack.c.b16 %v1172, %v1164
    %v1597 = vpack.c.b16 %v1173, %v1165
    %v1598 = vpack.c.b16 %v1174, %v1166
    %v1599 = vpack.c.b16 %v1175, %v1167
    %v1600 = vpack.c.b16 %v1176, %v1168
    %v1601 = vpack.c.b16 %v1185, %v1177
    %v1602 = vpack.c.b16 %v1186, %v1178
    %v1603 = vpack.c.b16 %v1187, %v1179
    %v1604 = vpack.c.b16 %v1188, %v1180
    %v1605 = vpack.c.b16 %v1189, %v1181
    %v1606 = vpack.c.b16 %v1190, %v1182
    %v1607 = vpack.c.b16 %v1191, %v1183
    %v1608 = vpack.c.b16 %v1192, %v1184
    %v1609 = vpack.c.b16 %v1201, %v1193
    %v1610 = vpack.c.b16 %v1202, %v1194
    %v1611 = vpack.c.b16 %v1203, %v1195
    %v1612 = vpack.c.b16 %v1204, %v1196
    %v1613 = vpack.c.b16 %v1205, %v1197
    %v1614 = vpack.c.b16 %v1206, %v1198
    %v1615 = vpack.c.b16 %v1207, %v1199
    %v1616 = vpack.c.b16 %v1208, %v1200
    %v1617 = vpack.c.b16 %v1217, %v1209
    %v1618 = vpack.c.b16 %v1218, %v1210
    %v1619 = vpack.c.b16 %v1219, %v1211
    %v1620 = vpack.c.b16 %v1220, %v1212
    %v1621 = vpack.c.b16 %v1221, %v1213
    %v1622 = vpack.c.b16 %v1222, %v1214
    %v1623 = vpack.c.b16 %v1223, %v1215
    %v1624 = vpack.c.b16 %v1224, %v1216
    %v1625 = vpack.c.b16 %v1233, %v1225
    %v1626 = vpack.c.b16 %v1234, %v1226
    %v1627 = vpack.c.b16 %v1235, %v1227
    %v1628 = vpack.c.b16 %v1236, %v1228
    %v1629 = vpack.c.b16 %v1237, %v1229
    %v1630 = vpack.c.b16 %v1238, %v1230
    %v1631 = vpack.c.b16 %v1239, %v1231
    %v1632 = vpack.c.b16 %v1240, %v1232
    %v1633 = vpack.c.b16 %v1249, %v1241
    %v1634 = vpack.c.b16 %v1250, %v1242
    %v1635 = vpack.c.b16 %v1251, %v1243
    %v1636 = vpack.c.b16 %v1252, %v1244
    %v1637 = vpack.c.b16 %v1253, %v1245
    %v1638 = vpack.c.b16 %v1254, %v1246
    %v1639 = vpack.c.b16 %v1255, %v1247
    %v1640 = vpack.c.b16 %v1256, %v1248
    %v1641 = vpack.c.b16 %v1265, %v1257
    %v1642 = vpack.c.b16 %v1266, %v1258
    %v1643 = vpack.c.b16 %v1267, %v1259
    %v1644 = vpack.c.b16 %v1268, %v1260
    %v1645 = vpack.c.b16 %v1269, %v1261
    %v1646 = vpack.c.b16 %v1270, %v1262
    %v1647 = vpack.c.b16 %v1271, %v1263
    %v1648 = vpack.c.b16 %v1272, %v1264
    %v1649 = vpack.c.b16 %v1281, %v1273
    %v1650 = vpack.c.b16 %v1282, %v1274
    %v1651 = vpack.c.b16 %v1283, %v1275
    %v1652 = vpack.c.b16 %v1284, %v1276
    %v1653 = vpack.c.b16 %v1285, %v1277
    %v1654 = vpack.c.b16 %v1286, %v1278
    %v1655 = vpack.c.b16 %v1287, %v1279
    %v1656 = vpack.c.b16 %v1288, %v1280
    %v1657 = vpack.c.b16 %v1297, %v1289
    %v1658 = vpack.c.b16 %v1298, %v1290
    %v1659 = vpack.c.b16 %v1299, %v1291
    %v1660 = vpack.c.b16 %v1300, %v1292
    %v1661 = vpack.c.b16 %v1301, %v1293
    %v1662 = vpack.c.b16 %v1302, %v1294
    %v1663 = vpack.c.b16 %v1303, %v1295
    %v1664 = vpack.c.b16 %v1304, %v1296
    %v1665 = vpack.c.b16 %v1313, %v1305
    %v1666 = vpack.c.b16 %v1314, %v1306
    %v1667 = vpack.c.b16 %v1315, %v1307
    %v1668 = vpack.c.b16 %v1316, %v1308
    %v1669 = vpack.c.b16 %v1317, %v1309
    %v1670 = vpack.c.b16 %v1318, %v1310
    %v1671 = vpack.c.b16 %v1319, %v1311
    %v1672 = vpack.c.b16 %v1320, %v1312
    %v1673 = vpack.c.b16 %v1329, %v1321
    %v1674 = vpack.c.b16 %v1330, %v1322
    %v1675 = vpack.c.b16 %v1331, %v1323
    %v1676 = vpack.c.b16 %v1332, %v1324
    %v1677 = vpack.c.b16 %v1333, %v1325
    %v1678 = vpack.c.b16 %v1334, %v1326
    %v1679 = vpack.c.b16 %v1335, %v1327
    %v1680 = vpack.c.b16 %v1336, %v1328
    %v1681 = vpack.c.b16 %v1345, %v1337
    %v1682 = vpack.c.b16 %v1346, %v1338
    %v1683 = vpack.c.b16 %v1347, %v1339
    %v1684 = vpack.c.b16 %v1348, %v1340
    %v1685 = vpack.c.b16 %v1349, %v1341
    %v1686 = vpack.c.b16 %v1350, %v1342
    %v1687 = vpack.c.b16 %v1351, %v1343
    %v1688 = vpack.c.b16 %v1352, %v1344
    %v1689 = vpack.c.b16 %v1361, %v1353
    %v1690 = vpack.c.b16 %v1362, %v1354
    %v1691 = vpack.c.b16 %v1363, %v1355
    %v1692 = vpack.c.b16 %v1364, %v1356
    %v1693 = vpack.c.b16 %v1365, %v1357
    %v1694 = vpack.c.b16 %v1366, %v1358
    %v1695 = vpack.c.b16 %v1367, %v1359
    %v1696 = vpack.c.b16 %v1368, %v1360
    %v1697 = vpack.c.b16 %v1377, %v1369
    %v1698 = vpack.c.b16 %v1378, %v1370
    %v1699 = vpack.c.b16 %v1379, %v1371
    %v1700 = vpack.c.b16 %v1380, %v1372
    %v1701 = vpack.c.b16 %v1381, %v1373
    %v1702 = vpack.c.b16 %v1382, %v1374
    %v1703 = vpack.c.b16 %v1383, %v1375
    %v1704 = vpack.c.b16 %v1384, %v1376
    %v1705 = vpack.c.b16 %v1393, %v1385
    %v1706 = vpack.c.b16 %v1394, %v1386
    %v1707 = vpack.c.b16 %v1395, %v1387
    %v1708 = vpack.c.b16 %v1396, %v1388
    %v1709 = vpack.c.b16 %v1397, %v1389
    %v1710 = vpack.c.b16 %v1398, %v1390
    %v1711 = vpack.c.b16 %v1399, %v1391
    %v1712 = vpack.c.b16 %v1400, %v1392
    %v1713 = vpack.c.b16 %v1409, %v1401
    %v1714 = vpack.c.b16 %v1410, %v1402
    %v1715 = vpack.c.b16 %v1411, %v1403
    %v1716 = vpack.c.b16 %v1412, %v1404
    %v1717 = vpack.c.b16 %v1413, %v1405
    %v1718 = vpack.c.b16 %v1414, %v1406
    %v1719 = vpack.c.b16 %v1415, %v1407
    %v1720 = vpack.c.b16 %v1416, %v1408
    %v1721 = vpack.c.b16 %v1425, %v1417
    %v1722 = vpack.c.b16 %v1426, %v1418
    %v1723 = vpack.c.b16 %v1427, %v1419
    %v1724 = vpack.c.b16 %v1428, %v1420
    %v1725 = vpack.c.b16 %v1429, %v1421
    %v1726 = vpack.c.b16 %v1430, %v1422
    %v1727 = vpack.c.b16 %v1431, %v1423
    %v1728 = vpack.c.b16 %v1432, %v1424
    %v1729 = vpack.c.b16 %v1441, %v1433
    %v1730 = vpack.c.b16 %v1442, %v1434
    %v1731 = vpack.c.b16 %v1443, %v1435
    %v1732 = vpack.c.b16 %v1444, %v1436
    %v1733 = vpack.c.b16 %v1445, %v1437
    %v1734 = vpack.c.b16 %v1446, %v1438
    %v1735 = vpack.c.b16 %v1447, %v1439
    %v1736 = vpack.c.b16 %v1448, %v1440
    %v1737 = vpack.c.b16 %v1457, %v1449
    %v1738 = vpack.c.b16 %v1458, %v1450
    %v1739 = vpack.c.b16 %v1459, %v1451
    %v1740 = vpack.c.b16 %v1460, %v1452
    %v1741 = vpack.c.b16 %v1461, %v1453
    %v1742 = vpack.c.b16 %v1462, %v1454
    %v1743 = vpack.c.b16 %v1463, %v1455
    %v1744 = vpack.c.b16 %v1464, %v1456
    %v1745 = vpack.c.b16 %v1473, %v1465
    %v1746 = vpack.c.b16 %v1474, %v1466
    %v1747 = vpack.c.b16 %v1475, %v1467
    %v1748 = vpack.c.b16 %v1476, %v1468
    %v1749 = vpack.c.b16 %v1477, %v1469
    %v1750 = vpack.c.b16 %v1478, %v1470
    %v1751 = vpack.c.b16 %v1479, %v1471
    %v1752 = vpack.c.b16 %v1480, %v1472
    %v1753 = vpack.c.b16 %v1489, %v1481
    %v1754 = vpack.c.b16 %v1490, %v1482
    %v1755 = vpack.c.b16 %v1491, %v1483
    %v1756 = vpack.c.b16 %v1492, %v1484
    %v1757 = vpack.c.b16 %v1493, %v1485
    %v1758 = vpack.c.b16 %v1494, %v1486
    %v1759 = vpack.c.b16 %v1495, %v1487
    %v1760 = vpack.c.b16 %v1496, %v1488
    %v1761 = vpack.c.b16 %v1505, %v1497
    %v1762 = vpack.c.b16 %v1506, %v1498
    %v1763 = vpack.c.b16 %v1507, %v1499
    %v1764 = vpack.c.b16 %v1508, %v1500
    %v1765 = vpack.c.b16 %v1509, %v1501
    %v1766 = vpack.c.b16 %v1510, %v1502
    %v1767 = vpack.c.b16 %v1511, %v1503
    %v1768 = vpack.c.b16 %v1512, %v1504
    %2025 = vmatprep.subr.bf16.mxu0 %v1514
    %2026 = vmatpush1.bf16.msra.mxu0 %v1513
    %2027 = vmatprep.subr.bf16.mxu0 %v1522
    %2028 = vmatpush1.bf16.msra.mxu0 %v1521
    %2029 = vmatprep.subr.bf16.mxu0 %v1530
    %2030 = vmatpush1.bf16.msra.mxu0 %v1529
    %2031 = vmatprep.subr.bf16.mxu0 %v1538
    %2032 = vmatpush1.bf16.msra.mxu0 %v1537
    %2033 = vmatprep.subr.bf16.mxu0 %v1546
    %2034 = vmatpush1.bf16.msra.mxu0 %v1545
    %2035 = vmatprep.subr.bf16.mxu0 %v1554
    %2036 = vmatpush1.bf16.msra.mxu0 %v1553
    %2037 = vmatprep.subr.bf16.mxu0 %v1562
    %2038 = vmatpush1.bf16.msra.mxu0 %v1561
    %2039 = vmatprep.subr.bf16.mxu0 %v1570
    %2040 = vmatpush1.bf16.msra.mxu0 %v1569
    %2041 = vmatprep.subr.bf16.mxu0 %v1578
    %2042 = vmatpush1.bf16.msra.mxu0 %v1577
    %2043 = vmatprep.subr.bf16.mxu0 %v1586
    %2044 = vmatpush1.bf16.msra.mxu0 %v1585
    %2045 = vmatprep.subr.bf16.mxu0 %v1594
    %2046 = vmatpush1.bf16.msra.mxu0 %v1593
    %2047 = vmatprep.subr.bf16.mxu0 %v1602
    %2048 = vmatpush1.bf16.msra.mxu0 %v1601
    %2049 = vmatprep.subr.bf16.mxu0 %v1610
    %2050 = vmatpush1.bf16.msra.mxu0 %v1609
    %2051 = vmatprep.subr.bf16.mxu0 %v1618
    %2052 = vmatpush1.bf16.msra.mxu0 %v1617
    %2053 = vmatprep.subr.bf16.mxu0 %v1626
    %2054 = vmatpush1.bf16.msra.mxu0 %v1625
    %2055 = vmatprep.subr.bf16.mxu0 %v1634
    %2056 = vmatpush1.bf16.msra.mxu0 %v1633
    %2057 = vmatprep.mubr.bf16.mxu0 %v444
    %2058 = vmatmul.mubr.bf16.gmra.mrb[0].mxu0 %v443
    %v2059 = vpop.f32.mrb[0].mxu0
    %v2060 = vadd.f32 %v708, %v2059
    %v2061 = vpop.f32.mrb[0].mxu0
    %v2062 = vadd.f32 %v712, %v2061
    %v2063 = vpop.f32.mrb[0].mxu0
    %v2064 = vpop.f32.mrb[0].mxu0
    %2065 = vdwg.mxu0
    %2066 = vmatprep.subr.bf16.mxu0 %v1642
    %2067 = vmatpush1.bf16.msra.mxu0 %v1641
    %2068 = vmatprep.subr.bf16.mxu0 %v1650
    %2069 = vmatpush1.bf16.msra.mxu0 %v1649
    %2070 = vmatprep.subr.bf16.mxu0 %v1658
    %2071 = vmatpush1.bf16.msra.mxu0 %v1657
    %2072 = vmatprep.subr.bf16.mxu0 %v1666
    %2073 = vmatpush1.bf16.msra.mxu0 %v1665
    %2074 = vmatprep.subr.bf16.mxu0 %v1674
    %2075 = vmatpush1.bf16.msra.mxu0 %v1673
    %2076 = vmatprep.subr.bf16.mxu0 %v1682
    %2077 = vmatpush1.bf16.msra.mxu0 %v1681
    %2078 = vmatprep.subr.bf16.mxu0 %v1690
    %2079 = vmatpush1.bf16.msra.mxu0 %v1689
    %2080 = vmatprep.subr.bf16.mxu0 %v1698
    %2081 = vmatpush1.bf16.msra.mxu0 %v1697
    %2082 = vmatprep.subr.bf16.mxu0 %v1706
    %2083 = vmatpush1.bf16.msra.mxu0 %v1705
    %2084 = vmatprep.subr.bf16.mxu0 %v1714
    %2085 = vmatpush1.bf16.msra.mxu0 %v1713
    %2086 = vmatprep.subr.bf16.mxu0 %v1722
    %2087 = vmatpush1.bf16.msra.mxu0 %v1721
    %2088 = vmatprep.subr.bf16.mxu0 %v1730
    %2089 = vmatpush1.bf16.msra.mxu0 %v1729
    %2090 = vmatprep.subr.bf16.mxu0 %v1738
    %2091 = vmatpush1.bf16.msra.mxu0 %v1737
    %2092 = vmatprep.subr.bf16.mxu0 %v1746
    %2093 = vmatpush1.bf16.msra.mxu0 %v1745
    %2094 = vmatprep.subr.bf16.mxu0 %v1754
    %2095 = vmatpush1.bf16.msra.mxu0 %v1753
    %2096 = vmatprep.subr.bf16.mxu0 %v1762
    %2097 = vmatpush1.bf16.msra.mxu0 %v1761
    %2098 = vmatprep.mubr.bf16.mxu0 %v446
    %2099 = vmatmul.mubr.bf16.gmra.mrb[0].mxu0 %v445
    %v2100 = vpop.f32.mrb[0].mxu0
    %v2101 = vadd.f32 %v2060, %v2100
    %v2102 = vpop.f32.mrb[0].mxu0
    %v2103 = vadd.f32 %v2062, %v2102
    %v2104 = vpop.f32.mrb[0].mxu0
    %v2105 = vpop.f32.mrb[0].mxu0
    %2106 = vdwg.mxu0
    %2107 = vmatprep.subr.bf16.mxu0 %v1516
    %2108 = vmatpush1.bf16.msra.mxu0 %v1515
    %2109 = vmatprep.subr.bf16.mxu0 %v1524
    %2110 = vmatpush1.bf16.msra.mxu0 %v1523
    %2111 = vmatprep.subr.bf16.mxu0 %v1532
    %2112 = vmatpush1.bf16.msra.mxu0 %v1531
    %2113 = vmatprep.subr.bf16.mxu0 %v1540
    %2114 = vmatpush1.bf16.msra.mxu0 %v1539
    %2115 = vmatprep.subr.bf16.mxu0 %v1548
    %2116 = vmatpush1.bf16.msra.mxu0 %v1547
    %2117 = vmatprep.subr.bf16.mxu0 %v1556
    %2118 = vmatpush1.bf16.msra.mxu0 %v1555
    %2119 = vmatprep.subr.bf16.mxu0 %v1564
    %2120 = vmatpush1.bf16.msra.mxu0 %v1563
    %2121 = vmatprep.subr.bf16.mxu0 %v1572
    %2122 = vmatpush1.bf16.msra.mxu0 %v1571
    %2123 = vmatprep.subr.bf16.mxu0 %v1580
    %2124 = vmatpush1.bf16.msra.mxu0 %v1579
    %2125 = vmatprep.subr.bf16.mxu0 %v1588
    %2126 = vmatpush1.bf16.msra.mxu0 %v1587
    %2127 = vmatprep.subr.bf16.mxu0 %v1596
    %2128 = vmatpush1.bf16.msra.mxu0 %v1595
    %2129 = vmatprep.subr.bf16.mxu0 %v1604
    %2130 = vmatpush1.bf16.msra.mxu0 %v1603
    %2131 = vmatprep.subr.bf16.mxu0 %v1612
    %2132 = vmatpush1.bf16.msra.mxu0 %v1611
    %2133 = vmatprep.subr.bf16.mxu0 %v1620
    %2134 = vmatpush1.bf16.msra.mxu0 %v1619
    %2135 = vmatprep.subr.bf16.mxu0 %v1628
    %2136 = vmatpush1.bf16.msra.mxu0 %v1627
    %2137 = vmatprep.subr.bf16.mxu0 %v1636
    %2138 = vmatpush1.bf16.msra.mxu0 %v1635
    %2139 = vmatprep.mubr.bf16.mxu0 %v444
    %2140 = vmatmul.mubr.bf16.gmra.mrb[0].mxu0 %v443
    %v2141 = vpop.f32.mrb[0].mxu0
    %v2142 = vadd.f32 %v716, %v2141
    %v2143 = vpop.f32.mrb[0].mxu0
    %v2144 = vadd.f32 %v720, %v2143
    %v2145 = vpop.f32.mrb[0].mxu0
    %v2146 = vpop.f32.mrb[0].mxu0
    %2147 = vdwg.mxu0
    %2148 = vmatprep.subr.bf16.mxu0 %v1644
    %2149 = vmatpush1.bf16.msra.mxu0 %v1643
    %2150 = vmatprep.subr.bf16.mxu0 %v1652
    %2151 = vmatpush1.bf16.msra.mxu0 %v1651
    %2152 = vmatprep.subr.bf16.mxu0 %v1660
    %2153 = vmatpush1.bf16.msra.mxu0 %v1659
    %2154 = vmatprep.subr.bf16.mxu0 %v1668
    %2155 = vmatpush1.bf16.msra.mxu0 %v1667
    %2156 = vmatprep.subr.bf16.mxu0 %v1676
    %2157 = vmatpush1.bf16.msra.mxu0 %v1675
    %2158 = vmatprep.subr.bf16.mxu0 %v1684
    %2159 = vmatpush1.bf16.msra.mxu0 %v1683
    %2160 = vmatprep.subr.bf16.mxu0 %v1692
    %2161 = vmatpush1.bf16.msra.mxu0 %v1691
    %2162 = vmatprep.subr.bf16.mxu0 %v1700
    %2163 = vmatpush1.bf16.msra.mxu0 %v1699
    %2164 = vmatprep.subr.bf16.mxu0 %v1708
    %2165 = vmatpush1.bf16.msra.mxu0 %v1707
    %2166 = vmatprep.subr.bf16.mxu0 %v1716
    %2167 = vmatpush1.bf16.msra.mxu0 %v1715
    %2168 = vmatprep.subr.bf16.mxu0 %v1724
    %2169 = vmatpush1.bf16.msra.mxu0 %v1723
    %2170 = vmatprep.subr.bf16.mxu0 %v1732
    %2171 = vmatpush1.bf16.msra.mxu0 %v1731
    %2172 = vmatprep.subr.bf16.mxu0 %v1740
    %2173 = vmatpush1.bf16.msra.mxu0 %v1739
    %2174 = vmatprep.subr.bf16.mxu0 %v1748
    %2175 = vmatpush1.bf16.msra.mxu0 %v1747
    %2176 = vmatprep.subr.bf16.mxu0 %v1756
    %2177 = vmatpush1.bf16.msra.mxu0 %v1755
    %2178 = vmatprep.subr.bf16.mxu0 %v1764
    %2179 = vmatpush1.bf16.msra.mxu0 %v1763
    %2180 = vmatprep.mubr.bf16.mxu0 %v446
    %2181 = vmatmul.mubr.bf16.gmra.mrb[0].mxu0 %v445
    %v2182 = vpop.f32.mrb[0].mxu0
    %v2183 = vadd.f32 %v2142, %v2182
    %v2184 = vpop.f32.mrb[0].mxu0
    %v2185 = vadd.f32 %v2144, %v2184
    %v2186 = vpop.f32.mrb[0].mxu0
    %v2187 = vpop.f32.mrb[0].mxu0
    %2188 = vdwg.mxu0
    %2189 = vmatprep.subr.bf16.mxu0 %v1518
    %2190 = vmatpush1.bf16.msra.mxu0 %v1517
    %2191 = vmatprep.subr.bf16.mxu0 %v1526
    %2192 = vmatpush1.bf16.msra.mxu0 %v1525
    %2193 = vmatprep.subr.bf16.mxu0 %v1534
    %2194 = vmatpush1.bf16.msra.mxu0 %v1533
    %2195 = vmatprep.subr.bf16.mxu0 %v1542
    %2196 = vmatpush1.bf16.msra.mxu0 %v1541
    %2197 = vmatprep.subr.bf16.mxu0 %v1550
    %2198 = vmatpush1.bf16.msra.mxu0 %v1549
    %2199 = vmatprep.subr.bf16.mxu0 %v1558
    %2200 = vmatpush1.bf16.msra.mxu0 %v1557
    %2201 = vmatprep.subr.bf16.mxu0 %v1566
    %2202 = vmatpush1.bf16.msra.mxu0 %v1565
    %2203 = vmatprep.subr.bf16.mxu0 %v1574
    %2204 = vmatpush1.bf16.msra.mxu0 %v1573
    %2205 = vmatprep.subr.bf16.mxu0 %v1582
    %2206 = vmatpush1.bf16.msra.mxu0 %v1581
    %2207 = vmatprep.subr.bf16.mxu0 %v1590
    %2208 = vmatpush1.bf16.msra.mxu0 %v1589
    %2209 = vmatprep.subr.bf16.mxu0 %v1598
    %2210 = vmatpush1.bf16.msra.mxu0 %v1597
    %2211 = vmatprep.subr.bf16.mxu0 %v1606
    %2212 = vmatpush1.bf16.msra.mxu0 %v1605
    %2213 = vmatprep.subr.bf16.mxu0 %v1614
    %2214 = vmatpush1.bf16.msra.mxu0 %v1613
    %2215 = vmatprep.subr.bf16.mxu0 %v1622
    %2216 = vmatpush1.bf16.msra.mxu0 %v1621
    %2217 = vmatprep.subr.bf16.mxu0 %v1630
    %2218 = vmatpush1.bf16.msra.mxu0 %v1629
    %2219 = vmatprep.subr.bf16.mxu0 %v1638
    %2220 = vmatpush1.bf16.msra.mxu0 %v1637
    %2221 = vmatprep.mubr.bf16.mxu0 %v444
    %2222 = vmatmul.mubr.bf16.gmra.mrb[0].mxu0 %v443
    %v2223 = vpop.f32.mrb[0].mxu0
    %v2224 = vadd.f32 %v724, %v2223
    %v2225 = vpop.f32.mrb[0].mxu0
    %v2226 = vadd.f32 %v728, %v2225
    %v2227 = vpop.f32.mrb[0].mxu0
    %v2228 = vpop.f32.mrb[0].mxu0
    %2229 = vdwg.mxu0
    %2230 = vmatprep.subr.bf16.mxu0 %v1646
    %2231 = vmatpush1.bf16.msra.mxu0 %v1645
    %2232 = vmatprep.subr.bf16.mxu0 %v1654
    %2233 = vmatpush1.bf16.msra.mxu0 %v1653
    %2234 = vmatprep.subr.bf16.mxu0 %v1662
    %2235 = vmatpush1.bf16.msra.mxu0 %v1661
    %2236 = vmatprep.subr.bf16.mxu0 %v1670
    %2237 = vmatpush1.bf16.msra.mxu0 %v1669
    %2238 = vmatprep.subr.bf16.mxu0 %v1678
    %2239 = vmatpush1.bf16.msra.mxu0 %v1677
    %2240 = vmatprep.subr.bf16.mxu0 %v1686
    %2241 = vmatpush1.bf16.msra.mxu0 %v1685
    %2242 = vmatprep.subr.bf16.mxu0 %v1694
    %2243 = vmatpush1.bf16.msra.mxu0 %v1693
    %2244 = vmatprep.subr.bf16.mxu0 %v1702
    %2245 = vmatpush1.bf16.msra.mxu0 %v1701
    %2246 = vmatprep.subr.bf16.mxu0 %v1710
    %2247 = vmatpush1.bf16.msra.mxu0 %v1709
    %2248 = vmatprep.subr.bf16.mxu0 %v1718
    %2249 = vmatpush1.bf16.msra.mxu0 %v1717
    %2250 = vmatprep.subr.bf16.mxu0 %v1726
    %2251 = vmatpush1.bf16.msra.mxu0 %v1725
    %2252 = vmatprep.subr.bf16.mxu0 %v1734
    %2253 = vmatpush1.bf16.msra.mxu0 %v1733
    %2254 = vmatprep.subr.bf16.mxu0 %v1742
    %2255 = vmatpush1.bf16.msra.mxu0 %v1741
    %2256 = vmatprep.subr.bf16.mxu0 %v1750
    %2257 = vmatpush1.bf16.msra.mxu0 %v1749
    %2258 = vmatprep.subr.bf16.mxu0 %v1758
    %2259 = vmatpush1.bf16.msra.mxu0 %v1757
    %2260 = vmatprep.subr.bf16.mxu0 %v1766
    %2261 = vmatpush1.bf16.msra.mxu0 %v1765
    %2262 = vmatprep.mubr.bf16.mxu0 %v446
    %2263 = vmatmul.mubr.bf16.gmra.mrb[0].mxu0 %v445
    %v2264 = vpop.f32.mrb[0].mxu0
    %v2265 = vadd.f32 %v2224, %v2264
    %v2266 = vpop.f32.mrb[0].mxu0
    %v2267 = vadd.f32 %v2226, %v2266
    %v2268 = vpop.f32.mrb[0].mxu0
    %v2269 = vpop.f32.mrb[0].mxu0
    %2270 = vdwg.mxu0
    %2271 = vmatprep.subr.bf16.mxu0 %v1520
    %2272 = vmatpush1.bf16.msra.mxu0 %v1519
    %2273 = vmatprep.subr.bf16.mxu0 %v1528
    %2274 = vmatpush1.bf16.msra.mxu0 %v1527
    %2275 = vmatprep.subr.bf16.mxu0 %v1536
    %2276 = vmatpush1.bf16.msra.mxu0 %v1535
    %2277 = vmatprep.subr.bf16.mxu0 %v1544
    %2278 = vmatpush1.bf16.msra.mxu0 %v1543
    %2279 = vmatprep.subr.bf16.mxu0 %v1552
    %2280 = vmatpush1.bf16.msra.mxu0 %v1551
    %2281 = vmatprep.subr.bf16.mxu0 %v1560
    %2282 = vmatpush1.bf16.msra.mxu0 %v1559
    %2283 = vmatprep.subr.bf16.mxu0 %v1568
    %2284 = vmatpush1.bf16.msra.mxu0 %v1567
    %2285 = vmatprep.subr.bf16.mxu0 %v1576
    %2286 = vmatpush1.bf16.msra.mxu0 %v1575
    %2287 = vmatprep.subr.bf16.mxu0 %v1584
    %2288 = vmatpush1.bf16.msra.mxu0 %v1583
    %2289 = vmatprep.subr.bf16.mxu0 %v1592
    %2290 = vmatpush1.bf16.msra.mxu0 %v1591
    %2291 = vmatprep.subr.bf16.mxu0 %v1600
    %2292 = vmatpush1.bf16.msra.mxu0 %v1599
    %2293 = vmatprep.subr.bf16.mxu0 %v1608
    %2294 = vmatpush1.bf16.msra.mxu0 %v1607
    %2295 = vmatprep.subr.bf16.mxu0 %v1616
    %2296 = vmatpush1.bf16.msra.mxu0 %v1615
    %2297 = vmatprep.subr.bf16.mxu0 %v1624
    %2298 = vmatpush1.bf16.msra.mxu0 %v1623
    %2299 = vmatprep.subr.bf16.mxu0 %v1632
    %2300 = vmatpush1.bf16.msra.mxu0 %v1631
    %2301 = vmatprep.subr.bf16.mxu0 %v1640
    %2302 = vmatpush1.bf16.msra.mxu0 %v1639
    %2303 = vmatprep.mubr.bf16.mxu0 %v444
    %2304 = vmatmul.mubr.bf16.gmra.mrb[0].mxu0 %v443
    %v2305 = vpop.f32.mrb[0].mxu0
    %v2306 = vadd.f32 %v732, %v2305
    %v2307 = vpop.f32.mrb[0].mxu0
    %v2308 = vadd.f32 %v736, %v2307
    %v2309 = vpop.f32.mrb[0].mxu0
    %v2310 = vpop.f32.mrb[0].mxu0
    %2311 = vdwg.mxu0
    %2312 = vmatprep.subr.bf16.mxu0 %v1648
    %2313 = vmatpush1.bf16.msra.mxu0 %v1647
    %2314 = vmatprep.subr.bf16.mxu0 %v1656
    %2315 = vmatpush1.bf16.msra.mxu0 %v1655
    %2316 = vmatprep.subr.bf16.mxu0 %v1664
    %2317 = vmatpush1.bf16.msra.mxu0 %v1663
    %2318 = vmatprep.subr.bf16.mxu0 %v1672
    %2319 = vmatpush1.bf16.msra.mxu0 %v1671
    %2320 = vmatprep.subr.bf16.mxu0 %v1680
    %2321 = vmatpush1.bf16.msra.mxu0 %v1679
    %2322 = vmatprep.subr.bf16.mxu0 %v1688
    %2323 = vmatpush1.bf16.msra.mxu0 %v1687
    %2324 = vmatprep.subr.bf16.mxu0 %v1696
    %2325 = vmatpush1.bf16.msra.mxu0 %v1695
    %2326 = vmatprep.subr.bf16.mxu0 %v1704
    %2327 = vmatpush1.bf16.msra.mxu0 %v1703
    %2328 = vmatprep.subr.bf16.mxu0 %v1712
    %2329 = vmatpush1.bf16.msra.mxu0 %v1711
    %2330 = vmatprep.subr.bf16.mxu0 %v1720
    %2331 = vmatpush1.bf16.msra.mxu0 %v1719
    %2332 = vmatprep.subr.bf16.mxu0 %v1728
    %2333 = vmatpush1.bf16.msra.mxu0 %v1727
    %2334 = vmatprep.subr.bf16.mxu0 %v1736
    %2335 = vmatpush1.bf16.msra.mxu0 %v1735
    %2336 = vmatprep.subr.bf16.mxu0 %v1744
    %2337 = vmatpush1.bf16.msra.mxu0 %v1743
    %2338 = vmatprep.subr.bf16.mxu0 %v1752
    %2339 = vmatpush1.bf16.msra.mxu0 %v1751
    %2340 = vmatprep.subr.bf16.mxu0 %v1760
    %2341 = vmatpush1.bf16.msra.mxu0 %v1759
    %2342 = vmatprep.subr.bf16.mxu0 %v1768
    %2343 = vmatpush1.bf16.msra.mxu0 %v1767
    %2344 = vmatprep.mubr.bf16.mxu0 %v446
    %2345 = vmatmul.mubr.bf16.gmra.mrb[0].mxu0 %v445
    %v2346 = vpop.f32.mrb[0].mxu0
    %v2347 = vadd.f32 %v2306, %v2346
    %v2348 = vpop.f32.mrb[0].mxu0
    %v2349 = vadd.f32 %v2308, %v2348
    %v2350 = vpop.f32.mrb[0].mxu0
    %v2351 = vpop.f32.mrb[0].mxu0
    %2352 = vdwg.mxu0
    %v2353 = vmax.f32 %v2101, 0.0
    %v2354 = vmax.f32 %v2103, 0.0
    %v2355 = vmax.f32 %v2183, 0.0
    %v2356 = vmax.f32 %v2185, 0.0
    %v2357 = vmax.f32 %v2265, 0.0
    %v2358 = vmax.f32 %v2267, 0.0
    %v2359 = vmax.f32 %v2347, 0.0
    %v2360 = vmax.f32 %v2349, 0.0
    %v2361 = vpack.c.bf16 %v2353, %v2353
    %v2362 = vpack.c.bf16 %v2354, %v2354
    %v2363 = vpack.c.bf16 %v2355, %v2355
    %v2364 = vpack.c.bf16 %v2356, %v2356
    %v2365 = vpack.c.bf16 %v2357, %v2357
    %v2366 = vpack.c.bf16 %v2358, %v2358
    %v2367 = vpack.c.bf16 %v2359, %v2359
    %v2368 = vpack.c.bf16 %v2360, %v2360
    %v2369 = vld [vmem:[#allocation8] sm:$0xff]
    %v2370 = vld [vmem:[#allocation8 + $0x8] sm:$0xff]
    %v2371 = vld [vmem:[#allocation8 + $0x10] sm:$0xff]
    %v2372 = vld [vmem:[#allocation8 + $0x18] sm:$0xff]
    %v2373 = vld [vmem:[#allocation8 + $0x20] sm:$0xff]
    %v2374 = vld [vmem:[#allocation8 + $0x28] sm:$0xff]
    %v2375 = vld [vmem:[#allocation8 + $0x30] sm:$0xff]
    %v2376 = vld [vmem:[#allocation8 + $0x38] sm:$0xff]
    %v2377 = vld [vmem:[#allocation8 + $0x40] sm:$0xff]
    %v2378 = vld [vmem:[#allocation8 + $0x48] sm:$0xff]
    %v2379 = vld [vmem:[#allocation8 + $0x50] sm:$0xff]
    %v2380 = vld [vmem:[#allocation8 + $0x58] sm:$0xff]
    %v2381 = vld [vmem:[#allocation8 + $0x60] sm:$0xff]
    %v2382 = vld [vmem:[#allocation8 + $0x68] sm:$0xff]
    %v2383 = vld [vmem:[#allocation8 + $0x70] sm:$0xff]
    %v2384 = vld [vmem:[#allocation8 + $0x78] sm:$0xff]
    %v2385 = vld [vmem:[#allocation8 + $0x80] sm:$0xff]
    %v2386 = vld [vmem:[#allocation8 + $0x88] sm:$0xff]
    %v2387 = vld [vmem:[#allocation8 + $0x90] sm:$0xff]
    %v2388 = vld [vmem:[#allocation8 + $0x98] sm:$0xff]
    %v2389 = vld [vmem:[#allocation8 + $0xa0] sm:$0xff]
    %v2390 = vld [vmem:[#allocation8 + $0xa8] sm:$0xff]
    %v2391 = vld [vmem:[#allocation8 + $0xb0] sm:$0xff]
    %v2392 = vld [vmem:[#allocation8 + $0xb8] sm:$0xff]
    %v2393 = vld [vmem:[#allocation8 + $0xc0] sm:$0xff]
    %v2394 = vld [vmem:[#allocation8 + $0xc8] sm:$0xff]
    %v2395 = vld [vmem:[#allocation8 + $0xd0] sm:$0xff]
    %v2396 = vld [vmem:[#allocation8 + $0xd8] sm:$0xff]
    %v2397 = vld [vmem:[#allocation8 + $0xe0] sm:$0xff]
    %v2398 = vld [vmem:[#allocation8 + $0xe8] sm:$0xff]
    %v2399 = vld [vmem:[#allocation8 + $0xf0] sm:$0xff]
    %v2400 = vld [vmem:[#allocation8 + $0xf8] sm:$0xff]
    %v2401 = vld [vmem:[#allocation8 + $0x100] sm:$0xff]
    %v2402 = vld [vmem:[#allocation8 + $0x108] sm:$0xff]
    %v2403 = vld [vmem:[#allocation8 + $0x110] sm:$0xff]
    %v2404 = vld [vmem:[#allocation8 + $0x118] sm:$0xff]
    %v2405 = vld [vmem:[#allocation8 + $0x120] sm:$0xff]
    %v2406 = vld [vmem:[#allocation8 + $0x128] sm:$0xff]
    %v2407 = vld [vmem:[#allocation8 + $0x130] sm:$0xff]
    %v2408 = vld [vmem:[#allocation8 + $0x138] sm:$0xff]
    %v2409 = vld [vmem:[#allocation8 + $0x140] sm:$0xff]
    %v2410 = vld [vmem:[#allocation8 + $0x148] sm:$0xff]
    %v2411 = vld [vmem:[#allocation8 + $0x150] sm:$0xff]
    %v2412 = vld [vmem:[#allocation8 + $0x158] sm:$0xff]
    %v2413 = vld [vmem:[#allocation8 + $0x160] sm:$0xff]
    %v2414 = vld [vmem:[#allocation8 + $0x168] sm:$0xff]
    %v2415 = vld [vmem:[#allocation8 + $0x170] sm:$0xff]
    %v2416 = vld [vmem:[#allocation8 + $0x178] sm:$0xff]
    %v2417 = vld [vmem:[#allocation8 + $0x180] sm:$0xff]
    %v2418 = vld [vmem:[#allocation8 + $0x188] sm:$0xff]
    %v2419 = vld [vmem:[#allocation8 + $0x190] sm:$0xff]
    %v2420 = vld [vmem:[#allocation8 + $0x198] sm:$0xff]
    %v2421 = vld [vmem:[#allocation8 + $0x1a0] sm:$0xff]
    %v2422 = vld [vmem:[#allocation8 + $0x1a8] sm:$0xff]
    %v2423 = vld [vmem:[#allocation8 + $0x1b0] sm:$0xff]
    %v2424 = vld [vmem:[#allocation8 + $0x1b8] sm:$0xff]
    %v2425 = vld [vmem:[#allocation8 + $0x1c0] sm:$0xff]
    %v2426 = vld [vmem:[#allocation8 + $0x1c8] sm:$0xff]
    %v2427 = vld [vmem:[#allocation8 + $0x1d0] sm:$0xff]
    %v2428 = vld [vmem:[#allocation8 + $0x1d8] sm:$0xff]
    %v2429 = vld [vmem:[#allocation8 + $0x1e0] sm:$0xff]
    %v2430 = vld [vmem:[#allocation8 + $0x1e8] sm:$0xff]
    %v2431 = vld [vmem:[#allocation8 + $0x1f0] sm:$0xff]
    %v2432 = vld [vmem:[#allocation8 + $0x1f8] sm:$0xff]
    %v2433 = vld [vmem:[#allocation8 + $0x200] sm:$0xff]
    %v2434 = vld [vmem:[#allocation8 + $0x208] sm:$0xff]
    %v2435 = vld [vmem:[#allocation8 + $0x210] sm:$0xff]
    %v2436 = vld [vmem:[#allocation8 + $0x218] sm:$0xff]
    %v2437 = vld [vmem:[#allocation8 + $0x220] sm:$0xff]
    %v2438 = vld [vmem:[#allocation8 + $0x228] sm:$0xff]
    %v2439 = vld [vmem:[#allocation8 + $0x230] sm:$0xff]
    %v2440 = vld [vmem:[#allocation8 + $0x238] sm:$0xff]
    %v2441 = vld [vmem:[#allocation8 + $0x240] sm:$0xff]
    %v2442 = vld [vmem:[#allocation8 + $0x248] sm:$0xff]
    %v2443 = vld [vmem:[#allocation8 + $0x250] sm:$0xff]
    %v2444 = vld [vmem:[#allocation8 + $0x258] sm:$0xff]
    %v2445 = vld [vmem:[#allocation8 + $0x260] sm:$0xff]
    %v2446 = vld [vmem:[#allocation8 + $0x268] sm:$0xff]
    %v2447 = vld [vmem:[#allocation8 + $0x270] sm:$0xff]
    %v2448 = vld [vmem:[#allocation8 + $0x278] sm:$0xff]
    %v2449 = vld [vmem:[#allocation8 + $0x280] sm:$0xff]
    %v2450 = vld [vmem:[#allocation8 + $0x288] sm:$0xff]
    %v2451 = vld [vmem:[#allocation8 + $0x290] sm:$0xff]
    %v2452 = vld [vmem:[#allocation8 + $0x298] sm:$0xff]
    %v2453 = vld [vmem:[#allocation8 + $0x2a0] sm:$0xff]
    %v2454 = vld [vmem:[#allocation8 + $0x2a8] sm:$0xff]
    %v2455 = vld [vmem:[#allocation8 + $0x2b0] sm:$0xff]
    %v2456 = vld [vmem:[#allocation8 + $0x2b8] sm:$0xff]
    %v2457 = vld [vmem:[#allocation8 + $0x2c0] sm:$0xff]
    %v2458 = vld [vmem:[#allocation8 + $0x2c8] sm:$0xff]
    %v2459 = vld [vmem:[#allocation8 + $0x2d0] sm:$0xff]
    %v2460 = vld [vmem:[#allocation8 + $0x2d8] sm:$0xff]
    %v2461 = vld [vmem:[#allocation8 + $0x2e0] sm:$0xff]
    %v2462 = vld [vmem:[#allocation8 + $0x2e8] sm:$0xff]
    %v2463 = vld [vmem:[#allocation8 + $0x2f0] sm:$0xff]
    %v2464 = vld [vmem:[#allocation8 + $0x2f8] sm:$0xff]
    %v2465 = vld [vmem:[#allocation8 + $0x300] sm:$0xff]
    %v2466 = vld [vmem:[#allocation8 + $0x308] sm:$0xff]
    %v2467 = vld [vmem:[#allocation8 + $0x310] sm:$0xff]
    %v2468 = vld [vmem:[#allocation8 + $0x318] sm:$0xff]
    %v2469 = vld [vmem:[#allocation8 + $0x320] sm:$0xff]
    %v2470 = vld [vmem:[#allocation8 + $0x328] sm:$0xff]
    %v2471 = vld [vmem:[#allocation8 + $0x330] sm:$0xff]
    %v2472 = vld [vmem:[#allocation8 + $0x338] sm:$0xff]
    %v2473 = vld [vmem:[#allocation8 + $0x340] sm:$0xff]
    %v2474 = vld [vmem:[#allocation8 + $0x348] sm:$0xff]
    %v2475 = vld [vmem:[#allocation8 + $0x350] sm:$0xff]
    %v2476 = vld [vmem:[#allocation8 + $0x358] sm:$0xff]
    %v2477 = vld [vmem:[#allocation8 + $0x360] sm:$0xff]
    %v2478 = vld [vmem:[#allocation8 + $0x368] sm:$0xff]
    %v2479 = vld [vmem:[#allocation8 + $0x370] sm:$0xff]
    %v2480 = vld [vmem:[#allocation8 + $0x378] sm:$0xff]
    %v2481 = vld [vmem:[#allocation8 + $0x380] sm:$0xff]
    %v2482 = vld [vmem:[#allocation8 + $0x388] sm:$0xff]
    %v2483 = vld [vmem:[#allocation8 + $0x390] sm:$0xff]
    %v2484 = vld [vmem:[#allocation8 + $0x398] sm:$0xff]
    %v2485 = vld [vmem:[#allocation8 + $0x3a0] sm:$0xff]
    %v2486 = vld [vmem:[#allocation8 + $0x3a8] sm:$0xff]
    %v2487 = vld [vmem:[#allocation8 + $0x3b0] sm:$0xff]
    %v2488 = vld [vmem:[#allocation8 + $0x3b8] sm:$0xff]
    %v2489 = vld [vmem:[#allocation8 + $0x3c0] sm:$0xff]
    %v2490 = vld [vmem:[#allocation8 + $0x3c8] sm:$0xff]
    %v2491 = vld [vmem:[#allocation8 + $0x3d0] sm:$0xff]
    %v2492 = vld [vmem:[#allocation8 + $0x3d8] sm:$0xff]
    %v2493 = vld [vmem:[#allocation8 + $0x3e0] sm:$0xff]
    %v2494 = vld [vmem:[#allocation8 + $0x3e8] sm:$0xff]
    %v2495 = vld [vmem:[#allocation8 + $0x3f0] sm:$0xff]
    %v2496 = vld [vmem:[#allocation8 + $0x3f8] sm:$0xff]
    %v2497 = vld [vmem:[#allocation8 + $0x400] sm:$0xff]
    %v2498 = vld [vmem:[#allocation8 + $0x408] sm:$0xff]
    %v2499 = vld [vmem:[#allocation8 + $0x410] sm:$0xff]
    %v2500 = vld [vmem:[#allocation8 + $0x418] sm:$0xff]
    %v2501 = vld [vmem:[#allocation8 + $0x420] sm:$0xff]
    %v2502 = vld [vmem:[#allocation8 + $0x428] sm:$0xff]
    %v2503 = vld [vmem:[#allocation8 + $0x430] sm:$0xff]
    %v2504 = vld [vmem:[#allocation8 + $0x438] sm:$0xff]
    %v2505 = vld [vmem:[#allocation8 + $0x440] sm:$0xff]
    %v2506 = vld [vmem:[#allocation8 + $0x448] sm:$0xff]
    %v2507 = vld [vmem:[#allocation8 + $0x450] sm:$0xff]
    %v2508 = vld [vmem:[#allocation8 + $0x458] sm:$0xff]
    %v2509 = vld [vmem:[#allocation8 + $0x460] sm:$0xff]
    %v2510 = vld [vmem:[#allocation8 + $0x468] sm:$0xff]
    %v2511 = vld [vmem:[#allocation8 + $0x470] sm:$0xff]
    %v2512 = vld [vmem:[#allocation8 + $0x478] sm:$0xff]
    %v2513 = vld [vmem:[#allocation8 + $0x480] sm:$0xff]
    %v2514 = vld [vmem:[#allocation8 + $0x488] sm:$0xff]
    %v2515 = vld [vmem:[#allocation8 + $0x490] sm:$0xff]
    %v2516 = vld [vmem:[#allocation8 + $0x498] sm:$0xff]
    %v2517 = vld [vmem:[#allocation8 + $0x4a0] sm:$0xff]
    %v2518 = vld [vmem:[#allocation8 + $0x4a8] sm:$0xff]
    %v2519 = vld [vmem:[#allocation8 + $0x4b0] sm:$0xff]
    %v2520 = vld [vmem:[#allocation8 + $0x4b8] sm:$0xff]
    %v2521 = vld [vmem:[#allocation8 + $0x4c0] sm:$0xff]
    %v2522 = vld [vmem:[#allocation8 + $0x4c8] sm:$0xff]
    %v2523 = vld [vmem:[#allocation8 + $0x4d0] sm:$0xff]
    %v2524 = vld [vmem:[#allocation8 + $0x4d8] sm:$0xff]
    %v2525 = vld [vmem:[#allocation8 + $0x4e0] sm:$0xff]
    %v2526 = vld [vmem:[#allocation8 + $0x4e8] sm:$0xff]
    %v2527 = vld [vmem:[#allocation8 + $0x4f0] sm:$0xff]
    %v2528 = vld [vmem:[#allocation8 + $0x4f8] sm:$0xff]
    %v2529 = vld [vmem:[#allocation8 + $0x500] sm:$0xff]
    %v2530 = vld [vmem:[#allocation8 + $0x508] sm:$0xff]
    %v2531 = vld [vmem:[#allocation8 + $0x510] sm:$0xff]
    %v2532 = vld [vmem:[#allocation8 + $0x518] sm:$0xff]
    %v2533 = vld [vmem:[#allocation8 + $0x520] sm:$0xff]
    %v2534 = vld [vmem:[#allocation8 + $0x528] sm:$0xff]
    %v2535 = vld [vmem:[#allocation8 + $0x530] sm:$0xff]
    %v2536 = vld [vmem:[#allocation8 + $0x538] sm:$0xff]
    %v2537 = vld [vmem:[#allocation8 + $0x540] sm:$0xff]
    %v2538 = vld [vmem:[#allocation8 + $0x548] sm:$0xff]
    %v2539 = vld [vmem:[#allocation8 + $0x550] sm:$0xff]
    %v2540 = vld [vmem:[#allocation8 + $0x558] sm:$0xff]
    %v2541 = vld [vmem:[#allocation8 + $0x560] sm:$0xff]
    %v2542 = vld [vmem:[#allocation8 + $0x568] sm:$0xff]
    %v2543 = vld [vmem:[#allocation8 + $0x570] sm:$0xff]
    %v2544 = vld [vmem:[#allocation8 + $0x578] sm:$0xff]
    %v2545 = vld [vmem:[#allocation8 + $0x580] sm:$0xff]
    %v2546 = vld [vmem:[#allocation8 + $0x588] sm:$0xff]
    %v2547 = vld [vmem:[#allocation8 + $0x590] sm:$0xff]
    %v2548 = vld [vmem:[#allocation8 + $0x598] sm:$0xff]
    %v2549 = vld [vmem:[#allocation8 + $0x5a0] sm:$0xff]
    %v2550 = vld [vmem:[#allocation8 + $0x5a8] sm:$0xff]
    %v2551 = vld [vmem:[#allocation8 + $0x5b0] sm:$0xff]
    %v2552 = vld [vmem:[#allocation8 + $0x5b8] sm:$0xff]
    %v2553 = vld [vmem:[#allocation8 + $0x5c0] sm:$0xff]
    %v2554 = vld [vmem:[#allocation8 + $0x5c8] sm:$0xff]
    %v2555 = vld [vmem:[#allocation8 + $0x5d0] sm:$0xff]
    %v2556 = vld [vmem:[#allocation8 + $0x5d8] sm:$0xff]
    %v2557 = vld [vmem:[#allocation8 + $0x5e0] sm:$0xff]
    %v2558 = vld [vmem:[#allocation8 + $0x5e8] sm:$0xff]
    %v2559 = vld [vmem:[#allocation8 + $0x5f0] sm:$0xff]
    %v2560 = vld [vmem:[#allocation8 + $0x5f8] sm:$0xff]
    %v2561 = vld [vmem:[#allocation8 + $0x600] sm:$0xff]
    %v2562 = vld [vmem:[#allocation8 + $0x608] sm:$0xff]
    %v2563 = vld [vmem:[#allocation8 + $0x610] sm:$0xff]
    %v2564 = vld [vmem:[#allocation8 + $0x618] sm:$0xff]
    %v2565 = vld [vmem:[#allocation8 + $0x620] sm:$0xff]
    %v2566 = vld [vmem:[#allocation8 + $0x628] sm:$0xff]
    %v2567 = vld [vmem:[#allocation8 + $0x630] sm:$0xff]
    %v2568 = vld [vmem:[#allocation8 + $0x638] sm:$0xff]
    %v2569 = vld [vmem:[#allocation8 + $0x640] sm:$0xff]
    %v2570 = vld [vmem:[#allocation8 + $0x648] sm:$0xff]
    %v2571 = vld [vmem:[#allocation8 + $0x650] sm:$0xff]
    %v2572 = vld [vmem:[#allocation8 + $0x658] sm:$0xff]
    %v2573 = vld [vmem:[#allocation8 + $0x660] sm:$0xff]
    %v2574 = vld [vmem:[#allocation8 + $0x668] sm:$0xff]
    %v2575 = vld [vmem:[#allocation8 + $0x670] sm:$0xff]
    %v2576 = vld [vmem:[#allocation8 + $0x678] sm:$0xff]
    %v2577 = vld [vmem:[#allocation8 + $0x680] sm:$0xff]
    %v2578 = vld [vmem:[#allocation8 + $0x688] sm:$0xff]
    %v2579 = vld [vmem:[#allocation8 + $0x690] sm:$0xff]
    %v2580 = vld [vmem:[#allocation8 + $0x698] sm:$0xff]
    %v2581 = vld [vmem:[#allocation8 + $0x6a0] sm:$0xff]
    %v2582 = vld [vmem:[#allocation8 + $0x6a8] sm:$0xff]
    %v2583 = vld [vmem:[#allocation8 + $0x6b0] sm:$0xff]
    %v2584 = vld [vmem:[#allocation8 + $0x6b8] sm:$0xff]
    %v2585 = vld [vmem:[#allocation8 + $0x6c0] sm:$0xff]
    %v2586 = vld [vmem:[#allocation8 + $0x6c8] sm:$0xff]
    %v2587 = vld [vmem:[#allocation8 + $0x6d0] sm:$0xff]
    %v2588 = vld [vmem:[#allocation8 + $0x6d8] sm:$0xff]
    %v2589 = vld [vmem:[#allocation8 + $0x6e0] sm:$0xff]
    %v2590 = vld [vmem:[#allocation8 + $0x6e8] sm:$0xff]
    %v2591 = vld [vmem:[#allocation8 + $0x6f0] sm:$0xff]
    %v2592 = vld [vmem:[#allocation8 + $0x6f8] sm:$0xff]
    %v2593 = vld [vmem:[#allocation8 + $0x700] sm:$0xff]
    %v2594 = vld [vmem:[#allocation8 + $0x708] sm:$0xff]
    %v2595 = vld [vmem:[#allocation8 + $0x710] sm:$0xff]
    %v2596 = vld [vmem:[#allocation8 + $0x718] sm:$0xff]
    %v2597 = vld [vmem:[#allocation8 + $0x720] sm:$0xff]
    %v2598 = vld [vmem:[#allocation8 + $0x728] sm:$0xff]
    %v2599 = vld [vmem:[#allocation8 + $0x730] sm:$0xff]
    %v2600 = vld [vmem:[#allocation8 + $0x738] sm:$0xff]
    %v2601 = vld [vmem:[#allocation8 + $0x740] sm:$0xff]
    %v2602 = vld [vmem:[#allocation8 + $0x748] sm:$0xff]
    %v2603 = vld [vmem:[#allocation8 + $0x750] sm:$0xff]
    %v2604 = vld [vmem:[#allocation8 + $0x758] sm:$0xff]
    %v2605 = vld [vmem:[#allocation8 + $0x760] sm:$0xff]
    %v2606 = vld [vmem:[#allocation8 + $0x768] sm:$0xff]
    %v2607 = vld [vmem:[#allocation8 + $0x770] sm:$0xff]
    %v2608 = vld [vmem:[#allocation8 + $0x778] sm:$0xff]
    %v2609 = vld [vmem:[#allocation8 + $0x780] sm:$0xff]
    %v2610 = vld [vmem:[#allocation8 + $0x788] sm:$0xff]
    %v2611 = vld [vmem:[#allocation8 + $0x790] sm:$0xff]
    %v2612 = vld [vmem:[#allocation8 + $0x798] sm:$0xff]
    %v2613 = vld [vmem:[#allocation8 + $0x7a0] sm:$0xff]
    %v2614 = vld [vmem:[#allocation8 + $0x7a8] sm:$0xff]
    %v2615 = vld [vmem:[#allocation8 + $0x7b0] sm:$0xff]
    %v2616 = vld [vmem:[#allocation8 + $0x7b8] sm:$0xff]
    %v2617 = vld [vmem:[#allocation8 + $0x7c0] sm:$0xff]
    %v2618 = vld [vmem:[#allocation8 + $0x7c8] sm:$0xff]
    %v2619 = vld [vmem:[#allocation8 + $0x7d0] sm:$0xff]
    %v2620 = vld [vmem:[#allocation8 + $0x7d8] sm:$0xff]
    %v2621 = vld [vmem:[#allocation8 + $0x7e0] sm:$0xff]
    %v2622 = vld [vmem:[#allocation8 + $0x7e8] sm:$0xff]
    %v2623 = vld [vmem:[#allocation8 + $0x7f0] sm:$0xff]
    %v2624 = vld [vmem:[#allocation8 + $0x7f8] sm:$0xff]
    %v2625 = vld [vmem:[#allocation10] sm:$0xf]
    %v2627 = vlaneseq
    %v2628 = vshrl.u32 %v2627, 7
    %v2629 = vsub.s32 0, %v2628
    %v2630 = vrot.slane %v2625, %v2629
    %v2631 = vlaneseq
    %v2632 = vshrl.u32 %v2631, 7
    %v2633 = vsub.s32 1, %v2632
    %v2634 = vrot.slane %v2625, %v2633
    %v2635 = vlaneseq
    %v2636 = vshrl.u32 %v2635, 7
    %v2637 = vsub.s32 2, %v2636
    %v2638 = vrot.slane %v2625, %v2637
    %v2639 = vlaneseq
    %v2640 = vshrl.u32 %v2639, 7
    %v2641 = vsub.s32 3, %v2640
    %v2642 = vrot.slane %v2625, %v2641
    %v2903 = vunpack.c.l.b16 %v2369
    %v2904 = vunpack.c.h.b16 %v2369
    %v2905 = vunpack.c.l.b16 %v2370
    %v2906 = vunpack.c.h.b16 %v2370
    %v2907 = vunpack.c.l.b16 %v2371
    %v2908 = vunpack.c.h.b16 %v2371
    %v2909 = vunpack.c.l.b16 %v2372
    %v2910 = vunpack.c.h.b16 %v2372
    %v2911 = vunpack.c.l.b16 %v2373
    %v2912 = vunpack.c.h.b16 %v2373
    %v2913 = vunpack.c.l.b16 %v2374
    %v2914 = vunpack.c.h.b16 %v2374
    %v2915 = vunpack.c.l.b16 %v2375
    %v2916 = vunpack.c.h.b16 %v2375
    %v2917 = vunpack.c.l.b16 %v2376
    %v2918 = vunpack.c.h.b16 %v2376
    %v2919 = vunpack.c.l.b16 %v2377
    %v2920 = vunpack.c.h.b16 %v2377
    %v2921 = vunpack.c.l.b16 %v2378
    %v2922 = vunpack.c.h.b16 %v2378
    %v2923 = vunpack.c.l.b16 %v2379
    %v2924 = vunpack.c.h.b16 %v2379
    %v2925 = vunpack.c.l.b16 %v2380
    %v2926 = vunpack.c.h.b16 %v2380
    %v2927 = vunpack.c.l.b16 %v2381
    %v2928 = vunpack.c.h.b16 %v2381
    %v2929 = vunpack.c.l.b16 %v2382
    %v2930 = vunpack.c.h.b16 %v2382
    %v2931 = vunpack.c.l.b16 %v2383
    %v2932 = vunpack.c.h.b16 %v2383
    %v2933 = vunpack.c.l.b16 %v2384
    %v2934 = vunpack.c.h.b16 %v2384
    %v2935 = vunpack.c.l.b16 %v2385
    %v2936 = vunpack.c.h.b16 %v2385
    %v2937 = vunpack.c.l.b16 %v2386
    %v2938 = vunpack.c.h.b16 %v2386
    %v2939 = vunpack.c.l.b16 %v2387
    %v2940 = vunpack.c.h.b16 %v2387
    %v2941 = vunpack.c.l.b16 %v2388
    %v2942 = vunpack.c.h.b16 %v2388
    %v2943 = vunpack.c.l.b16 %v2389
    %v2944 = vunpack.c.h.b16 %v2389
    %v2945 = vunpack.c.l.b16 %v2390
    %v2946 = vunpack.c.h.b16 %v2390
    %v2947 = vunpack.c.l.b16 %v2391
    %v2948 = vunpack.c.h.b16 %v2391
    %v2949 = vunpack.c.l.b16 %v2392
    %v2950 = vunpack.c.h.b16 %v2392
    %v2951 = vunpack.c.l.b16 %v2393
    %v2952 = vunpack.c.h.b16 %v2393
    %v2953 = vunpack.c.l.b16 %v2394
    %v2954 = vunpack.c.h.b16 %v2394
    %v2955 = vunpack.c.l.b16 %v2395
    %v2956 = vunpack.c.h.b16 %v2395
    %v2957 = vunpack.c.l.b16 %v2396
    %v2958 = vunpack.c.h.b16 %v2396
    %v2959 = vunpack.c.l.b16 %v2397
    %v2960 = vunpack.c.h.b16 %v2397
    %v2961 = vunpack.c.l.b16 %v2398
    %v2962 = vunpack.c.h.b16 %v2398
    %v2963 = vunpack.c.l.b16 %v2399
    %v2964 = vunpack.c.h.b16 %v2399
    %v2965 = vunpack.c.l.b16 %v2400
    %v2966 = vunpack.c.h.b16 %v2400
    %v2967 = vunpack.c.l.b16 %v2401
    %v2968 = vunpack.c.h.b16 %v2401
    %v2969 = vunpack.c.l.b16 %v2402
    %v2970 = vunpack.c.h.b16 %v2402
    %v2971 = vunpack.c.l.b16 %v2403
    %v2972 = vunpack.c.h.b16 %v2403
    %v2973 = vunpack.c.l.b16 %v2404
    %v2974 = vunpack.c.h.b16 %v2404
    %v2975 = vunpack.c.l.b16 %v2405
    %v2976 = vunpack.c.h.b16 %v2405
    %v2977 = vunpack.c.l.b16 %v2406
    %v2978 = vunpack.c.h.b16 %v2406
    %v2979 = vunpack.c.l.b16 %v2407
    %v2980 = vunpack.c.h.b16 %v2407
    %v2981 = vunpack.c.l.b16 %v2408
    %v2982 = vunpack.c.h.b16 %v2408
    %v2983 = vunpack.c.l.b16 %v2409
    %v2984 = vunpack.c.h.b16 %v2409
    %v2985 = vunpack.c.l.b16 %v2410
    %v2986 = vunpack.c.h.b16 %v2410
    %v2987 = vunpack.c.l.b16 %v2411
    %v2988 = vunpack.c.h.b16 %v2411
    %v2989 = vunpack.c.l.b16 %v2412
    %v2990 = vunpack.c.h.b16 %v2412
    %v2991 = vunpack.c.l.b16 %v2413
    %v2992 = vunpack.c.h.b16 %v2413
    %v2993 = vunpack.c.l.b16 %v2414
    %v2994 = vunpack.c.h.b16 %v2414
    %v2995 = vunpack.c.l.b16 %v2415
    %v2996 = vunpack.c.h.b16 %v2415
    %v2997 = vunpack.c.l.b16 %v2416
    %v2998 = vunpack.c.h.b16 %v2416
    %v2999 = vunpack.c.l.b16 %v2417
    %v3000 = vunpack.c.h.b16 %v2417
    %v3001 = vunpack.c.l.b16 %v2418
    %v3002 = vunpack.c.h.b16 %v2418
    %v3003 = vunpack.c.l.b16 %v2419
    %v3004 = vunpack.c.h.b16 %v2419
    %v3005 = vunpack.c.l.b16 %v2420
    %v3006 = vunpack.c.h.b16 %v2420
    %v3007 = vunpack.c.l.b16 %v2421
    %v3008 = vunpack.c.h.b16 %v2421
    %v3009 = vunpack.c.l.b16 %v2422
    %v3010 = vunpack.c.h.b16 %v2422
    %v3011 = vunpack.c.l.b16 %v2423
    %v3012 = vunpack.c.h.b16 %v2423
    %v3013 = vunpack.c.l.b16 %v2424
    %v3014 = vunpack.c.h.b16 %v2424
    %v3015 = vunpack.c.l.b16 %v2425
    %v3016 = vunpack.c.h.b16 %v2425
    %v3017 = vunpack.c.l.b16 %v2426
    %v3018 = vunpack.c.h.b16 %v2426
    %v3019 = vunpack.c.l.b16 %v2427
    %v3020 = vunpack.c.h.b16 %v2427
    %v3021 = vunpack.c.l.b16 %v2428
    %v3022 = vunpack.c.h.b16 %v2428
    %v3023 = vunpack.c.l.b16 %v2429
    %v3024 = vunpack.c.h.b16 %v2429
    %v3025 = vunpack.c.l.b16 %v2430
    %v3026 = vunpack.c.h.b16 %v2430
    %v3027 = vunpack.c.l.b16 %v2431
    %v3028 = vunpack.c.h.b16 %v2431
    %v3029 = vunpack.c.l.b16 %v2432
    %v3030 = vunpack.c.h.b16 %v2432
    %v3031 = vunpack.c.l.b16 %v2433
    %v3032 = vunpack.c.h.b16 %v2433
    %v3033 = vunpack.c.l.b16 %v2434
    %v3034 = vunpack.c.h.b16 %v2434
    %v3035 = vunpack.c.l.b16 %v2435
    %v3036 = vunpack.c.h.b16 %v2435
    %v3037 = vunpack.c.l.b16 %v2436
    %v3038 = vunpack.c.h.b16 %v2436
    %v3039 = vunpack.c.l.b16 %v2437
    %v3040 = vunpack.c.h.b16 %v2437
    %v3041 = vunpack.c.l.b16 %v2438
    %v3042 = vunpack.c.h.b16 %v2438
    %v3043 = vunpack.c.l.b16 %v2439
    %v3044 = vunpack.c.h.b16 %v2439
    %v3045 = vunpack.c.l.b16 %v2440
    %v3046 = vunpack.c.h.b16 %v2440
    %v3047 = vunpack.c.l.b16 %v2441
    %v3048 = vunpack.c.h.b16 %v2441
    %v3049 = vunpack.c.l.b16 %v2442
    %v3050 = vunpack.c.h.b16 %v2442
    %v3051 = vunpack.c.l.b16 %v2443
    %v3052 = vunpack.c.h.b16 %v2443
    %v3053 = vunpack.c.l.b16 %v2444
    %v3054 = vunpack.c.h.b16 %v2444
    %v3055 = vunpack.c.l.b16 %v2445
    %v3056 = vunpack.c.h.b16 %v2445
    %v3057 = vunpack.c.l.b16 %v2446
    %v3058 = vunpack.c.h.b16 %v2446
    %v3059 = vunpack.c.l.b16 %v2447
    %v3060 = vunpack.c.h.b16 %v2447
    %v3061 = vunpack.c.l.b16 %v2448
    %v3062 = vunpack.c.h.b16 %v2448
    %v3063 = vunpack.c.l.b16 %v2449
    %v3064 = vunpack.c.h.b16 %v2449
    %v3065 = vunpack.c.l.b16 %v2450
    %v3066 = vunpack.c.h.b16 %v2450
    %v3067 = vunpack.c.l.b16 %v2451
    %v3068 = vunpack.c.h.b16 %v2451
    %v3069 = vunpack.c.l.b16 %v2452
    %v3070 = vunpack.c.h.b16 %v2452
    %v3071 = vunpack.c.l.b16 %v2453
    %v3072 = vunpack.c.h.b16 %v2453
    %v3073 = vunpack.c.l.b16 %v2454
    %v3074 = vunpack.c.h.b16 %v2454
    %v3075 = vunpack.c.l.b16 %v2455
    %v3076 = vunpack.c.h.b16 %v2455
    %v3077 = vunpack.c.l.b16 %v2456
    %v3078 = vunpack.c.h.b16 %v2456
    %v3079 = vunpack.c.l.b16 %v2457
    %v3080 = vunpack.c.h.b16 %v2457
    %v3081 = vunpack.c.l.b16 %v2458
    %v3082 = vunpack.c.h.b16 %v2458
    %v3083 = vunpack.c.l.b16 %v2459
    %v3084 = vunpack.c.h.b16 %v2459
    %v3085 = vunpack.c.l.b16 %v2460
    %v3086 = vunpack.c.h.b16 %v2460
    %v3087 = vunpack.c.l.b16 %v2461
    %v3088 = vunpack.c.h.b16 %v2461
    %v3089 = vunpack.c.l.b16 %v2462
    %v3090 = vunpack.c.h.b16 %v2462
    %v3091 = vunpack.c.l.b16 %v2463
    %v3092 = vunpack.c.h.b16 %v2463
    %v3093 = vunpack.c.l.b16 %v2464
    %v3094 = vunpack.c.h.b16 %v2464
    %v3095 = vunpack.c.l.b16 %v2465
    %v3096 = vunpack.c.h.b16 %v2465
    %v3097 = vunpack.c.l.b16 %v2466
    %v3098 = vunpack.c.h.b16 %v2466
    %v3099 = vunpack.c.l.b16 %v2467
    %v3100 = vunpack.c.h.b16 %v2467
    %v3101 = vunpack.c.l.b16 %v2468
    %v3102 = vunpack.c.h.b16 %v2468
    %v3103 = vunpack.c.l.b16 %v2469
    %v3104 = vunpack.c.h.b16 %v2469
    %v3105 = vunpack.c.l.b16 %v2470
    %v3106 = vunpack.c.h.b16 %v2470
    %v3107 = vunpack.c.l.b16 %v2471
    %v3108 = vunpack.c.h.b16 %v2471
    %v3109 = vunpack.c.l.b16 %v2472
    %v3110 = vunpack.c.h.b16 %v2472
    %v3111 = vunpack.c.l.b16 %v2473
    %v3112 = vunpack.c.h.b16 %v2473
    %v3113 = vunpack.c.l.b16 %v2474
    %v3114 = vunpack.c.h.b16 %v2474
    %v3115 = vunpack.c.l.b16 %v2475
    %v3116 = vunpack.c.h.b16 %v2475
    %v3117 = vunpack.c.l.b16 %v2476
    %v3118 = vunpack.c.h.b16 %v2476
    %v3119 = vunpack.c.l.b16 %v2477
    %v3120 = vunpack.c.h.b16 %v2477
    %v3121 = vunpack.c.l.b16 %v2478
    %v3122 = vunpack.c.h.b16 %v2478
    %v3123 = vunpack.c.l.b16 %v2479
    %v3124 = vunpack.c.h.b16 %v2479
    %v3125 = vunpack.c.l.b16 %v2480
    %v3126 = vunpack.c.h.b16 %v2480
    %v3127 = vunpack.c.l.b16 %v2481
    %v3128 = vunpack.c.h.b16 %v2481
    %v3129 = vunpack.c.l.b16 %v2482
    %v3130 = vunpack.c.h.b16 %v2482
    %v3131 = vunpack.c.l.b16 %v2483
    %v3132 = vunpack.c.h.b16 %v2483
    %v3133 = vunpack.c.l.b16 %v2484
    %v3134 = vunpack.c.h.b16 %v2484
    %v3135 = vunpack.c.l.b16 %v2485
    %v3136 = vunpack.c.h.b16 %v2485
    %v3137 = vunpack.c.l.b16 %v2486
    %v3138 = vunpack.c.h.b16 %v2486
    %v3139 = vunpack.c.l.b16 %v2487
    %v3140 = vunpack.c.h.b16 %v2487
    %v3141 = vunpack.c.l.b16 %v2488
    %v3142 = vunpack.c.h.b16 %v2488
    %v3143 = vunpack.c.l.b16 %v2489
    %v3144 = vunpack.c.h.b16 %v2489
    %v3145 = vunpack.c.l.b16 %v2490
    %v3146 = vunpack.c.h.b16 %v2490
    %v3147 = vunpack.c.l.b16 %v2491
    %v3148 = vunpack.c.h.b16 %v2491
    %v3149 = vunpack.c.l.b16 %v2492
    %v3150 = vunpack.c.h.b16 %v2492
    %v3151 = vunpack.c.l.b16 %v2493
    %v3152 = vunpack.c.h.b16 %v2493
    %v3153 = vunpack.c.l.b16 %v2494
    %v3154 = vunpack.c.h.b16 %v2494
    %v3155 = vunpack.c.l.b16 %v2495
    %v3156 = vunpack.c.h.b16 %v2495
    %v3157 = vunpack.c.l.b16 %v2496
    %v3158 = vunpack.c.h.b16 %v2496
    %v3159 = vunpack.c.l.b16 %v2497
    %v3160 = vunpack.c.h.b16 %v2497
    %v3161 = vunpack.c.l.b16 %v2498
    %v3162 = vunpack.c.h.b16 %v2498
    %v3163 = vunpack.c.l.b16 %v2499
    %v3164 = vunpack.c.h.b16 %v2499
    %v3165 = vunpack.c.l.b16 %v2500
    %v3166 = vunpack.c.h.b16 %v2500
    %v3167 = vunpack.c.l.b16 %v2501
    %v3168 = vunpack.c.h.b16 %v2501
    %v3169 = vunpack.c.l.b16 %v2502
    %v3170 = vunpack.c.h.b16 %v2502
    %v3171 = vunpack.c.l.b16 %v2503
    %v3172 = vunpack.c.h.b16 %v2503
    %v3173 = vunpack.c.l.b16 %v2504
    %v3174 = vunpack.c.h.b16 %v2504
    %v3175 = vunpack.c.l.b16 %v2505
    %v3176 = vunpack.c.h.b16 %v2505
    %v3177 = vunpack.c.l.b16 %v2506
    %v3178 = vunpack.c.h.b16 %v2506
    %v3179 = vunpack.c.l.b16 %v2507
    %v3180 = vunpack.c.h.b16 %v2507
    %v3181 = vunpack.c.l.b16 %v2508
    %v3182 = vunpack.c.h.b16 %v2508
    %v3183 = vunpack.c.l.b16 %v2509
    %v3184 = vunpack.c.h.b16 %v2509
    %v3185 = vunpack.c.l.b16 %v2510
    %v3186 = vunpack.c.h.b16 %v2510
    %v3187 = vunpack.c.l.b16 %v2511
    %v3188 = vunpack.c.h.b16 %v2511
    %v3189 = vunpack.c.l.b16 %v2512
    %v3190 = vunpack.c.h.b16 %v2512
    %v3191 = vunpack.c.l.b16 %v2513
    %v3192 = vunpack.c.h.b16 %v2513
    %v3193 = vunpack.c.l.b16 %v2514
    %v3194 = vunpack.c.h.b16 %v2514
    %v3195 = vunpack.c.l.b16 %v2515
    %v3196 = vunpack.c.h.b16 %v2515
    %v3197 = vunpack.c.l.b16 %v2516
    %v3198 = vunpack.c.h.b16 %v2516
    %v3199 = vunpack.c.l.b16 %v2517
    %v3200 = vunpack.c.h.b16 %v2517
    %v3201 = vunpack.c.l.b16 %v2518
    %v3202 = vunpack.c.h.b16 %v2518
    %v3203 = vunpack.c.l.b16 %v2519
    %v3204 = vunpack.c.h.b16 %v2519
    %v3205 = vunpack.c.l.b16 %v2520
    %v3206 = vunpack.c.h.b16 %v2520
    %v3207 = vunpack.c.l.b16 %v2521
    %v3208 = vunpack.c.h.b16 %v2521
    %v3209 = vunpack.c.l.b16 %v2522
    %v3210 = vunpack.c.h.b16 %v2522
    %v3211 = vunpack.c.l.b16 %v2523
    %v3212 = vunpack.c.h.b16 %v2523
    %v3213 = vunpack.c.l.b16 %v2524
    %v3214 = vunpack.c.h.b16 %v2524
    %v3215 = vunpack.c.l.b16 %v2525
    %v3216 = vunpack.c.h.b16 %v2525
    %v3217 = vunpack.c.l.b16 %v2526
    %v3218 = vunpack.c.h.b16 %v2526
    %v3219 = vunpack.c.l.b16 %v2527
    %v3220 = vunpack.c.h.b16 %v2527
    %v3221 = vunpack.c.l.b16 %v2528
    %v3222 = vunpack.c.h.b16 %v2528
    %v3223 = vunpack.c.l.b16 %v2529
    %v3224 = vunpack.c.h.b16 %v2529
    %v3225 = vunpack.c.l.b16 %v2530
    %v3226 = vunpack.c.h.b16 %v2530
    %v3227 = vunpack.c.l.b16 %v2531
    %v3228 = vunpack.c.h.b16 %v2531
    %v3229 = vunpack.c.l.b16 %v2532
    %v3230 = vunpack.c.h.b16 %v2532
    %v3231 = vunpack.c.l.b16 %v2533
    %v3232 = vunpack.c.h.b16 %v2533
    %v3233 = vunpack.c.l.b16 %v2534
    %v3234 = vunpack.c.h.b16 %v2534
    %v3235 = vunpack.c.l.b16 %v2535
    %v3236 = vunpack.c.h.b16 %v2535
    %v3237 = vunpack.c.l.b16 %v2536
    %v3238 = vunpack.c.h.b16 %v2536
    %v3239 = vunpack.c.l.b16 %v2537
    %v3240 = vunpack.c.h.b16 %v2537
    %v3241 = vunpack.c.l.b16 %v2538
    %v3242 = vunpack.c.h.b16 %v2538
    %v3243 = vunpack.c.l.b16 %v2539
    %v3244 = vunpack.c.h.b16 %v2539
    %v3245 = vunpack.c.l.b16 %v2540
    %v3246 = vunpack.c.h.b16 %v2540
    %v3247 = vunpack.c.l.b16 %v2541
    %v3248 = vunpack.c.h.b16 %v2541
    %v3249 = vunpack.c.l.b16 %v2542
    %v3250 = vunpack.c.h.b16 %v2542
    %v3251 = vunpack.c.l.b16 %v2543
    %v3252 = vunpack.c.h.b16 %v2543
    %v3253 = vunpack.c.l.b16 %v2544
    %v3254 = vunpack.c.h.b16 %v2544
    %v3255 = vunpack.c.l.b16 %v2545
    %v3256 = vunpack.c.h.b16 %v2545
    %v3257 = vunpack.c.l.b16 %v2546
    %v3258 = vunpack.c.h.b16 %v2546
    %v3259 = vunpack.c.l.b16 %v2547
    %v3260 = vunpack.c.h.b16 %v2547
    %v3261 = vunpack.c.l.b16 %v2548
    %v3262 = vunpack.c.h.b16 %v2548
    %v3263 = vunpack.c.l.b16 %v2549
    %v3264 = vunpack.c.h.b16 %v2549
    %v3265 = vunpack.c.l.b16 %v2550
    %v3266 = vunpack.c.h.b16 %v2550
    %v3267 = vunpack.c.l.b16 %v2551
    %v3268 = vunpack.c.h.b16 %v2551
    %v3269 = vunpack.c.l.b16 %v2552
    %v3270 = vunpack.c.h.b16 %v2552
    %v3271 = vunpack.c.l.b16 %v2553
    %v3272 = vunpack.c.h.b16 %v2553
    %v3273 = vunpack.c.l.b16 %v2554
    %v3274 = vunpack.c.h.b16 %v2554
    %v3275 = vunpack.c.l.b16 %v2555
    %v3276 = vunpack.c.h.b16 %v2555
    %v3277 = vunpack.c.l.b16 %v2556
    %v3278 = vunpack.c.h.b16 %v2556
    %v3279 = vunpack.c.l.b16 %v2557
    %v3280 = vunpack.c.h.b16 %v2557
    %v3281 = vunpack.c.l.b16 %v2558
    %v3282 = vunpack.c.h.b16 %v2558
    %v3283 = vunpack.c.l.b16 %v2559
    %v3284 = vunpack.c.h.b16 %v2559
    %v3285 = vunpack.c.l.b16 %v2560
    %v3286 = vunpack.c.h.b16 %v2560
    %v3287 = vunpack.c.l.b16 %v2561
    %v3288 = vunpack.c.h.b16 %v2561
    %v3289 = vunpack.c.l.b16 %v2562
    %v3290 = vunpack.c.h.b16 %v2562
    %v3291 = vunpack.c.l.b16 %v2563
    %v3292 = vunpack.c.h.b16 %v2563
    %v3293 = vunpack.c.l.b16 %v2564
    %v3294 = vunpack.c.h.b16 %v2564
    %v3295 = vunpack.c.l.b16 %v2565
    %v3296 = vunpack.c.h.b16 %v2565
    %v3297 = vunpack.c.l.b16 %v2566
    %v3298 = vunpack.c.h.b16 %v2566
    %v3299 = vunpack.c.l.b16 %v2567
    %v3300 = vunpack.c.h.b16 %v2567
    %v3301 = vunpack.c.l.b16 %v2568
    %v3302 = vunpack.c.h.b16 %v2568
    %v3303 = vunpack.c.l.b16 %v2569
    %v3304 = vunpack.c.h.b16 %v2569
    %v3305 = vunpack.c.l.b16 %v2570
    %v3306 = vunpack.c.h.b16 %v2570
    %v3307 = vunpack.c.l.b16 %v2571
    %v3308 = vunpack.c.h.b16 %v2571
    %v3309 = vunpack.c.l.b16 %v2572
    %v3310 = vunpack.c.h.b16 %v2572
    %v3311 = vunpack.c.l.b16 %v2573
    %v3312 = vunpack.c.h.b16 %v2573
    %v3313 = vunpack.c.l.b16 %v2574
    %v3314 = vunpack.c.h.b16 %v2574
    %v3315 = vunpack.c.l.b16 %v2575
    %v3316 = vunpack.c.h.b16 %v2575
    %v3317 = vunpack.c.l.b16 %v2576
    %v3318 = vunpack.c.h.b16 %v2576
    %v3319 = vunpack.c.l.b16 %v2577
    %v3320 = vunpack.c.h.b16 %v2577
    %v3321 = vunpack.c.l.b16 %v2578
    %v3322 = vunpack.c.h.b16 %v2578
    %v3323 = vunpack.c.l.b16 %v2579
    %v3324 = vunpack.c.h.b16 %v2579
    %v3325 = vunpack.c.l.b16 %v2580
    %v3326 = vunpack.c.h.b16 %v2580
    %v3327 = vunpack.c.l.b16 %v2581
    %v3328 = vunpack.c.h.b16 %v2581
    %v3329 = vunpack.c.l.b16 %v2582
    %v3330 = vunpack.c.h.b16 %v2582
    %v3331 = vunpack.c.l.b16 %v2583
    %v3332 = vunpack.c.h.b16 %v2583
    %v3333 = vunpack.c.l.b16 %v2584
    %v3334 = vunpack.c.h.b16 %v2584
    %v3335 = vunpack.c.l.b16 %v2585
    %v3336 = vunpack.c.h.b16 %v2585
    %v3337 = vunpack.c.l.b16 %v2586
    %v3338 = vunpack.c.h.b16 %v2586
    %v3339 = vunpack.c.l.b16 %v2587
    %v3340 = vunpack.c.h.b16 %v2587
    %v3341 = vunpack.c.l.b16 %v2588
    %v3342 = vunpack.c.h.b16 %v2588
    %v3343 = vunpack.c.l.b16 %v2589
    %v3344 = vunpack.c.h.b16 %v2589
    %v3345 = vunpack.c.l.b16 %v2590
    %v3346 = vunpack.c.h.b16 %v2590
    %v3347 = vunpack.c.l.b16 %v2591
    %v3348 = vunpack.c.h.b16 %v2591
    %v3349 = vunpack.c.l.b16 %v2592
    %v3350 = vunpack.c.h.b16 %v2592
    %v3351 = vunpack.c.l.b16 %v2593
    %v3352 = vunpack.c.h.b16 %v2593
    %v3353 = vunpack.c.l.b16 %v2594
    %v3354 = vunpack.c.h.b16 %v2594
    %v3355 = vunpack.c.l.b16 %v2595
    %v3356 = vunpack.c.h.b16 %v2595
    %v3357 = vunpack.c.l.b16 %v2596
    %v3358 = vunpack.c.h.b16 %v2596
    %v3359 = vunpack.c.l.b16 %v2597
    %v3360 = vunpack.c.h.b16 %v2597
    %v3361 = vunpack.c.l.b16 %v2598
    %v3362 = vunpack.c.h.b16 %v2598
    %v3363 = vunpack.c.l.b16 %v2599
    %v3364 = vunpack.c.h.b16 %v2599
    %v3365 = vunpack.c.l.b16 %v2600
    %v3366 = vunpack.c.h.b16 %v2600
    %v3367 = vunpack.c.l.b16 %v2601
    %v3368 = vunpack.c.h.b16 %v2601
    %v3369 = vunpack.c.l.b16 %v2602
    %v3370 = vunpack.c.h.b16 %v2602
    %v3371 = vunpack.c.l.b16 %v2603
    %v3372 = vunpack.c.h.b16 %v2603
    %v3373 = vunpack.c.l.b16 %v2604
    %v3374 = vunpack.c.h.b16 %v2604
    %v3375 = vunpack.c.l.b16 %v2605
    %v3376 = vunpack.c.h.b16 %v2605
    %v3377 = vunpack.c.l.b16 %v2606
    %v3378 = vunpack.c.h.b16 %v2606
    %v3379 = vunpack.c.l.b16 %v2607
    %v3380 = vunpack.c.h.b16 %v2607
    %v3381 = vunpack.c.l.b16 %v2608
    %v3382 = vunpack.c.h.b16 %v2608
    %v3383 = vunpack.c.l.b16 %v2609
    %v3384 = vunpack.c.h.b16 %v2609
    %v3385 = vunpack.c.l.b16 %v2610
    %v3386 = vunpack.c.h.b16 %v2610
    %v3387 = vunpack.c.l.b16 %v2611
    %v3388 = vunpack.c.h.b16 %v2611
    %v3389 = vunpack.c.l.b16 %v2612
    %v3390 = vunpack.c.h.b16 %v2612
    %v3391 = vunpack.c.l.b16 %v2613
    %v3392 = vunpack.c.h.b16 %v2613
    %v3393 = vunpack.c.l.b16 %v2614
    %v3394 = vunpack.c.h.b16 %v2614
    %v3395 = vunpack.c.l.b16 %v2615
    %v3396 = vunpack.c.h.b16 %v2615
    %v3397 = vunpack.c.l.b16 %v2616
    %v3398 = vunpack.c.h.b16 %v2616
    %v3399 = vunpack.c.l.b16 %v2617
    %v3400 = vunpack.c.h.b16 %v2617
    %v3401 = vunpack.c.l.b16 %v2618
    %v3402 = vunpack.c.h.b16 %v2618
    %v3403 = vunpack.c.l.b16 %v2619
    %v3404 = vunpack.c.h.b16 %v2619
    %v3405 = vunpack.c.l.b16 %v2620
    %v3406 = vunpack.c.h.b16 %v2620
    %v3407 = vunpack.c.l.b16 %v2621
    %v3408 = vunpack.c.h.b16 %v2621
    %v3409 = vunpack.c.l.b16 %v2622
    %v3410 = vunpack.c.h.b16 %v2622
    %v3411 = vunpack.c.l.b16 %v2623
    %v3412 = vunpack.c.h.b16 %v2623
    %v3413 = vunpack.c.l.b16 %v2624
    %v3414 = vunpack.c.h.b16 %v2624
    %v3415 = vpack.c.b16 %v2907, %v2903
    %v3416 = vpack.c.b16 %v2908, %v2904
    %v3417 = vpack.c.b16 %v2909, %v2905
    %v3418 = vpack.c.b16 %v2910, %v2906
    %v3419 = vpack.c.b16 %v2915, %v2911
    %v3420 = vpack.c.b16 %v2916, %v2912
    %v3421 = vpack.c.b16 %v2917, %v2913
    %v3422 = vpack.c.b16 %v2918, %v2914
    %v3423 = vpack.c.b16 %v2923, %v2919
    %v3424 = vpack.c.b16 %v2924, %v2920
    %v3425 = vpack.c.b16 %v2925, %v2921
    %v3426 = vpack.c.b16 %v2926, %v2922
    %v3427 = vpack.c.b16 %v2931, %v2927
    %v3428 = vpack.c.b16 %v2932, %v2928
    %v3429 = vpack.c.b16 %v2933, %v2929
    %v3430 = vpack.c.b16 %v2934, %v2930
    %v3431 = vpack.c.b16 %v2939, %v2935
    %v3432 = vpack.c.b16 %v2940, %v2936
    %v3433 = vpack.c.b16 %v2941, %v2937
    %v3434 = vpack.c.b16 %v2942, %v2938
    %v3435 = vpack.c.b16 %v2947, %v2943
    %v3436 = vpack.c.b16 %v2948, %v2944
    %v3437 = vpack.c.b16 %v2949, %v2945
    %v3438 = vpack.c.b16 %v2950, %v2946
    %v3439 = vpack.c.b16 %v2955, %v2951
    %v3440 = vpack.c.b16 %v2956, %v2952
    %v3441 = vpack.c.b16 %v2957, %v2953
    %v3442 = vpack.c.b16 %v2958, %v2954
    %v3443 = vpack.c.b16 %v2963, %v2959
    %v3444 = vpack.c.b16 %v2964, %v2960
    %v3445 = vpack.c.b16 %v2965, %v2961
    %v3446 = vpack.c.b16 %v2966, %v2962
    %v3447 = vpack.c.b16 %v2971, %v2967
    %v3448 = vpack.c.b16 %v2972, %v2968
    %v3449 = vpack.c.b16 %v2973, %v2969
    %v3450 = vpack.c.b16 %v2974, %v2970
    %v3451 = vpack.c.b16 %v2979, %v2975
    %v3452 = vpack.c.b16 %v2980, %v2976
    %v3453 = vpack.c.b16 %v2981, %v2977
    %v3454 = vpack.c.b16 %v2982, %v2978
    %v3455 = vpack.c.b16 %v2987, %v2983
    %v3456 = vpack.c.b16 %v2988, %v2984
    %v3457 = vpack.c.b16 %v2989, %v2985
    %v3458 = vpack.c.b16 %v2990, %v2986
    %v3459 = vpack.c.b16 %v2995, %v2991
    %v3460 = vpack.c.b16 %v2996, %v2992
    %v3461 = vpack.c.b16 %v2997, %v2993
    %v3462 = vpack.c.b16 %v2998, %v2994
    %v3463 = vpack.c.b16 %v3003, %v2999
    %v3464 = vpack.c.b16 %v3004, %v3000
    %v3465 = vpack.c.b16 %v3005, %v3001
    %v3466 = vpack.c.b16 %v3006, %v3002
    %v3467 = vpack.c.b16 %v3011, %v3007
    %v3468 = vpack.c.b16 %v3012, %v3008
    %v3469 = vpack.c.b16 %v3013, %v3009
    %v3470 = vpack.c.b16 %v3014, %v3010
    %v3471 = vpack.c.b16 %v3019, %v3015
    %v3472 = vpack.c.b16 %v3020, %v3016
    %v3473 = vpack.c.b16 %v3021, %v3017
    %v3474 = vpack.c.b16 %v3022, %v3018
    %v3475 = vpack.c.b16 %v3027, %v3023
    %v3476 = vpack.c.b16 %v3028, %v3024
    %v3477 = vpack.c.b16 %v3029, %v3025
    %v3478 = vpack.c.b16 %v3030, %v3026
    %v3479 = vpack.c.b16 %v3035, %v3031
    %v3480 = vpack.c.b16 %v3036, %v3032
    %v3481 = vpack.c.b16 %v3037, %v3033
    %v3482 = vpack.c.b16 %v3038, %v3034
    %v3483 = vpack.c.b16 %v3043, %v3039
    %v3484 = vpack.c.b16 %v3044, %v3040
    %v3485 = vpack.c.b16 %v3045, %v3041
    %v3486 = vpack.c.b16 %v3046, %v3042
    %v3487 = vpack.c.b16 %v3051, %v3047
    %v3488 = vpack.c.b16 %v3052, %v3048
    %v3489 = vpack.c.b16 %v3053, %v3049
    %v3490 = vpack.c.b16 %v3054, %v3050
    %v3491 = vpack.c.b16 %v3059, %v3055
    %v3492 = vpack.c.b16 %v3060, %v3056
    %v3493 = vpack.c.b16 %v3061, %v3057
    %v3494 = vpack.c.b16 %v3062, %v3058
    %v3495 = vpack.c.b16 %v3067, %v3063
    %v3496 = vpack.c.b16 %v3068, %v3064
    %v3497 = vpack.c.b16 %v3069, %v3065
    %v3498 = vpack.c.b16 %v3070, %v3066
    %v3499 = vpack.c.b16 %v3075, %v3071
    %v3500 = vpack.c.b16 %v3076, %v3072
    %v3501 = vpack.c.b16 %v3077, %v3073
    %v3502 = vpack.c.b16 %v3078, %v3074
    %v3503 = vpack.c.b16 %v3083, %v3079
    %v3504 = vpack.c.b16 %v3084, %v3080
    %v3505 = vpack.c.b16 %v3085, %v3081
    %v3506 = vpack.c.b16 %v3086, %v3082
    %v3507 = vpack.c.b16 %v3091, %v3087
    %v3508 = vpack.c.b16 %v3092, %v3088
    %v3509 = vpack.c.b16 %v3093, %v3089
    %v3510 = vpack.c.b16 %v3094, %v3090
    %v3511 = vpack.c.b16 %v3099, %v3095
    %v3512 = vpack.c.b16 %v3100, %v3096
    %v3513 = vpack.c.b16 %v3101, %v3097
    %v3514 = vpack.c.b16 %v3102, %v3098
    %v3515 = vpack.c.b16 %v3107, %v3103
    %v3516 = vpack.c.b16 %v3108, %v3104
    %v3517 = vpack.c.b16 %v3109, %v3105
    %v3518 = vpack.c.b16 %v3110, %v3106
    %v3519 = vpack.c.b16 %v3115, %v3111
    %v3520 = vpack.c.b16 %v3116, %v3112
    %v3521 = vpack.c.b16 %v3117, %v3113
    %v3522 = vpack.c.b16 %v3118, %v3114
    %v3523 = vpack.c.b16 %v3123, %v3119
    %v3524 = vpack.c.b16 %v3124, %v3120
    %v3525 = vpack.c.b16 %v3125, %v3121
    %v3526 = vpack.c.b16 %v3126, %v3122
    %v3527 = vpack.c.b16 %v3131, %v3127
    %v3528 = vpack.c.b16 %v3132, %v3128
    %v3529 = vpack.c.b16 %v3133, %v3129
    %v3530 = vpack.c.b16 %v3134, %v3130
    %v3531 = vpack.c.b16 %v3139, %v3135
    %v3532 = vpack.c.b16 %v3140, %v3136
    %v3533 = vpack.c.b16 %v3141, %v3137
    %v3534 = vpack.c.b16 %v3142, %v3138
    %v3535 = vpack.c.b16 %v3147, %v3143
    %v3536 = vpack.c.b16 %v3148, %v3144
    %v3537 = vpack.c.b16 %v3149, %v3145
    %v3538 = vpack.c.b16 %v3150, %v3146
    %v3539 = vpack.c.b16 %v3155, %v3151
    %v3540 = vpack.c.b16 %v3156, %v3152
    %v3541 = vpack.c.b16 %v3157, %v3153
    %v3542 = vpack.c.b16 %v3158, %v3154
    %v3543 = vpack.c.b16 %v3163, %v3159
    %v3544 = vpack.c.b16 %v3164, %v3160
    %v3545 = vpack.c.b16 %v3165, %v3161
    %v3546 = vpack.c.b16 %v3166, %v3162
    %v3547 = vpack.c.b16 %v3171, %v3167
    %v3548 = vpack.c.b16 %v3172, %v3168
    %v3549 = vpack.c.b16 %v3173, %v3169
    %v3550 = vpack.c.b16 %v3174, %v3170
    %v3551 = vpack.c.b16 %v3179, %v3175
    %v3552 = vpack.c.b16 %v3180, %v3176
    %v3553 = vpack.c.b16 %v3181, %v3177
    %v3554 = vpack.c.b16 %v3182, %v3178
    %v3555 = vpack.c.b16 %v3187, %v3183
    %v3556 = vpack.c.b16 %v3188, %v3184
    %v3557 = vpack.c.b16 %v3189, %v3185
    %v3558 = vpack.c.b16 %v3190, %v3186
    %v3559 = vpack.c.b16 %v3195, %v3191
    %v3560 = vpack.c.b16 %v3196, %v3192
    %v3561 = vpack.c.b16 %v3197, %v3193
    %v3562 = vpack.c.b16 %v3198, %v3194
    %v3563 = vpack.c.b16 %v3203, %v3199
    %v3564 = vpack.c.b16 %v3204, %v3200
    %v3565 = vpack.c.b16 %v3205, %v3201
    %v3566 = vpack.c.b16 %v3206, %v3202
    %v3567 = vpack.c.b16 %v3211, %v3207
    %v3568 = vpack.c.b16 %v3212, %v3208
    %v3569 = vpack.c.b16 %v3213, %v3209
    %v3570 = vpack.c.b16 %v3214, %v3210
    %v3571 = vpack.c.b16 %v3219, %v3215
    %v3572 = vpack.c.b16 %v3220, %v3216
    %v3573 = vpack.c.b16 %v3221, %v3217
    %v3574 = vpack.c.b16 %v3222, %v3218
    %v3575 = vpack.c.b16 %v3227, %v3223
    %v3576 = vpack.c.b16 %v3228, %v3224
    %v3577 = vpack.c.b16 %v3229, %v3225
    %v3578 = vpack.c.b16 %v3230, %v3226
    %v3579 = vpack.c.b16 %v3235, %v3231
    %v3580 = vpack.c.b16 %v3236, %v3232
    %v3581 = vpack.c.b16 %v3237, %v3233
    %v3582 = vpack.c.b16 %v3238, %v3234
    %v3583 = vpack.c.b16 %v3243, %v3239
    %v3584 = vpack.c.b16 %v3244, %v3240
    %v3585 = vpack.c.b16 %v3245, %v3241
    %v3586 = vpack.c.b16 %v3246, %v3242
    %v3587 = vpack.c.b16 %v3251, %v3247
    %v3588 = vpack.c.b16 %v3252, %v3248
    %v3589 = vpack.c.b16 %v3253, %v3249
    %v3590 = vpack.c.b16 %v3254, %v3250
    %v3591 = vpack.c.b16 %v3259, %v3255
    %v3592 = vpack.c.b16 %v3260, %v3256
    %v3593 = vpack.c.b16 %v3261, %v3257
    %v3594 = vpack.c.b16 %v3262, %v3258
    %v3595 = vpack.c.b16 %v3267, %v3263
    %v3596 = vpack.c.b16 %v3268, %v3264
    %v3597 = vpack.c.b16 %v3269, %v3265
    %v3598 = vpack.c.b16 %v3270, %v3266
    %v3599 = vpack.c.b16 %v3275, %v3271
    %v3600 = vpack.c.b16 %v3276, %v3272
    %v3601 = vpack.c.b16 %v3277, %v3273
    %v3602 = vpack.c.b16 %v3278, %v3274
    %v3603 = vpack.c.b16 %v3283, %v3279
    %v3604 = vpack.c.b16 %v3284, %v3280
    %v3605 = vpack.c.b16 %v3285, %v3281
    %v3606 = vpack.c.b16 %v3286, %v3282
    %v3607 = vpack.c.b16 %v3291, %v3287
    %v3608 = vpack.c.b16 %v3292, %v3288
    %v3609 = vpack.c.b16 %v3293, %v3289
    %v3610 = vpack.c.b16 %v3294, %v3290
    %v3611 = vpack.c.b16 %v3299, %v3295
    %v3612 = vpack.c.b16 %v3300, %v3296
    %v3613 = vpack.c.b16 %v3301, %v3297
    %v3614 = vpack.c.b16 %v3302, %v3298
    %v3615 = vpack.c.b16 %v3307, %v3303
    %v3616 = vpack.c.b16 %v3308, %v3304
    %v3617 = vpack.c.b16 %v3309, %v3305
    %v3618 = vpack.c.b16 %v3310, %v3306
    %v3619 = vpack.c.b16 %v3315, %v3311
    %v3620 = vpack.c.b16 %v3316, %v3312
    %v3621 = vpack.c.b16 %v3317, %v3313
    %v3622 = vpack.c.b16 %v3318, %v3314
    %v3623 = vpack.c.b16 %v3323, %v3319
    %v3624 = vpack.c.b16 %v3324, %v3320
    %v3625 = vpack.c.b16 %v3325, %v3321
    %v3626 = vpack.c.b16 %v3326, %v3322
    %v3627 = vpack.c.b16 %v3331, %v3327
    %v3628 = vpack.c.b16 %v3332, %v3328
    %v3629 = vpack.c.b16 %v3333, %v3329
    %v3630 = vpack.c.b16 %v3334, %v3330
    %v3631 = vpack.c.b16 %v3339, %v3335
    %v3632 = vpack.c.b16 %v3340, %v3336
    %v3633 = vpack.c.b16 %v3341, %v3337
    %v3634 = vpack.c.b16 %v3342, %v3338
    %v3635 = vpack.c.b16 %v3347, %v3343
    %v3636 = vpack.c.b16 %v3348, %v3344
    %v3637 = vpack.c.b16 %v3349, %v3345
    %v3638 = vpack.c.b16 %v3350, %v3346
    %v3639 = vpack.c.b16 %v3355, %v3351
    %v3640 = vpack.c.b16 %v3356, %v3352
    %v3641 = vpack.c.b16 %v3357, %v3353
    %v3642 = vpack.c.b16 %v3358, %v3354
    %v3643 = vpack.c.b16 %v3363, %v3359
    %v3644 = vpack.c.b16 %v3364, %v3360
    %v3645 = vpack.c.b16 %v3365, %v3361
    %v3646 = vpack.c.b16 %v3366, %v3362
    %v3647 = vpack.c.b16 %v3371, %v3367
    %v3648 = vpack.c.b16 %v3372, %v3368
    %v3649 = vpack.c.b16 %v3373, %v3369
    %v3650 = vpack.c.b16 %v3374, %v3370
    %v3651 = vpack.c.b16 %v3379, %v3375
    %v3652 = vpack.c.b16 %v3380, %v3376
    %v3653 = vpack.c.b16 %v3381, %v3377
    %v3654 = vpack.c.b16 %v3382, %v3378
    %v3655 = vpack.c.b16 %v3387, %v3383
    %v3656 = vpack.c.b16 %v3388, %v3384
    %v3657 = vpack.c.b16 %v3389, %v3385
    %v3658 = vpack.c.b16 %v3390, %v3386
    %v3659 = vpack.c.b16 %v3395, %v3391
    %v3660 = vpack.c.b16 %v3396, %v3392
    %v3661 = vpack.c.b16 %v3397, %v3393
    %v3662 = vpack.c.b16 %v3398, %v3394
    %v3663 = vpack.c.b16 %v3403, %v3399
    %v3664 = vpack.c.b16 %v3404, %v3400
    %v3665 = vpack.c.b16 %v3405, %v3401
    %v3666 = vpack.c.b16 %v3406, %v3402
    %v3667 = vpack.c.b16 %v3411, %v3407
    %v3668 = vpack.c.b16 %v3412, %v3408
    %v3669 = vpack.c.b16 %v3413, %v3409
    %v3670 = vpack.c.b16 %v3414, %v3410
    %3927 = vmatprep.subr.bf16.mxu0 %v3416
    %3928 = vmatpush1.bf16.msra.mxu0 %v3415
    %3929 = vmatprep.subr.bf16.mxu0 %v3420
    %3930 = vmatpush1.bf16.msra.mxu0 %v3419
    %3931 = vmatprep.subr.bf16.mxu0 %v3424
    %3932 = vmatpush1.bf16.msra.mxu0 %v3423
    %3933 = vmatprep.subr.bf16.mxu0 %v3428
    %3934 = vmatpush1.bf16.msra.mxu0 %v3427
    %3935 = vmatprep.subr.bf16.mxu0 %v3432
    %3936 = vmatpush1.bf16.msra.mxu0 %v3431
    %3937 = vmatprep.subr.bf16.mxu0 %v3436
    %3938 = vmatpush1.bf16.msra.mxu0 %v3435
    %3939 = vmatprep.subr.bf16.mxu0 %v3440
    %3940 = vmatpush1.bf16.msra.mxu0 %v3439
    %3941 = vmatprep.subr.bf16.mxu0 %v3444
    %3942 = vmatpush1.bf16.msra.mxu0 %v3443
    %3943 = vmatprep.subr.bf16.mxu0 %v3448
    %3944 = vmatpush1.bf16.msra.mxu0 %v3447
    %3945 = vmatprep.subr.bf16.mxu0 %v3452
    %3946 = vmatpush1.bf16.msra.mxu0 %v3451
    %3947 = vmatprep.subr.bf16.mxu0 %v3456
    %3948 = vmatpush1.bf16.msra.mxu0 %v3455
    %3949 = vmatprep.subr.bf16.mxu0 %v3460
    %3950 = vmatpush1.bf16.msra.mxu0 %v3459
    %3951 = vmatprep.subr.bf16.mxu0 %v3464
    %3952 = vmatpush1.bf16.msra.mxu0 %v3463
    %3953 = vmatprep.subr.bf16.mxu0 %v3468
    %3954 = vmatpush1.bf16.msra.mxu0 %v3467
    %3955 = vmatprep.subr.bf16.mxu0 %v3472
    %3956 = vmatpush1.bf16.msra.mxu0 %v3471
    %3957 = vmatprep.subr.bf16.mxu0 %v3476
    %3958 = vmatpush1.bf16.msra.mxu0 %v3475
    %3959 = vmatprep.mubr.bf16.mxu0 %v2362
    %3960 = vmatmul.mubr.bf16.gmra.mrb[0].mxu0 %v2361
    %v3961 = vpop.f32.mrb[0].mxu0
    %v3962 = vadd.f32 %v2630, %v3961
    %v3963 = vpop.f32.mrb[0].mxu0
    %v3964 = vadd.f32 %v2634, %v3963
    %v3965 = vpop.f32.mrb[0].mxu0
    %v3966 = vpop.f32.mrb[0].mxu0
    %3967 = vdwg.mxu0
    %3968 = vmatprep.subr.bf16.mxu0 %v3480
    %3969 = vmatpush1.bf16.msra.mxu0 %v3479
    %3970 = vmatprep.subr.bf16.mxu0 %v3484
    %3971 = vmatpush1.bf16.msra.mxu0 %v3483
    %3972 = vmatprep.subr.bf16.mxu0 %v3488
    %3973 = vmatpush1.bf16.msra.mxu0 %v3487
    %3974 = vmatprep.subr.bf16.mxu0 %v3492
    %3975 = vmatpush1.bf16.msra.mxu0 %v3491
    %3976 = vmatprep.subr.bf16.mxu0 %v3496
    %3977 = vmatpush1.bf16.msra.mxu0 %v3495
    %3978 = vmatprep.subr.bf16.mxu0 %v3500
    %3979 = vmatpush1.bf16.msra.mxu0 %v3499
    %3980 = vmatprep.subr.bf16.mxu0 %v3504
    %3981 = vmatpush1.bf16.msra.mxu0 %v3503
    %3982 = vmatprep.subr.bf16.mxu0 %v3508
    %3983 = vmatpush1.bf16.msra.mxu0 %v3507
    %3984 = vmatprep.subr.bf16.mxu0 %v3512
    %3985 = vmatpush1.bf16.msra.mxu0 %v3511
    %3986 = vmatprep.subr.bf16.mxu0 %v3516
    %3987 = vmatpush1.bf16.msra.mxu0 %v3515
    %3988 = vmatprep.subr.bf16.mxu0 %v3520
    %3989 = vmatpush1.bf16.msra.mxu0 %v3519
    %3990 = vmatprep.subr.bf16.mxu0 %v3524
    %3991 = vmatpush1.bf16.msra.mxu0 %v3523
    %3992 = vmatprep.subr.bf16.mxu0 %v3528
    %3993 = vmatpush1.bf16.msra.mxu0 %v3527
    %3994 = vmatprep.subr.bf16.mxu0 %v3532
    %3995 = vmatpush1.bf16.msra.mxu0 %v3531
    %3996 = vmatprep.subr.bf16.mxu0 %v3536
    %3997 = vmatpush1.bf16.msra.mxu0 %v3535
    %3998 = vmatprep.subr.bf16.mxu0 %v3540
    %3999 = vmatpush1.bf16.msra.mxu0 %v3539
    %4000 = vmatprep.mubr.bf16.mxu0 %v2364
    %4001 = vmatmul.mubr.bf16.gmra.mrb[0].mxu0 %v2363
    %v4002 = vpop.f32.mrb[0].mxu0
    %v4003 = vadd.f32 %v3962, %v4002
    %v4004 = vpop.f32.mrb[0].mxu0
    %v4005 = vadd.f32 %v3964, %v4004
    %v4006 = vpop.f32.mrb[0].mxu0
    %v4007 = vpop.f32.mrb[0].mxu0
    %4008 = vdwg.mxu0
    %4009 = vmatprep.subr.bf16.mxu0 %v3544
    %4010 = vmatpush1.bf16.msra.mxu0 %v3543
    %4011 = vmatprep.subr.bf16.mxu0 %v3548
    %4012 = vmatpush1.bf16.msra.mxu0 %v3547
    %4013 = vmatprep.subr.bf16.mxu0 %v3552
    %4014 = vmatpush1.bf16.msra.mxu0 %v3551
    %4015 = vmatprep.subr.bf16.mxu0 %v3556
    %4016 = vmatpush1.bf16.msra.mxu0 %v3555
    %4017 = vmatprep.subr.bf16.mxu0 %v3560
    %4018 = vmatpush1.bf16.msra.mxu0 %v3559
    %4019 = vmatprep.subr.bf16.mxu0 %v3564
    %4020 = vmatpush1.bf16.msra.mxu0 %v3563
    %4021 = vmatprep.subr.bf16.mxu0 %v3568
    %4022 = vmatpush1.bf16.msra.mxu0 %v3567
    %4023 = vmatprep.subr.bf16.mxu0 %v3572
    %4024 = vmatpush1.bf16.msra.mxu0 %v3571
    %4025 = vmatprep.subr.bf16.mxu0 %v3576
    %4026 = vmatpush1.bf16.msra.mxu0 %v3575
    %4027 = vmatprep.subr.bf16.mxu0 %v3580
    %4028 = vmatpush1.bf16.msra.mxu0 %v3579
    %4029 = vmatprep.subr.bf16.mxu0 %v3584
    %4030 = vmatpush1.bf16.msra.mxu0 %v3583
    %4031 = vmatprep.subr.bf16.mxu0 %v3588
    %4032 = vmatpush1.bf16.msra.mxu0 %v3587
    %4033 = vmatprep.subr.bf16.mxu0 %v3592
    %4034 = vmatpush1.bf16.msra.mxu0 %v3591
    %4035 = vmatprep.subr.bf16.mxu0 %v3596
    %4036 = vmatpush1.bf16.msra.mxu0 %v3595
    %4037 = vmatprep.subr.bf16.mxu0 %v3600
    %4038 = vmatpush1.bf16.msra.mxu0 %v3599
    %4039 = vmatprep.subr.bf16.mxu0 %v3604
    %4040 = vmatpush1.bf16.msra.mxu0 %v3603
    %4041 = vmatprep.mubr.bf16.mxu0 %v2366
    %4042 = vmatmul.mubr.bf16.gmra.mrb[0].mxu0 %v2365
    %v4043 = vpop.f32.mrb[0].mxu0
    %v4044 = vadd.f32 %v4003, %v4043
    %v4045 = vpop.f32.mrb[0].mxu0
    %v4046 = vadd.f32 %v4005, %v4045
    %v4047 = vpop.f32.mrb[0].mxu0
    %v4048 = vpop.f32.mrb[0].mxu0
    %4049 = vdwg.mxu0
    %4050 = vmatprep.subr.bf16.mxu0 %v3608
    %4051 = vmatpush1.bf16.msra.mxu0 %v3607
    %4052 = vmatprep.subr.bf16.mxu0 %v3612
    %4053 = vmatpush1.bf16.msra.mxu0 %v3611
    %4054 = vmatprep.subr.bf16.mxu0 %v3616
    %4055 = vmatpush1.bf16.msra.mxu0 %v3615
    %4056 = vmatprep.subr.bf16.mxu0 %v3620
    %4057 = vmatpush1.bf16.msra.mxu0 %v3619
    %4058 = vmatprep.subr.bf16.mxu0 %v3624
    %4059 = vmatpush1.bf16.msra.mxu0 %v3623
    %4060 = vmatprep.subr.bf16.mxu0 %v3628
    %4061 = vmatpush1.bf16.msra.mxu0 %v3627
    %4062 = vmatprep.subr.bf16.mxu0 %v3632
    %4063 = vmatpush1.bf16.msra.mxu0 %v3631
    %4064 = vmatprep.subr.bf16.mxu0 %v3636
    %4065 = vmatpush1.bf16.msra.mxu0 %v3635
    %4066 = vmatprep.subr.bf16.mxu0 %v3640
    %4067 = vmatpush1.bf16.msra.mxu0 %v3639
    %4068 = vmatprep.subr.bf16.mxu0 %v3644
    %4069 = vmatpush1.bf16.msra.mxu0 %v3643
    %4070 = vmatprep.subr.bf16.mxu0 %v3648
    %4071 = vmatpush1.bf16.msra.mxu0 %v3647
    %4072 = vmatprep.subr.bf16.mxu0 %v3652
    %4073 = vmatpush1.bf16.msra.mxu0 %v3651
    %4074 = vmatprep.subr.bf16.mxu0 %v3656
    %4075 = vmatpush1.bf16.msra.mxu0 %v3655
    %4076 = vmatprep.subr.bf16.mxu0 %v3660
    %4077 = vmatpush1.bf16.msra.mxu0 %v3659
    %4078 = vmatprep.subr.bf16.mxu0 %v3664
    %4079 = vmatpush1.bf16.msra.mxu0 %v3663
    %4080 = vmatprep.subr.bf16.mxu0 %v3668
    %4081 = vmatpush1.bf16.msra.mxu0 %v3667
    %4082 = vmatprep.mubr.bf16.mxu0 %v2368
    %4083 = vmatmul.mubr.bf16.gmra.mrb[0].mxu0 %v2367
    %v4084 = vpop.f32.mrb[0].mxu0
    %v4085 = vadd.f32 %v4044, %v4084
    %v4086 = vpop.f32.mrb[0].mxu0
    %v4087 = vadd.f32 %v4046, %v4086
    %v4088 = vpop.f32.mrb[0].mxu0
    %v4089 = vpop.f32.mrb[0].mxu0
    %4090 = vdwg.mxu0
    %4091 = vmatprep.subr.bf16.mxu0 %v3418
    %4092 = vmatpush1.bf16.msra.mxu0 %v3417
    %4093 = vmatprep.subr.bf16.mxu0 %v3422
    %4094 = vmatpush1.bf16.msra.mxu0 %v3421
    %4095 = vmatprep.subr.bf16.mxu0 %v3426
    %4096 = vmatpush1.bf16.msra.mxu0 %v3425
    %4097 = vmatprep.subr.bf16.mxu0 %v3430
    %4098 = vmatpush1.bf16.msra.mxu0 %v3429
    %4099 = vmatprep.subr.bf16.mxu0 %v3434
    %4100 = vmatpush1.bf16.msra.mxu0 %v3433
    %4101 = vmatprep.subr.bf16.mxu0 %v3438
    %4102 = vmatpush1.bf16.msra.mxu0 %v3437
    %4103 = vmatprep.subr.bf16.mxu0 %v3442
    %4104 = vmatpush1.bf16.msra.mxu0 %v3441
    %4105 = vmatprep.subr.bf16.mxu0 %v3446
    %4106 = vmatpush1.bf16.msra.mxu0 %v3445
    %4107 = vmatprep.subr.bf16.mxu0 %v3450
    %4108 = vmatpush1.bf16.msra.mxu0 %v3449
    %4109 = vmatprep.subr.bf16.mxu0 %v3454
    %4110 = vmatpush1.bf16.msra.mxu0 %v3453
    %4111 = vmatprep.subr.bf16.mxu0 %v3458
    %4112 = vmatpush1.bf16.msra.mxu0 %v3457
    %4113 = vmatprep.subr.bf16.mxu0 %v3462
    %4114 = vmatpush1.bf16.msra.mxu0 %v3461
    %4115 = vmatprep.subr.bf16.mxu0 %v3466
    %4116 = vmatpush1.bf16.msra.mxu0 %v3465
    %4117 = vmatprep.subr.bf16.mxu0 %v3470
    %4118 = vmatpush1.bf16.msra.mxu0 %v3469
    %4119 = vmatprep.subr.bf16.mxu0 %v3474
    %4120 = vmatpush1.bf16.msra.mxu0 %v3473
    %4121 = vmatprep.subr.bf16.mxu0 %v3478
    %4122 = vmatpush1.bf16.msra.mxu0 %v3477
    %4123 = vmatprep.mubr.bf16.mxu0 %v2362
    %4124 = vmatmul.mubr.bf16.gmra.mrb[0].mxu0 %v2361
    %v4125 = vpop.f32.mrb[0].mxu0
    %v4126 = vadd.f32 %v2638, %v4125
    %v4127 = vpop.f32.mrb[0].mxu0
    %v4128 = vadd.f32 %v2642, %v4127
    %v4129 = vpop.f32.mrb[0].mxu0
    %v4130 = vpop.f32.mrb[0].mxu0
    %4131 = vdwg.mxu0
    %4132 = vmatprep.subr.bf16.mxu0 %v3482
    %4133 = vmatpush1.bf16.msra.mxu0 %v3481
    %4134 = vmatprep.subr.bf16.mxu0 %v3486
    %4135 = vmatpush1.bf16.msra.mxu0 %v3485
    %4136 = vmatprep.subr.bf16.mxu0 %v3490
    %4137 = vmatpush1.bf16.msra.mxu0 %v3489
    %4138 = vmatprep.subr.bf16.mxu0 %v3494
    %4139 = vmatpush1.bf16.msra.mxu0 %v3493
    %4140 = vmatprep.subr.bf16.mxu0 %v3498
    %4141 = vmatpush1.bf16.msra.mxu0 %v3497
    %4142 = vmatprep.subr.bf16.mxu0 %v3502
    %4143 = vmatpush1.bf16.msra.mxu0 %v3501
    %4144 = vmatprep.subr.bf16.mxu0 %v3506
    %4145 = vmatpush1.bf16.msra.mxu0 %v3505
    %4146 = vmatprep.subr.bf16.mxu0 %v3510
    %4147 = vmatpush1.bf16.msra.mxu0 %v3509
    %4148 = vmatprep.subr.bf16.mxu0 %v3514
    %4149 = vmatpush1.bf16.msra.mxu0 %v3513
    %4150 = vmatprep.subr.bf16.mxu0 %v3518
    %4151 = vmatpush1.bf16.msra.mxu0 %v3517
    %4152 = vmatprep.subr.bf16.mxu0 %v3522
    %4153 = vmatpush1.bf16.msra.mxu0 %v3521
    %4154 = vmatprep.subr.bf16.mxu0 %v3526
    %4155 = vmatpush1.bf16.msra.mxu0 %v3525
    %4156 = vmatprep.subr.bf16.mxu0 %v3530
    %4157 = vmatpush1.bf16.msra.mxu0 %v3529
    %4158 = vmatprep.subr.bf16.mxu0 %v3534
    %4159 = vmatpush1.bf16.msra.mxu0 %v3533
    %4160 = vmatprep.subr.bf16.mxu0 %v3538
    %4161 = vmatpush1.bf16.msra.mxu0 %v3537
    %4162 = vmatprep.subr.bf16.mxu0 %v3542
    %4163 = vmatpush1.bf16.msra.mxu0 %v3541
    %4164 = vmatprep.mubr.bf16.mxu0 %v2364
    %4165 = vmatmul.mubr.bf16.gmra.mrb[0].mxu0 %v2363
    %v4166 = vpop.f32.mrb[0].mxu0
    %v4167 = vadd.f32 %v4126, %v4166
    %v4168 = vpop.f32.mrb[0].mxu0
    %v4169 = vadd.f32 %v4128, %v4168
    %v4170 = vpop.f32.mrb[0].mxu0
    %v4171 = vpop.f32.mrb[0].mxu0
    %4172 = vdwg.mxu0
    %4173 = vmatprep.subr.bf16.mxu0 %v3546
    %4174 = vmatpush1.bf16.msra.mxu0 %v3545
    %4175 = vmatprep.subr.bf16.mxu0 %v3550
    %4176 = vmatpush1.bf16.msra.mxu0 %v3549
    %4177 = vmatprep.subr.bf16.mxu0 %v3554
    %4178 = vmatpush1.bf16.msra.mxu0 %v3553
    %4179 = vmatprep.subr.bf16.mxu0 %v3558
    %4180 = vmatpush1.bf16.msra.mxu0 %v3557
    %4181 = vmatprep.subr.bf16.mxu0 %v3562
    %4182 = vmatpush1.bf16.msra.mxu0 %v3561
    %4183 = vmatprep.subr.bf16.mxu0 %v3566
    %4184 = vmatpush1.bf16.msra.mxu0 %v3565
    %4185 = vmatprep.subr.bf16.mxu0 %v3570
    %4186 = vmatpush1.bf16.msra.mxu0 %v3569
    %4187 = vmatprep.subr.bf16.mxu0 %v3574
    %4188 = vmatpush1.bf16.msra.mxu0 %v3573
    %4189 = vmatprep.subr.bf16.mxu0 %v3578
    %4190 = vmatpush1.bf16.msra.mxu0 %v3577
    %4191 = vmatprep.subr.bf16.mxu0 %v3582
    %4192 = vmatpush1.bf16.msra.mxu0 %v3581
    %4193 = vmatprep.subr.bf16.mxu0 %v3586
    %4194 = vmatpush1.bf16.msra.mxu0 %v3585
    %4195 = vmatprep.subr.bf16.mxu0 %v3590
    %4196 = vmatpush1.bf16.msra.mxu0 %v3589
    %4197 = vmatprep.subr.bf16.mxu0 %v3594
    %4198 = vmatpush1.bf16.msra.mxu0 %v3593
    %4199 = vmatprep.subr.bf16.mxu0 %v3598
    %4200 = vmatpush1.bf16.msra.mxu0 %v3597
    %4201 = vmatprep.subr.bf16.mxu0 %v3602
    %4202 = vmatpush1.bf16.msra.mxu0 %v3601
    %4203 = vmatprep.subr.bf16.mxu0 %v3606
    %4204 = vmatpush1.bf16.msra.mxu0 %v3605
    %4205 = vmatprep.mubr.bf16.mxu0 %v2366
    %4206 = vmatmul.mubr.bf16.gmra.mrb[0].mxu0 %v2365
    %v4207 = vpop.f32.mrb[0].mxu0
    %v4208 = vadd.f32 %v4167, %v4207
    %v4209 = vpop.f32.mrb[0].mxu0
    %v4210 = vadd.f32 %v4169, %v4209
    %v4211 = vpop.f32.mrb[0].mxu0
    %v4212 = vpop.f32.mrb[0].mxu0
    %4213 = vdwg.mxu0
    %4214 = vmatprep.subr.bf16.mxu0 %v3610
    %4215 = vmatpush1.bf16.msra.mxu0 %v3609
    %4216 = vmatprep.subr.bf16.mxu0 %v3614
    %4217 = vmatpush1.bf16.msra.mxu0 %v3613
    %4218 = vmatprep.subr.bf16.mxu0 %v3618
    %4219 = vmatpush1.bf16.msra.mxu0 %v3617
    %4220 = vmatprep.subr.bf16.mxu0 %v3622
    %4221 = vmatpush1.bf16.msra.mxu0 %v3621
    %4222 = vmatprep.subr.bf16.mxu0 %v3626
    %4223 = vmatpush1.bf16.msra.mxu0 %v3625
    %4224 = vmatprep.subr.bf16.mxu0 %v3630
    %4225 = vmatpush1.bf16.msra.mxu0 %v3629
    %4226 = vmatprep.subr.bf16.mxu0 %v3634
    %4227 = vmatpush1.bf16.msra.mxu0 %v3633
    %4228 = vmatprep.subr.bf16.mxu0 %v3638
    %4229 = vmatpush1.bf16.msra.mxu0 %v3637
    %4230 = vmatprep.subr.bf16.mxu0 %v3642
    %4231 = vmatpush1.bf16.msra.mxu0 %v3641
    %4232 = vmatprep.subr.bf16.mxu0 %v3646
    %4233 = vmatpush1.bf16.msra.mxu0 %v3645
    %4234 = vmatprep.subr.bf16.mxu0 %v3650
    %4235 = vmatpush1.bf16.msra.mxu0 %v3649
    %4236 = vmatprep.subr.bf16.mxu0 %v3654
    %4237 = vmatpush1.bf16.msra.mxu0 %v3653
    %4238 = vmatprep.subr.bf16.mxu0 %v3658
    %4239 = vmatpush1.bf16.msra.mxu0 %v3657
    %4240 = vmatprep.subr.bf16.mxu0 %v3662
    %4241 = vmatpush1.bf16.msra.mxu0 %v3661
    %4242 = vmatprep.subr.bf16.mxu0 %v3666
    %4243 = vmatpush1.bf16.msra.mxu0 %v3665
    %4244 = vmatprep.subr.bf16.mxu0 %v3670
    %4245 = vmatpush1.bf16.msra.mxu0 %v3669
    %4246 = vmatprep.mubr.bf16.mxu0 %v2368
    %4247 = vmatmul.mubr.bf16.gmra.mrb[0].mxu0 %v2367
    %v4248 = vpop.f32.mrb[0].mxu0
    %v4249 = vadd.f32 %v4208, %v4248
    %v4250 = vpop.f32.mrb[0].mxu0
    %v4251 = vadd.f32 %v4210, %v4250
    %v4252 = vpop.f32.mrb[0].mxu0
    %v4253 = vpop.f32.mrb[0].mxu0
    %4254 = vdwg.mxu0
    %v4255 = vmax.f32 %v4085, 0.0
    %v4256 = vmax.f32 %v4087, 0.0
    %v4257 = vmax.f32 %v4249, 0.0
    %v4258 = vmax.f32 %v4251, 0.0
    %v4259 = vpack.c.bf16 %v4255, %v4255
    %v4260 = vpack.c.bf16 %v4256, %v4256
    %v4261 = vpack.c.bf16 %v4257, %v4257
    %v4262 = vpack.c.bf16 %v4258, %v4258
    %v4263 = vld [vmem:[#allocation11] sm:$0xff]
    %v4264 = vld [vmem:[#allocation11 + $0x8] sm:$0xff]
    %v4265 = vld [vmem:[#allocation11 + $0x10] sm:$0xff]
    %v4266 = vld [vmem:[#allocation11 + $0x18] sm:$0xff]
    %v4267 = vld [vmem:[#allocation11 + $0x20] sm:$0xff]
    %v4268 = vld [vmem:[#allocation11 + $0x28] sm:$0xff]
    %v4269 = vld [vmem:[#allocation11 + $0x30] sm:$0xff]
    %v4270 = vld [vmem:[#allocation11 + $0x38] sm:$0xff]
    %v4271 = vld [vmem:[#allocation11 + $0x40] sm:$0xff]
    %v4272 = vld [vmem:[#allocation11 + $0x48] sm:$0xff]
    %v4273 = vld [vmem:[#allocation11 + $0x50] sm:$0xff]
    %v4274 = vld [vmem:[#allocation11 + $0x58] sm:$0xff]
    %v4275 = vld [vmem:[#allocation11 + $0x60] sm:$0xff]
    %v4276 = vld [vmem:[#allocation11 + $0x68] sm:$0xff]
    %v4277 = vld [vmem:[#allocation11 + $0x70] sm:$0xff]
    %v4278 = vld [vmem:[#allocation11 + $0x78] sm:$0xff]
    %v4279 = vld [vmem:[#allocation11 + $0x80] sm:$0xff]
    %v4280 = vld [vmem:[#allocation11 + $0x88] sm:$0xff]
    %v4281 = vld [vmem:[#allocation11 + $0x90] sm:$0xff]
    %v4282 = vld [vmem:[#allocation11 + $0x98] sm:$0xff]
    %v4283 = vld [vmem:[#allocation11 + $0xa0] sm:$0xff]
    %v4284 = vld [vmem:[#allocation11 + $0xa8] sm:$0xff]
    %v4285 = vld [vmem:[#allocation11 + $0xb0] sm:$0xff]
    %v4286 = vld [vmem:[#allocation11 + $0xb8] sm:$0xff]
    %v4287 = vld [vmem:[#allocation11 + $0xc0] sm:$0xff]
    %v4288 = vld [vmem:[#allocation11 + $0xc8] sm:$0xff]
    %v4289 = vld [vmem:[#allocation11 + $0xd0] sm:$0xff]
    %v4290 = vld [vmem:[#allocation11 + $0xd8] sm:$0xff]
    %v4291 = vld [vmem:[#allocation11 + $0xe0] sm:$0xff]
    %v4292 = vld [vmem:[#allocation11 + $0xe8] sm:$0xff]
    %v4293 = vld [vmem:[#allocation11 + $0xf0] sm:$0xff]
    %v4294 = vld [vmem:[#allocation11 + $0xf8] sm:$0xff]
    %v4295 = vld [vmem:[#allocation11 + $0x100] sm:$0xff]
    %v4296 = vld [vmem:[#allocation11 + $0x108] sm:$0xff]
    %v4297 = vld [vmem:[#allocation11 + $0x110] sm:$0xff]
    %v4298 = vld [vmem:[#allocation11 + $0x118] sm:$0xff]
    %v4299 = vld [vmem:[#allocation11 + $0x120] sm:$0xff]
    %v4300 = vld [vmem:[#allocation11 + $0x128] sm:$0xff]
    %v4301 = vld [vmem:[#allocation11 + $0x130] sm:$0xff]
    %v4302 = vld [vmem:[#allocation11 + $0x138] sm:$0xff]
    %v4303 = vld [vmem:[#allocation11 + $0x140] sm:$0xff]
    %v4304 = vld [vmem:[#allocation11 + $0x148] sm:$0xff]
    %v4305 = vld [vmem:[#allocation11 + $0x150] sm:$0xff]
    %v4306 = vld [vmem:[#allocation11 + $0x158] sm:$0xff]
    %v4307 = vld [vmem:[#allocation11 + $0x160] sm:$0xff]
    %v4308 = vld [vmem:[#allocation11 + $0x168] sm:$0xff]
    %v4309 = vld [vmem:[#allocation11 + $0x170] sm:$0xff]
    %v4310 = vld [vmem:[#allocation11 + $0x178] sm:$0xff]
    %v4311 = vld [vmem:[#allocation11 + $0x180] sm:$0xff]
    %v4312 = vld [vmem:[#allocation11 + $0x188] sm:$0xff]
    %v4313 = vld [vmem:[#allocation11 + $0x190] sm:$0xff]
    %v4314 = vld [vmem:[#allocation11 + $0x198] sm:$0xff]
    %v4315 = vld [vmem:[#allocation11 + $0x1a0] sm:$0xff]
    %v4316 = vld [vmem:[#allocation11 + $0x1a8] sm:$0xff]
    %v4317 = vld [vmem:[#allocation11 + $0x1b0] sm:$0xff]
    %v4318 = vld [vmem:[#allocation11 + $0x1b8] sm:$0xff]
    %v4319 = vld [vmem:[#allocation11 + $0x1c0] sm:$0xff]
    %v4320 = vld [vmem:[#allocation11 + $0x1c8] sm:$0xff]
    %v4321 = vld [vmem:[#allocation11 + $0x1d0] sm:$0xff]
    %v4322 = vld [vmem:[#allocation11 + $0x1d8] sm:$0xff]
    %v4323 = vld [vmem:[#allocation11 + $0x1e0] sm:$0xff]
    %v4324 = vld [vmem:[#allocation11 + $0x1e8] sm:$0xff]
    %v4325 = vld [vmem:[#allocation11 + $0x1f0] sm:$0xff]
    %v4326 = vld [vmem:[#allocation11 + $0x1f8] sm:$0xff]
    %v4327 = vld [vmem:[%s8] sm:$0x3]
    %v4329 = vlaneseq
    %v4330 = vshrl.u32 %v4329, 7
    %v4331 = vsub.s32 0, %v4330
    %v4332 = vrot.slane %v4327, %v4331
    %v4333 = vlaneseq
    %v4334 = vshrl.u32 %v4333, 7
    %v4335 = vsub.s32 1, %v4334
    %v4336 = vrot.slane %v4327, %v4335
    %v4403 = vunpack.c.l.b16 %v4263
    %v4404 = vunpack.c.h.b16 %v4263
    %v4405 = vunpack.c.l.b16 %v4264
    %v4406 = vunpack.c.h.b16 %v4264
    %v4407 = vunpack.c.l.b16 %v4265
    %v4408 = vunpack.c.h.b16 %v4265
    %v4409 = vunpack.c.l.b16 %v4266
    %v4410 = vunpack.c.h.b16 %v4266
    %v4411 = vunpack.c.l.b16 %v4267
    %v4412 = vunpack.c.h.b16 %v4267
    %v4413 = vunpack.c.l.b16 %v4268
    %v4414 = vunpack.c.h.b16 %v4268
    %v4415 = vunpack.c.l.b16 %v4269
    %v4416 = vunpack.c.h.b16 %v4269
    %v4417 = vunpack.c.l.b16 %v4270
    %v4418 = vunpack.c.h.b16 %v4270
    %v4419 = vunpack.c.l.b16 %v4271
    %v4420 = vunpack.c.h.b16 %v4271
    %v4421 = vunpack.c.l.b16 %v4272
    %v4422 = vunpack.c.h.b16 %v4272
    %v4423 = vunpack.c.l.b16 %v4273
    %v4424 = vunpack.c.h.b16 %v4273
    %v4425 = vunpack.c.l.b16 %v4274
    %v4426 = vunpack.c.h.b16 %v4274
    %v4427 = vunpack.c.l.b16 %v4275
    %v4428 = vunpack.c.h.b16 %v4275
    %v4429 = vunpack.c.l.b16 %v4276
    %v4430 = vunpack.c.h.b16 %v4276
    %v4431 = vunpack.c.l.b16 %v4277
    %v4432 = vunpack.c.h.b16 %v4277
    %v4433 = vunpack.c.l.b16 %v4278
    %v4434 = vunpack.c.h.b16 %v4278
    %v4435 = vunpack.c.l.b16 %v4279
    %v4436 = vunpack.c.h.b16 %v4279
    %v4437 = vunpack.c.l.b16 %v4280
    %v4438 = vunpack.c.h.b16 %v4280
    %v4439 = vunpack.c.l.b16 %v4281
    %v4440 = vunpack.c.h.b16 %v4281
    %v4441 = vunpack.c.l.b16 %v4282
    %v4442 = vunpack.c.h.b16 %v4282
    %v4443 = vunpack.c.l.b16 %v4283
    %v4444 = vunpack.c.h.b16 %v4283
    %v4445 = vunpack.c.l.b16 %v4284
    %v4446 = vunpack.c.h.b16 %v4284
    %v4447 = vunpack.c.l.b16 %v4285
    %v4448 = vunpack.c.h.b16 %v4285
    %v4449 = vunpack.c.l.b16 %v4286
    %v4450 = vunpack.c.h.b16 %v4286
    %v4451 = vunpack.c.l.b16 %v4287
    %v4452 = vunpack.c.h.b16 %v4287
    %v4453 = vunpack.c.l.b16 %v4288
    %v4454 = vunpack.c.h.b16 %v4288
    %v4455 = vunpack.c.l.b16 %v4289
    %v4456 = vunpack.c.h.b16 %v4289
    %v4457 = vunpack.c.l.b16 %v4290
    %v4458 = vunpack.c.h.b16 %v4290
    %v4459 = vunpack.c.l.b16 %v4291
    %v4460 = vunpack.c.h.b16 %v4291
    %v4461 = vunpack.c.l.b16 %v4292
    %v4462 = vunpack.c.h.b16 %v4292
    %v4463 = vunpack.c.l.b16 %v4293
    %v4464 = vunpack.c.h.b16 %v4293
    %v4465 = vunpack.c.l.b16 %v4294
    %v4466 = vunpack.c.h.b16 %v4294
    %v4467 = vunpack.c.l.b16 %v4295
    %v4468 = vunpack.c.h.b16 %v4295
    %v4469 = vunpack.c.l.b16 %v4296
    %v4470 = vunpack.c.h.b16 %v4296
    %v4471 = vunpack.c.l.b16 %v4297
    %v4472 = vunpack.c.h.b16 %v4297
    %v4473 = vunpack.c.l.b16 %v4298
    %v4474 = vunpack.c.h.b16 %v4298
    %v4475 = vunpack.c.l.b16 %v4299
    %v4476 = vunpack.c.h.b16 %v4299
    %v4477 = vunpack.c.l.b16 %v4300
    %v4478 = vunpack.c.h.b16 %v4300
    %v4479 = vunpack.c.l.b16 %v4301
    %v4480 = vunpack.c.h.b16 %v4301
    %v4481 = vunpack.c.l.b16 %v4302
    %v4482 = vunpack.c.h.b16 %v4302
    %v4483 = vunpack.c.l.b16 %v4303
    %v4484 = vunpack.c.h.b16 %v4303
    %v4485 = vunpack.c.l.b16 %v4304
    %v4486 = vunpack.c.h.b16 %v4304
    %v4487 = vunpack.c.l.b16 %v4305
    %v4488 = vunpack.c.h.b16 %v4305
    %v4489 = vunpack.c.l.b16 %v4306
    %v4490 = vunpack.c.h.b16 %v4306
    %v4491 = vunpack.c.l.b16 %v4307
    %v4492 = vunpack.c.h.b16 %v4307
    %v4493 = vunpack.c.l.b16 %v4308
    %v4494 = vunpack.c.h.b16 %v4308
    %v4495 = vunpack.c.l.b16 %v4309
    %v4496 = vunpack.c.h.b16 %v4309
    %v4497 = vunpack.c.l.b16 %v4310
    %v4498 = vunpack.c.h.b16 %v4310
    %v4499 = vunpack.c.l.b16 %v4311
    %v4500 = vunpack.c.h.b16 %v4311
    %v4501 = vunpack.c.l.b16 %v4312
    %v4502 = vunpack.c.h.b16 %v4312
    %v4503 = vunpack.c.l.b16 %v4313
    %v4504 = vunpack.c.h.b16 %v4313
    %v4505 = vunpack.c.l.b16 %v4314
    %v4506 = vunpack.c.h.b16 %v4314
    %v4507 = vunpack.c.l.b16 %v4315
    %v4508 = vunpack.c.h.b16 %v4315
    %v4509 = vunpack.c.l.b16 %v4316
    %v4510 = vunpack.c.h.b16 %v4316
    %v4511 = vunpack.c.l.b16 %v4317
    %v4512 = vunpack.c.h.b16 %v4317
    %v4513 = vunpack.c.l.b16 %v4318
    %v4514 = vunpack.c.h.b16 %v4318
    %v4515 = vunpack.c.l.b16 %v4319
    %v4516 = vunpack.c.h.b16 %v4319
    %v4517 = vunpack.c.l.b16 %v4320
    %v4518 = vunpack.c.h.b16 %v4320
    %v4519 = vunpack.c.l.b16 %v4321
    %v4520 = vunpack.c.h.b16 %v4321
    %v4521 = vunpack.c.l.b16 %v4322
    %v4522 = vunpack.c.h.b16 %v4322
    %v4523 = vunpack.c.l.b16 %v4323
    %v4524 = vunpack.c.h.b16 %v4323
    %v4525 = vunpack.c.l.b16 %v4324
    %v4526 = vunpack.c.h.b16 %v4324
    %v4527 = vunpack.c.l.b16 %v4325
    %v4528 = vunpack.c.h.b16 %v4325
    %v4529 = vunpack.c.l.b16 %v4326
    %v4530 = vunpack.c.h.b16 %v4326
    %v4531 = vpack.c.b16 %v4405, %v4403
    %v4532 = vpack.c.b16 %v4406, %v4404
    %v4533 = vpack.c.b16 %v4409, %v4407
    %v4534 = vpack.c.b16 %v4410, %v4408
    %v4535 = vpack.c.b16 %v4413, %v4411
    %v4536 = vpack.c.b16 %v4414, %v4412
    %v4537 = vpack.c.b16 %v4417, %v4415
    %v4538 = vpack.c.b16 %v4418, %v4416
    %v4539 = vpack.c.b16 %v4421, %v4419
    %v4540 = vpack.c.b16 %v4422, %v4420
    %v4541 = vpack.c.b16 %v4425, %v4423
    %v4542 = vpack.c.b16 %v4426, %v4424
    %v4543 = vpack.c.b16 %v4429, %v4427
    %v4544 = vpack.c.b16 %v4430, %v4428
    %v4545 = vpack.c.b16 %v4433, %v4431
    %v4546 = vpack.c.b16 %v4434, %v4432
    %v4547 = vpack.c.b16 %v4437, %v4435
    %v4548 = vpack.c.b16 %v4438, %v4436
    %v4549 = vpack.c.b16 %v4441, %v4439
    %v4550 = vpack.c.b16 %v4442, %v4440
    %v4551 = vpack.c.b16 %v4445, %v4443
    %v4552 = vpack.c.b16 %v4446, %v4444
    %v4553 = vpack.c.b16 %v4449, %v4447
    %v4554 = vpack.c.b16 %v4450, %v4448
    %v4555 = vpack.c.b16 %v4453, %v4451
    %v4556 = vpack.c.b16 %v4454, %v4452
    %v4557 = vpack.c.b16 %v4457, %v4455
    %v4558 = vpack.c.b16 %v4458, %v4456
    %v4559 = vpack.c.b16 %v4461, %v4459
    %v4560 = vpack.c.b16 %v4462, %v4460
    %v4561 = vpack.c.b16 %v4465, %v4463
    %v4562 = vpack.c.b16 %v4466, %v4464
    %v4563 = vpack.c.b16 %v4469, %v4467
    %v4564 = vpack.c.b16 %v4470, %v4468
    %v4565 = vpack.c.b16 %v4473, %v4471
    %v4566 = vpack.c.b16 %v4474, %v4472
    %v4567 = vpack.c.b16 %v4477, %v4475
    %v4568 = vpack.c.b16 %v4478, %v4476
    %v4569 = vpack.c.b16 %v4481, %v4479
    %v4570 = vpack.c.b16 %v4482, %v4480
    %v4571 = vpack.c.b16 %v4485, %v4483
    %v4572 = vpack.c.b16 %v4486, %v4484
    %v4573 = vpack.c.b16 %v4489, %v4487
    %v4574 = vpack.c.b16 %v4490, %v4488
    %v4575 = vpack.c.b16 %v4493, %v4491
    %v4576 = vpack.c.b16 %v4494, %v4492
    %v4577 = vpack.c.b16 %v4497, %v4495
    %v4578 = vpack.c.b16 %v4498, %v4496
    %v4579 = vpack.c.b16 %v4501, %v4499
    %v4580 = vpack.c.b16 %v4502, %v4500
    %v4581 = vpack.c.b16 %v4505, %v4503
    %v4582 = vpack.c.b16 %v4506, %v4504
    %v4583 = vpack.c.b16 %v4509, %v4507
    %v4584 = vpack.c.b16 %v4510, %v4508
    %v4585 = vpack.c.b16 %v4513, %v4511
    %v4586 = vpack.c.b16 %v4514, %v4512
    %v4587 = vpack.c.b16 %v4517, %v4515
    %v4588 = vpack.c.b16 %v4518, %v4516
    %v4589 = vpack.c.b16 %v4521, %v4519
    %v4590 = vpack.c.b16 %v4522, %v4520
    %v4591 = vpack.c.b16 %v4525, %v4523
    %v4592 = vpack.c.b16 %v4526, %v4524
    %v4593 = vpack.c.b16 %v4529, %v4527
    %v4594 = vpack.c.b16 %v4530, %v4528
    %4659 = vmatprep.subr.bf16.mxu0 %v4532
    %4660 = vmatpush1.bf16.msra.mxu0 %v4531
    %4661 = vmatprep.subr.bf16.mxu0 %v4534
    %4662 = vmatpush1.bf16.msra.mxu0 %v4533
    %4663 = vmatprep.subr.bf16.mxu0 %v4536
    %4664 = vmatpush1.bf16.msra.mxu0 %v4535
    %4665 = vmatprep.subr.bf16.mxu0 %v4538
    %4666 = vmatpush1.bf16.msra.mxu0 %v4537
    %4667 = vmatprep.subr.bf16.mxu0 %v4540
    %4668 = vmatpush1.bf16.msra.mxu0 %v4539
    %4669 = vmatprep.subr.bf16.mxu0 %v4542
    %4670 = vmatpush1.bf16.msra.mxu0 %v4541
    %4671 = vmatprep.subr.bf16.mxu0 %v4544
    %4672 = vmatpush1.bf16.msra.mxu0 %v4543
    %4673 = vmatprep.subr.bf16.mxu0 %v4546
    %4674 = vmatpush1.bf16.msra.mxu0 %v4545
    %4675 = vmatprep.subr.bf16.mxu0 %v4548
    %4676 = vmatpush1.bf16.msra.mxu0 %v4547
    %4677 = vmatprep.subr.bf16.mxu0 %v4550
    %4678 = vmatpush1.bf16.msra.mxu0 %v4549
    %4679 = vmatprep.subr.bf16.mxu0 %v4552
    %4680 = vmatpush1.bf16.msra.mxu0 %v4551
    %4681 = vmatprep.subr.bf16.mxu0 %v4554
    %4682 = vmatpush1.bf16.msra.mxu0 %v4553
    %4683 = vmatprep.subr.bf16.mxu0 %v4556
    %4684 = vmatpush1.bf16.msra.mxu0 %v4555
    %4685 = vmatprep.subr.bf16.mxu0 %v4558
    %4686 = vmatpush1.bf16.msra.mxu0 %v4557
    %4687 = vmatprep.subr.bf16.mxu0 %v4560
    %4688 = vmatpush1.bf16.msra.mxu0 %v4559
    %4689 = vmatprep.subr.bf16.mxu0 %v4562
    %4690 = vmatpush1.bf16.msra.mxu0 %v4561
    %4691 = vmatprep.mubr.bf16.mxu0 %v4260
    %4692 = vmatmul.mubr.bf16.gmra.mrb[0].mxu0 %v4259
    %v4693 = vpop.f32.mrb[0].mxu0
    %v4694 = vadd.f32 %v4332, %v4693
    %v4695 = vpop.f32.mrb[0].mxu0
    %v4696 = vadd.f32 %v4336, %v4695
    %v4697 = vpop.f32.mrb[0].mxu0
    %v4698 = vpop.f32.mrb[0].mxu0
    %4699 = vdwg.mxu0
    %4700 = vmatprep.subr.bf16.mxu0 %v4564
    %4701 = vmatpush1.bf16.msra.mxu0 %v4563
    %4702 = vmatprep.subr.bf16.mxu0 %v4566
    %4703 = vmatpush1.bf16.msra.mxu0 %v4565
    %4704 = vmatprep.subr.bf16.mxu0 %v4568
    %4705 = vmatpush1.bf16.msra.mxu0 %v4567
    %4706 = vmatprep.subr.bf16.mxu0 %v4570
    %4707 = vmatpush1.bf16.msra.mxu0 %v4569
    %4708 = vmatprep.subr.bf16.mxu0 %v4572
    %4709 = vmatpush1.bf16.msra.mxu0 %v4571
    %4710 = vmatprep.subr.bf16.mxu0 %v4574
    %4711 = vmatpush1.bf16.msra.mxu0 %v4573
    %4712 = vmatprep.subr.bf16.mxu0 %v4576
    %4713 = vmatpush1.bf16.msra.mxu0 %v4575
    %4714 = vmatprep.subr.bf16.mxu0 %v4578
    %4715 = vmatpush1.bf16.msra.mxu0 %v4577
    %4716 = vmatprep.subr.bf16.mxu0 %v4580
    %4717 = vmatpush1.bf16.msra.mxu0 %v4579
    %4718 = vmatprep.subr.bf16.mxu0 %v4582
    %4719 = vmatpush1.bf16.msra.mxu0 %v4581
    %4720 = vmatprep.subr.bf16.mxu0 %v4584
    %4721 = vmatpush1.bf16.msra.mxu0 %v4583
    %4722 = vmatprep.subr.bf16.mxu0 %v4586
    %4723 = vmatpush1.bf16.msra.mxu0 %v4585
    %4724 = vmatprep.subr.bf16.mxu0 %v4588
    %4725 = vmatpush1.bf16.msra.mxu0 %v4587
    %4726 = vmatprep.subr.bf16.mxu0 %v4590
    %4727 = vmatpush1.bf16.msra.mxu0 %v4589
    %4728 = vmatprep.subr.bf16.mxu0 %v4592
    %4729 = vmatpush1.bf16.msra.mxu0 %v4591
    %4730 = vmatprep.subr.bf16.mxu0 %v4594
    %4731 = vmatpush1.bf16.msra.mxu0 %v4593
    %4732 = vmatprep.mubr.bf16.mxu0 %v4262
    %4733 = vmatmul.mubr.bf16.gmra.mrb[0].mxu0 %v4261
    %v4734 = vpop.f32.mrb[0].mxu0
    %v4735 = vadd.f32 %v4694, %v4734
    %v4736 = vpop.f32.mrb[0].mxu0
    %v4737 = vadd.f32 %v4696, %v4736
    %v4738 = vpop.f32.mrb[0].mxu0
    %v4739 = vpop.f32.mrb[0].mxu0
    %4740 = vdwg.mxu0
    %v4741 = vmax.f32 %v4735, 0.0
    %v4742 = vmax.f32 %v4737, 0.0
    %v4743 = vpack.c.bf16 %v4741, %v4741
    %v4744 = vpack.c.bf16 %v4742, %v4742
    %v4745 = vld [vmem:[#allocation13] sm:$0xf]
    %v4746 = vld [vmem:[#allocation13 + $0x4] sm:$0xf]
    %v4747 = vld [vmem:[#allocation13 + $0x8] sm:$0xf]
    %v4748 = vld [vmem:[#allocation13 + $0xc] sm:$0xf]
    %v4749 = vld [vmem:[#allocation13 + $0x10] sm:$0xf]
    %v4750 = vld [vmem:[#allocation13 + $0x14] sm:$0xf]
    %v4751 = vld [vmem:[#allocation13 + $0x18] sm:$0xf]
    %v4752 = vld [vmem:[#allocation13 + $0x1c] sm:$0xf]
    %v4753 = vld [vmem:[#allocation13 + $0x20] sm:$0xf]
    %v4754 = vld [vmem:[#allocation13 + $0x24] sm:$0xf]
    %v4755 = vld [vmem:[#allocation13 + $0x28] sm:$0xf]
    %v4756 = vld [vmem:[#allocation13 + $0x2c] sm:$0xf]
    %v4757 = vld [vmem:[#allocation13 + $0x30] sm:$0xf]
    %v4758 = vld [vmem:[#allocation13 + $0x34] sm:$0xf]
    %v4759 = vld [vmem:[#allocation13 + $0x38] sm:$0xf]
    %v4760 = vld [vmem:[#allocation13 + $0x3c] sm:$0xf]
    %v4761 = vld [vmem:[#allocation13 + $0x40] sm:$0xf]
    %v4762 = vld [vmem:[#allocation13 + $0x44] sm:$0xf]
    %v4763 = vld [vmem:[#allocation13 + $0x48] sm:$0xf]
    %v4764 = vld [vmem:[#allocation13 + $0x4c] sm:$0xf]
    %v4765 = vld [vmem:[#allocation13 + $0x50] sm:$0xf]
    %v4766 = vld [vmem:[#allocation13 + $0x54] sm:$0xf]
    %v4767 = vld [vmem:[#allocation13 + $0x58] sm:$0xf]
    %v4768 = vld [vmem:[#allocation13 + $0x5c] sm:$0xf]
    %v4769 = vld [vmem:[#allocation13 + $0x60] sm:$0xf]
    %v4770 = vld [vmem:[#allocation13 + $0x64] sm:$0xf]
    %v4771 = vld [vmem:[#allocation13 + $0x68] sm:$0xf]
    %v4772 = vld [vmem:[#allocation13 + $0x6c] sm:$0xf]
    %v4773 = vld [vmem:[#allocation13 + $0x70] sm:$0xf]
    %v4774 = vld [vmem:[#allocation13 + $0x74] sm:$0xf]
    %v4775 = vld [vmem:[#allocation13 + $0x78] sm:$0xf]
    %v4776 = vld [vmem:[#allocation13 + $0x7c] sm:$0xf]
    %v4777 = vld [vmem:[%s10] sm:$0x1]
    %v4779 = vlaneseq
    %v4780 = vshrl.u32 %v4779, 7
    %v4781 = vsub.s32 0, %v4780
    %v4782 = vrot.slane %v4777, %v4781
    %v4816 = vunpack.c.l.b16 %v4745
    %v4817 = vunpack.c.l.b16 %v4746
    %v4818 = vunpack.c.l.b16 %v4747
    %v4819 = vunpack.c.l.b16 %v4748
    %v4820 = vunpack.c.l.b16 %v4749
    %v4821 = vunpack.c.l.b16 %v4750
    %v4822 = vunpack.c.l.b16 %v4751
    %v4823 = vunpack.c.l.b16 %v4752
    %v4824 = vunpack.c.l.b16 %v4753
    %v4825 = vunpack.c.l.b16 %v4754
    %v4826 = vunpack.c.l.b16 %v4755
    %v4827 = vunpack.c.l.b16 %v4756
    %v4828 = vunpack.c.l.b16 %v4757
    %v4829 = vunpack.c.l.b16 %v4758
    %v4830 = vunpack.c.l.b16 %v4759
    %v4831 = vunpack.c.l.b16 %v4760
    %v4832 = vunpack.c.l.b16 %v4761
    %v4833 = vunpack.c.l.b16 %v4762
    %v4834 = vunpack.c.l.b16 %v4763
    %v4835 = vunpack.c.l.b16 %v4764
    %v4836 = vunpack.c.l.b16 %v4765
    %v4837 = vunpack.c.l.b16 %v4766
    %v4838 = vunpack.c.l.b16 %v4767
    %v4839 = vunpack.c.l.b16 %v4768
    %v4840 = vunpack.c.l.b16 %v4769
    %v4841 = vunpack.c.l.b16 %v4770
    %v4842 = vunpack.c.l.b16 %v4771
    %v4843 = vunpack.c.l.b16 %v4772
    %v4844 = vunpack.c.l.b16 %v4773
    %v4845 = vunpack.c.l.b16 %v4774
    %v4846 = vunpack.c.l.b16 %v4775
    %v4847 = vunpack.c.l.b16 %v4776
    %v4848 = vpack.c.b16 %v4817, %v4816
    %v4849 = vpack.c.b16 %v4819, %v4818
    %v4850 = vpack.c.b16 %v4821, %v4820
    %v4851 = vpack.c.b16 %v4823, %v4822
    %v4852 = vpack.c.b16 %v4825, %v4824
    %v4853 = vpack.c.b16 %v4827, %v4826
    %v4854 = vpack.c.b16 %v4829, %v4828
    %v4855 = vpack.c.b16 %v4831, %v4830
    %v4856 = vpack.c.b16 %v4833, %v4832
    %v4857 = vpack.c.b16 %v4835, %v4834
    %v4858 = vpack.c.b16 %v4837, %v4836
    %v4859 = vpack.c.b16 %v4839, %v4838
    %v4860 = vpack.c.b16 %v4841, %v4840
    %v4861 = vpack.c.b16 %v4843, %v4842
    %v4862 = vpack.c.b16 %v4845, %v4844
    %v4863 = vpack.c.b16 %v4847, %v4846
    %4880 = vmatprep.subr.bf16.mxu0 0
    %4881 = vmatpush1.bf16.msra.mxu0 %v4848
    %4882 = vmatprep.subr.bf16.mxu0 0
    %4883 = vmatpush1.bf16.msra.mxu0 %v4849
    %4884 = vmatprep.subr.bf16.mxu0 0
    %4885 = vmatpush1.bf16.msra.mxu0 %v4850
    %4886 = vmatprep.subr.bf16.mxu0 0
    %4887 = vmatpush1.bf16.msra.mxu0 %v4851
    %4888 = vmatprep.subr.bf16.mxu0 0
    %4889 = vmatpush1.bf16.msra.mxu0 %v4852
    %4890 = vmatprep.subr.bf16.mxu0 0
    %4891 = vmatpush1.bf16.msra.mxu0 %v4853
    %4892 = vmatprep.subr.bf16.mxu0 0
    %4893 = vmatpush1.bf16.msra.mxu0 %v4854
    %4894 = vmatprep.subr.bf16.mxu0 0
    %4895 = vmatpush1.bf16.msra.mxu0 %v4855
    %4896 = vmatprep.subr.bf16.mxu0 0
    %4897 = vmatpush1.bf16.msra.mxu0 %v4856
    %4898 = vmatprep.subr.bf16.mxu0 0
    %4899 = vmatpush1.bf16.msra.mxu0 %v4857
    %4900 = vmatprep.subr.bf16.mxu0 0
    %4901 = vmatpush1.bf16.msra.mxu0 %v4858
    %4902 = vmatprep.subr.bf16.mxu0 0
    %4903 = vmatpush1.bf16.msra.mxu0 %v4859
    %4904 = vmatprep.subr.bf16.mxu0 0
    %4905 = vmatpush1.bf16.msra.mxu0 %v4860
    %4906 = vmatprep.subr.bf16.mxu0 0
    %4907 = vmatpush1.bf16.msra.mxu0 %v4861
    %4908 = vmatprep.subr.bf16.mxu0 0
    %4909 = vmatpush1.bf16.msra.mxu0 %v4862
    %4910 = vmatprep.subr.bf16.mxu0 0
    %4911 = vmatpush1.bf16.msra.mxu0 %v4863
    %4912 = vmatprep.mubr.bf16.mxu0 %v4744
    %4913 = vmatmul.mubr.bf16.gmra.mrb[0].mxu0 %v4743
    %v4914 = vpop.f32.mrb[0].mxu0
    %v4915 = vadd.f32 %v4782, %v4914
    %v4916 = vpop.f32.mrb[0].mxu0
    %v4917 = vpop.f32.mrb[0].mxu0
    %v4918 = vpop.f32.mrb[0].mxu0
    %4919 = vdwg.mxu0
    %v4920 = vmax.f32 %v4915, 0.0
    %v4921 = vpack.c.bf16 %v4920, %v4920
    %v4922 = vld [vmem:[%s11] sm:$0xf]
    %v4923 = vld [vmem:[%s11 + $0x4] sm:$0xf]
    %v4924 = vld [vmem:[%s11 + $0x8] sm:$0xf]
    %v4925 = vld [vmem:[%s11 + $0xc] sm:$0xf]
    %v4926 = vld [vmem:[%s11 + $0x10] sm:$0xf]
    %v4927 = vld [vmem:[%s11 + $0x14] sm:$0xf]
    %v4928 = vld [vmem:[%s11 + $0x18] sm:$0xf]
    %v4929 = vld [vmem:[%s11 + $0x1c] sm:$0xf]
    %v4930 = vld [vmem:[%s11 + $0x20] sm:$0xf]
    %v4931 = vld [vmem:[%s11 + $0x24] sm:$0xf]
    %v4932 = vld [vmem:[%s11 + $0x28] sm:$0xf]
    %v4933 = vld [vmem:[%s11 + $0x2c] sm:$0xf]
    %v4934 = vld [vmem:[%s11 + $0x30] sm:$0xf]
    %v4935 = vld [vmem:[%s11 + $0x34] sm:$0xf]
    %v4936 = vld [vmem:[%s11 + $0x38] sm:$0xf]
    %v4937 = vld [vmem:[%s11 + $0x3c] sm:$0xf]
    %v4938 = vld [vmem:[%s12] sm:$0x1]
    %v4940 = vlaneseq
    %v4941 = vshrl.u32 %v4940, 7
    %v4942 = vsub.s32 0, %v4941
    %v4943 = vrot.slane %v4938, %v4942
    %v4961 = vunpack.c.l.b16 %v4922
    %v4962 = vunpack.c.l.b16 %v4923
    %v4963 = vunpack.c.l.b16 %v4924
    %v4964 = vunpack.c.l.b16 %v4925
    %v4965 = vunpack.c.l.b16 %v4926
    %v4966 = vunpack.c.l.b16 %v4927
    %v4967 = vunpack.c.l.b16 %v4928
    %v4968 = vunpack.c.l.b16 %v4929
    %v4969 = vunpack.c.l.b16 %v4930
    %v4970 = vunpack.c.l.b16 %v4931
    %v4971 = vunpack.c.l.b16 %v4932
    %v4972 = vunpack.c.l.b16 %v4933
    %v4973 = vunpack.c.l.b16 %v4934
    %v4974 = vunpack.c.l.b16 %v4935
    %v4975 = vunpack.c.l.b16 %v4936
    %v4976 = vunpack.c.l.b16 %v4937
    %v4977 = vpack.c.b16 %v4962, %v4961
    %v4978 = vpack.c.b16 %v4964, %v4963
    %v4979 = vpack.c.b16 %v4966, %v4965
    %v4980 = vpack.c.b16 %v4968, %v4967
    %v4981 = vpack.c.b16 %v4970, %v4969
    %v4982 = vpack.c.b16 %v4972, %v4971
    %v4983 = vpack.c.b16 %v4974, %v4973
    %v4984 = vpack.c.b16 %v4976, %v4975
    %4993 = vmatprep.subr.bf16.mxu0 0
    %4994 = vmatpush1.bf16.msra.mxu0 %v4977
    %4995 = vmatprep.subr.bf16.mxu0 0
    %4996 = vmatpush1.bf16.msra.mxu0 %v4978
    %4997 = vmatprep.subr.bf16.mxu0 0
    %4998 = vmatpush1.bf16.msra.mxu0 %v4979
    %4999 = vmatprep.subr.bf16.mxu0 0
    %5000 = vmatpush1.bf16.msra.mxu0 %v4980
    %5001 = vmatprep.subr.bf16.mxu0 0
    %5002 = vmatpush1.bf16.msra.mxu0 %v4981
    %5003 = vmatprep.subr.bf16.mxu0 0
    %5004 = vmatpush1.bf16.msra.mxu0 %v4982
    %5005 = vmatprep.subr.bf16.mxu0 0
    %5006 = vmatpush1.bf16.msra.mxu0 %v4983
    %5007 = vmatprep.subr.bf16.mxu0 0
    %5008 = vmatpush1.bf16.msra.mxu0 %v4984
    %5009 = vmatprep.subr.bf16.mxu0 0
    %5010 = vmatpush1.bf16.msra.mxu0 0
    %5011 = vmatprep.subr.bf16.mxu0 0
    %5012 = vmatpush1.bf16.msra.mxu0 0
    %5013 = vmatprep.subr.bf16.mxu0 0
    %5014 = vmatpush1.bf16.msra.mxu0 0
    %5015 = vmatprep.subr.bf16.mxu0 0
    %5016 = vmatpush1.bf16.msra.mxu0 0
    %5017 = vmatprep.subr.bf16.mxu0 0
    %5018 = vmatpush1.bf16.msra.mxu0 0
    %5019 = vmatprep.subr.bf16.mxu0 0
    %5020 = vmatpush1.bf16.msra.mxu0 0
    %5021 = vmatprep.subr.bf16.mxu0 0
    %5022 = vmatpush1.bf16.msra.mxu0 0
    %5023 = vmatprep.subr.bf16.mxu0 0
    %5024 = vmatpush1.bf16.msra.mxu0 0
    %5025 = vmatprep.mubr.bf16.mxu0 0
    %5026 = vmatmul.mubr.bf16.gmra.mrb[0].mxu0 %v4921
    %v5027 = vpop.f32.mrb[0].mxu0
    %v5028 = vadd.f32 %v4943, %v5027
    %v5029 = vpop.f32.mrb[0].mxu0
    %v5030 = vpop.f32.mrb[0].mxu0
    %v5031 = vpop.f32.mrb[0].mxu0
    %5032 = vdwg.mxu0
    %v5033 = vmax.f32 %v5028, 0.0
    %v5034 = vpack.c.bf16 %v5033, %v5033
    %v5035 = vld [vmem:[%s13] sm:$0xf]
    %v5036 = vld [vmem:[%s13 + $0x4] sm:$0xf]
    %v5037 = vld [vmem:[%s13 + $0x8] sm:$0xf]
    %v5038 = vld [vmem:[%s13 + $0xc] sm:$0xf]
    %v5039 = vld [vmem:[%s13 + $0x10] sm:$0xf]
    %v5040 = vld [vmem:[%s13 + $0x14] sm:$0xf]
    %v5041 = vld [vmem:[%s13 + $0x18] sm:$0xf]
    %v5042 = vld [vmem:[%s13 + $0x1c] sm:$0xf]
    %v5043 = vld [vmem:[%s14] sm:$0x1]
    %v5045 = vlaneseq
    %v5046 = vshrl.u32 %v5045, 7
    %v5047 = vsub.s32 0, %v5046
    %v5048 = vrot.slane %v5043, %v5047
    %v5058 = vunpack.c.l.b16 %v5035
    %v5059 = vunpack.c.l.b16 %v5036
    %v5060 = vunpack.c.l.b16 %v5037
    %v5061 = vunpack.c.l.b16 %v5038
    %v5062 = vunpack.c.l.b16 %v5039
    %v5063 = vunpack.c.l.b16 %v5040
    %v5064 = vunpack.c.l.b16 %v5041
    %v5065 = vunpack.c.l.b16 %v5042
    %v5066 = vpack.c.b16 %v5059, %v5058
    %v5067 = vpack.c.b16 %v5061, %v5060
    %v5068 = vpack.c.b16 %v5063, %v5062
    %v5069 = vpack.c.b16 %v5065, %v5064
    %vm5074 = vcmask 523264
    %v5076 = vsel %vm5074, %v5034, 0
    %5078 = vmatprep.subr.bf16.mxu0 0
    %5079 = vmatpush1.bf16.msra.mxu0 %v5066
    %5080 = vmatprep.subr.bf16.mxu0 0
    %5081 = vmatpush1.bf16.msra.mxu0 %v5067
    %5082 = vmatprep.subr.bf16.mxu0 0
    %5083 = vmatpush1.bf16.msra.mxu0 %v5068
    %5084 = vmatprep.subr.bf16.mxu0 0
    %5085 = vmatpush1.bf16.msra.mxu0 %v5069
    %5086 = vmatprep.subr.bf16.mxu0 0
    %5087 = vmatpush1.bf16.msra.mxu0 0
    %5088 = vmatprep.subr.bf16.mxu0 0
    %5089 = vmatpush1.bf16.msra.mxu0 0
    %5090 = vmatprep.subr.bf16.mxu0 0
    %5091 = vmatpush1.bf16.msra.mxu0 0
    %5092 = vmatprep.subr.bf16.mxu0 0
    %5093 = vmatpush1.bf16.msra.mxu0 0
    %5094 = vmatprep.subr.bf16.mxu0 0
    %5095 = vmatpush1.bf16.msra.mxu0 0
    %5096 = vmatprep.subr.bf16.mxu0 0
    %5097 = vmatpush1.bf16.msra.mxu0 0
    %5098 = vmatprep.subr.bf16.mxu0 0
    %5099 = vmatpush1.bf16.msra.mxu0 0
    %5100 = vmatprep.subr.bf16.mxu0 0
    %5101 = vmatpush1.bf16.msra.mxu0 0
    %5102 = vmatprep.subr.bf16.mxu0 0
    %5103 = vmatpush1.bf16.msra.mxu0 0
    %5104 = vmatprep.subr.bf16.mxu0 0
    %5105 = vmatpush1.bf16.msra.mxu0 0
    %5106 = vmatprep.subr.bf16.mxu0 0
    %5107 = vmatpush1.bf16.msra.mxu0 0
    %5108 = vmatprep.subr.bf16.mxu0 0
    %5109 = vmatpush1.bf16.msra.mxu0 0
    %5110 = vmatprep.mubr.bf16.mxu0 0
    %5111 = vmatmul.mubr.bf16.gmra.mrb[0].mxu0 %v5076
    %v5112 = vpop.f32.mrb[0].mxu0
    %v5113 = vadd.f32 %v5048, %v5112
    %v5114 = vpop.f32.mrb[0].mxu0
    %v5115 = vpop.f32.mrb[0].mxu0
    %v5116 = vpop.f32.mrb[0].mxu0
    %5117 = vdwg.mxu0
    %5118 = vst [vmem:[#allocation14] sm:$0xff] %v5113
    // Predicated region
    $region90: #{_dqn_forward_impl.1} parent=1 // pred_check
      _
    $region91: #{_dqn_forward_impl.1} parent=1 // pred_check_branch
      %5120 = sbr.rel (0) target = $region93
    $region92: #{_dqn_forward_impl.1} parent=1 // pred_region
      %s5122 = ssub.s32 128, 128
      %5123 = vsyncadd [#allocation4], %s5122
      %s5125 = sshll.u32 [#allocation14], 4
      %s5126 = int_to_ptr.vmem [resolvable:$true] %s5125
      %5128 = dma.vmem_to_hbm [thread:$0]  %s5126, 128, %s15, [#allocation4]
    $region93: #{_dqn_forward_impl.1} parent=1 // pred_fallthru
      _
    // Predicated region
    $region94: #{_dqn_forward_impl.1} parent=1 // pred_check
      _
    $region95: #{_dqn_forward_impl.1} parent=1 // pred_check_branch
      %5130 = sbr.rel (0) target = $region97
    $region96: #{_dqn_forward_impl.1} parent=1 // pred_region
      %5131 = dma.done [#allocation4], 128
    $region97: #{_dqn_forward_impl.1} parent=1 // pred_fallthru
      _
    %5132 = vsyncpa [#allocation3], 1
    %5133 = vsyncpa [#allocation6], 1
    %5134 = vsyncpa [#allocation9], 1
    %5135 = vsyncpa [#allocation12], 1
    %5136 = vsyncpa [#allocation4], 1

</llo_original>
